<compile_context>
chip_gen: v7x
topology: tpu7x:2x2x1
jax: 0.10.0
libtpu: 0.0.40
codegen_flags: <defaults>
</compile_context>

<pallas_src>
import numpy as np
import jax
import jax.numpy as jnp
from jax.experimental import pallas as pl
from jax.experimental.pallas import tpu as pltpu

# ----------------------------- model hyperparams -----------------------------
BATCH = 2
IMAGE_CHANNEL = 1
IMAGE_SIZE = 16
CONCEPT_SIZE = 4
NUM_CONCEPT = 2
TOTAL_SIZE = CONCEPT_SIZE * NUM_CONCEPT      # encoder output / decoder input dim (8)
ENC_HIDDEN = [8, 16]                         # args.enc
ENC_INNER_DIM = 32                           # args.enc_inner_dim
DEC_HIDDEN = [16, 8]                         # args.dec
DEC_INNER_DIM = 32                           # args.dec_inner_dim
BN_EPS = 1e-5
LEAKY_SLOPE = 0.01

LANE = 128                                   # lane-dense pad width for narrow stages / z
X_COLS = IMAGE_SIZE * IMAGE_SIZE * IMAGE_CHANNEL   # 256
OUT_COLS = LANE + X_COLS                     # 384 = 3*128 -> unmasked output store

# packed small-constant slab layout (rows of a (14, 256) f32 slab)
VEC_ROWS, VEC_COLS = 14, 256
R_G1, R_BE1 = 0, 1        # enc conv1 BN   (C=8)
R_G2, R_BE2 = 2, 3        # enc conv2 BN   (C=16)
R_G3, R_BE3 = 4, 5        # enc conv3 BN   (C=32, lane-padded to 128)
R_GD1, R_BD1 = 6, 7       # dec convT1 BN  (C=32, lane-padded to 128)
R_GD2, R_BD2 = 8, 9       # dec convT2 BN  (C=16)
R_GD3, R_BD3 = 10, 11     # dec convT3 BN  (C=8)
R_BL, R_B4 = 12, 13       # encoder linear bias (padded to 128) / final convT bias (256)

# packed bf16 weight slab row offsets
A_W1, A_D3 = 0, 256           # slab A (512, 512):  [w1 | d3]
B_W2, B_D4, B_D2 = 0, 512, 1024   # slab B (1152, 256): [w2 | d4 | d2]
C_W3, C_WL, C_D1 = 0, 256, 384    # slab C (512, 128):  [w3 | wl | d1]


# -------------------- parameter preprocessing (numpy, once) -------------------
def _conv2d_operator(w, stride, pad, H, W):
    """Dense M s.t. flatten_nhwc(conv2d(x)) = flatten_nhwc(x) @ M (bias excluded).

    w: (C_out, C_in, k, k) PyTorch OIHW.  Flatten index = (h*W + w)*C + c.
    """
    C_out, C_in, k, _ = w.shape
    Ho = (H + 2 * pad - k) // stride + 1
    Wo = (W + 2 * pad - k) // stride + 1
    M = np.zeros((H * W * C_in, Ho * Wo * C_out), np.float32)
    wt = np.transpose(w, (2, 3, 1, 0))                       # (k, k, C_in, C_out)
    for ho in range(Ho):
        for wo in range(Wo):
            c0 = (ho * Wo + wo) * C_out
            for i in range(k):
                hi = ho * stride + i - pad
                if not 0 <= hi < H:
                    continue
                for j in range(k):
                    wi = wo * stride + j - pad
                    if not 0 <= wi < W:
                        continue
                    r0 = (hi * W + wi) * C_in
                    M[r0:r0 + C_in, c0:c0 + C_out] += wt[i, j]
    return M, Ho, Wo


def _convT2d_operator(w, stride, pad, H, W):
    """Dense operator for ConvTranspose2d.  w: (C_in, C_out, k, k) PyTorch layout."""
    C_in, C_out, k, _ = w.shape
    Ho = (H - 1) * stride - 2 * pad + k
    Wo = (W - 1) * stride - 2 * pad + k
    M = np.zeros((H * W * C_in, Ho * Wo * C_out), np.float32)
    wt = np.transpose(w, (2, 3, 0, 1))                       # (k, k, C_in, C_out)
    for hi in range(H):
        for wi in range(W):
            r0 = (hi * W + wi) * C_in
            for i in range(k):
                ho = hi * stride - pad + i
                if not 0 <= ho < Ho:
                    continue
                for j in range(k):
                    wo = wi * stride - pad + j
                    if not 0 <= wo < Wo:
                        continue
                    c0 = (ho * Wo + wo) * C_out
                    M[r0:r0 + C_in, c0:c0 + C_out] += wt[i, j]
    return M, Ho, Wo


def _pool_bcast(P, C):
    """pool (P*C, C): mean over positions per channel; bcast (C, P*C): channel tile."""
    eye = np.eye(C, dtype=np.float32)
    pool = np.tile(eye / P, (P, 1))
    bcast = np.tile(eye, (1, P))
    return pool, bcast


# ------------------------------- parameters -----------------------------------
def init_params(key):
    keys = iter(jax.random.split(key, 32))
    nrm = lambda shape: 0.1 * jax.random.normal(next(keys), shape, jnp.float32)

    def conv_layer(c_out, c_in, k, stride, pad, bn):
        return dict(w=nrm((c_out, c_in, k, k)), b=nrm((c_out,)),
                    gamma=jnp.ones((c_out,), jnp.float32),
                    beta=jnp.zeros((c_out,), jnp.float32),
                    stride=stride, pad=pad, bn=bn)

    def convt_layer(c_in, c_out, k, stride, pad, bn):
        return dict(w=nrm((c_in, c_out, k, k)), b=nrm((c_out,)),
                    gamma=jnp.ones((c_out,), jnp.float32),
                    beta=jnp.zeros((c_out,), jnp.float32),
                    stride=stride, pad=pad, bn=bn)

    # CNNEncoder: hidden = [image_channel] + ENC_HIDDEN
    enc_chain = [IMAGE_CHANNEL] + ENC_HIDDEN
    encoder_convs = [conv_layer(co, ci, 4, 2, 1, True)
                     for ci, co in zip(enc_chain[:-1], enc_chain[1:])]
    encoder_convs.append(conv_layer(ENC_INNER_DIM, enc_chain[-1], 4, 1, 0, True))
    encoder_linear = dict(w=nrm((TOTAL_SIZE, ENC_INNER_DIM)), b=nrm((TOTAL_SIZE,)))

    # CNNDecoder
    decoder_convts = [
        convt_layer(TOTAL_SIZE, DEC_INNER_DIM, 1, 1, 0, True),
        convt_layer(DEC_INNER_DIM, DEC_HIDDEN[0], 4, 1, 0, True),
    ]
    for ci, co in zip(DEC_HIDDEN[:-1], DEC_HIDDEN[1:]):
        decoder_convts.append(convt_layer(ci, co, 4, 2, 1, True))
    decoder_convts.append(convt_layer(DEC_HIDDEN[-1], IMAGE_CHANNEL, 4, 2, 1, False))

    return dict(encoder_convs=encoder_convs,
                encoder_linear=encoder_linear,
                decoder_convts=decoder_convts)


def preprocess_params(params):
    """One-time lowering of PyTorch-layout weights to packed dense GEMM slabs."""
    to_np = lambda a: np.asarray(a, np.float32)

    # ---- encoder convs (bias dropped: exactly cancelled by batch-stats BN) ----
    H = W = IMAGE_SIZE
    enc = []
    for lay in params["encoder_convs"]:
        M, H, W = _conv2d_operator(to_np(lay["w"]), lay["stride"], lay["pad"], H, W)
        enc.append((M, to_np(lay["gamma"]), to_np(lay["beta"])))
    assert H == 1 and W == 1
    w1, g1, be1 = enc[0]                 # (256, 512), C=8
    w2, g2, be2 = enc[1]                 # (512, 256), C=16
    w3, g3, be3 = enc[2]                 # (256, 32),  C=32

    # ---- encoder linear ----
    wl = to_np(params["encoder_linear"]["w"]).T          # (32, 8)
    bl = to_np(params["encoder_linear"]["b"])            # (8,)

    # ---- decoder conv-transposes ----
    H = W = 1
    dec = []
    for lay in params["decoder_convts"]:
        M, H, W = _convT2d_operator(to_np(lay["w"]), lay["stride"], lay["pad"], H, W)
        dec.append((M, lay))
    assert H == IMAGE_SIZE and W == IMAGE_SIZE
    d1, gd1, bd1 = dec[0][0], to_np(dec[0][1]["gamma"]), to_np(dec[0][1]["beta"])  # (8, 32)
    d2, gd2, bd2 = dec[1][0], to_np(dec[1][1]["gamma"]), to_np(dec[1][1]["beta"])  # (32, 256)
    d3, gd3, bd3 = dec[2][0], to_np(dec[2][1]["gamma"]), to_np(dec[2][1]["beta"])  # (256, 512)
    d4 = dec[3][0]                                                                 # (512, 256)
    b4_full = np.tile(to_np(dec[3][1]["b"]), IMAGE_SIZE * IMAGE_SIZE)              # channel-minor

    # ---- lane-pad the narrow inner stages to 128 columns (zero pad => exact zeros) ----
    def pad2d(a, rows, cols):
        out = np.zeros((rows, cols), np.float32)
        out[:a.shape[0], :a.shape[1]] = a
        return out

    w3p = pad2d(w3, 256, LANE)       # output cols 32:128 zero
    wlp = pad2d(wl, LANE, LANE)      # rows >= 32 zero, cols >= 8 zero (lane-dense z)
    d1p = pad2d(d1, LANE, LANE)      # rows >= 8 zero, cols >= 32 zero
    d2p = pad2d(d2, LANE, 256)       # rows >= 32 zero

    # ---- packed bf16 weight slabs (3 DMAs instead of 8) ----
    wa = np.concatenate([w1, d3], axis=0)          # (512, 512)
    wb = np.concatenate([w2, d4, d2p], axis=0)     # (1152, 256)
    wc = np.concatenate([w3p, wlp, d1p], axis=0)   # (512, 128)

    # ---- packed f32 small-constant slab (gamma/beta/bias rows, 1 DMA) ----
    vecs = np.zeros((VEC_ROWS, VEC_COLS), np.float32)
    def put(r, v):
        vecs[r, :v.shape[0]] = v
    put(R_G1, g1);   put(R_BE1, be1)
    put(R_G2, g2);   put(R_BE2, be2)
    put(R_G3, g3);   put(R_BE3, be3)      # gamma pad=0 keeps padded lanes exactly 0
    put(R_GD1, gd1); put(R_BD1, bd1)
    put(R_GD2, gd2); put(R_BD2, bd2)
    put(R_GD3, gd3); put(R_BD3, bd3)
    put(R_BL, bl)                         # linear bias, lane-padded to 128
    put(R_B4, b4_full)                    # final convT bias, tiled channel-minor (256)

    # ---- BN pooling / broadcast constants (f32: stats precision, tiny bytes) ----
    pool_64_8, bc_64_8 = _pool_bcast(64, 8)       # 8x8 spatial, 8 ch  (enc L1, dec L3)
    pool_16_16, bc_16_16 = _pool_bcast(16, 16)    # 4x4 spatial, 16 ch (enc L2, dec L2)

    bf = lambda a: jnp.asarray(a).astype(jnp.bfloat16)
    f = jnp.asarray
    return (bf(wa), bf(wb), bf(wc), f(vecs),
            f(pool_64_8), f(bc_64_8), f(pool_16_16), f(bc_16_16))


# ----------------------------- fused Pallas kernel ----------------------------
def _autoencoder_kernel(x_ref, wa_ref, wb_ref, wc_ref, vec_ref,
                        p68_ref, b68_ref, p16_ref, b16_ref, out_ref):
    n = x_ref.shape[0]
    inv_n = 1.0 / n
    f32 = jnp.float32

    def dotw(a, w):       # bf16 MXU operands, f32 accumulation
        return jnp.dot(a.astype(jnp.bfloat16), w, preferred_element_type=f32)

    def dotf(a, b):       # small f32 helper matmuls (BN stats / broadcast)
        return jnp.dot(a, b, preferred_element_type=f32)

    V = vec_ref[...]                      # (14, 256) f32 small-constant slab
    p68, b68 = p68_ref[...], b68_ref[...]
    p16, b16 = p16_ref[...], b16_ref[...]

    def bn_pooled(y, gamma, beta, pool, bcast):
        """BatchNorm2d (batch stats) on channel-minor (N, P*C); 3 matmuls, chain of 2."""
        pm = dotf(y, pool)                                     # (N, C)  independent
        pm2 = dotf(y * y, pool)                                # (N, C)  independent
        mean = jnp.sum(pm, axis=0, keepdims=True) * inv_n      # (1, C)
        m2 = jnp.sum(pm2, axis=0, keepdims=True) * inv_n       # (1, C)
        var = jnp.maximum(m2 - mean * mean, 0.0)               # uncentered moments
        scale = gamma * jax.lax.rsqrt(var + BN_EPS)            # (1, C)
        shift = beta - mean * scale                            # (1, C)
        full = dotf(jnp.concatenate([scale, shift], axis=0), bcast)   # (2, P*C), ONE bcast
        return y * full[0:1, :] + full[1:2, :]

    def bn_flat(y, gamma, beta):
        """BatchNorm2d with 1x1 spatial: columns ARE channels (lane-padded; gamma pad=0)."""
        mean = jnp.sum(y, axis=0, keepdims=True) * inv_n
        m2 = jnp.sum(y * y, axis=0, keepdims=True) * inv_n
        var = jnp.maximum(m2 - mean * mean, 0.0)
        scale = gamma * jax.lax.rsqrt(var + BN_EPS)
        return y * scale + (beta - mean * scale)

    relu = lambda y: jnp.maximum(y, 0.0)
    lrelu = lambda y: jnp.where(y >= 0.0, y, LEAKY_SLOPE * y)

    # ---------------- encoder ----------------
    h = dotw(x_ref[...], wa_ref[A_W1:A_W1 + 256, :])                      # (N, 512) 8x8x8
    h = relu(bn_pooled(h, V[R_G1:R_G1 + 1, 0:8], V[R_BE1:R_BE1 + 1, 0:8], p68, b68))
    h = dotw(h, wb_ref[B_W2:B_W2 + 512, :])                               # (N, 256) 4x4x16
    h = relu(bn_pooled(h, V[R_G2:R_G2 + 1, 0:16], V[R_BE2:R_BE2 + 1, 0:16], p16, b16))
    h = dotw(h, wc_ref[C_W3:C_W3 + 256, :])                               # (N, 128) 1x1x32 pad
    h = relu(bn_flat(h, V[R_G3:R_G3 + 1, 0:LANE], V[R_BE3:R_BE3 + 1, 0:LANE]))
    z = dotw(h, wc_ref[C_WL:C_WL + LANE, :]) + V[R_BL:R_BL + 1, 0:LANE]   # (N, 128) lane-dense

    # ---------------- decoder ----------------
    d = dotw(z, wc_ref[C_D1:C_D1 + LANE, :])                              # (N, 128) 1x1x32 pad
    d = lrelu(bn_flat(d, V[R_GD1:R_GD1 + 1, 0:LANE], V[R_BD1:R_BD1 + 1, 0:LANE]))
    d = dotw(d, wb_ref[B_D2:B_D2 + LANE, :])                              # (N, 256) 4x4x16
    d = lrelu(bn_pooled(d, V[R_GD2:R_GD2 + 1, 0:16], V[R_BD2:R_BD2 + 1, 0:16], p16, b16))
    d = dotw(d, wa_ref[A_D3:A_D3 + 256, :])                               # (N, 512) 8x8x8
    d = lrelu(bn_pooled(d, V[R_GD3:R_GD3 + 1, 0:8], V[R_BD3:R_BD3 + 1, 0:8], p68, b68))
    d = dotw(d, wb_ref[B_D4:B_D4 + 512, :]) + V[R_B4:R_B4 + 1, 0:256]     # (N, 256) 16x16x1

    # exact overflow-free sigmoid, strictly in (0, 1): no clip needed
    e = jnp.exp(-jnp.abs(d))
    xm = jnp.where(d >= 0.0, 1.0, e) / (1.0 + e)

    # single merged lane-dense output store: [ z (128) | x_mean (256) ] = 384 lanes
    out_ref[...] = jnp.concatenate([z, xm], axis=1)


# ------------------------------- forward wrapper -------------------------------
def _full_spec(shape):
    return pl.BlockSpec(shape, lambda i: (0,) * len(shape))


def build_forward(consts, batch):
    call = pl.pallas_call(
        _autoencoder_kernel,
        out_shape=jax.ShapeDtypeStruct((batch, OUT_COLS), jnp.float32),
        grid=(1,),
        in_specs=[_full_spec((batch, X_COLS))] + [_full_spec(tuple(c.shape)) for c in consts],
        out_specs=_full_spec((batch, OUT_COLS)),
        compiler_params=pltpu.CompilerParams(dimension_semantics=("arbitrary",)),
    )

    @jax.jit
    def forward(x, consts):
        # IMAGE_CHANNEL == 1: NCHW flatten == channel-minor NHWC flatten (no transpose).
        if IMAGE_CHANNEL == 1:
            x_flat = x.reshape(batch, X_COLS).astype(jnp.float32)
        else:
            x_flat = jnp.transpose(x, (0, 2, 3, 1)).reshape(batch, X_COLS).astype(jnp.float32)
        out = call(x_flat, *consts)
        z_pad = out[:, :LANE]
        z_post = z_pad[:, :TOTAL_SIZE].reshape(batch, NUM_CONCEPT, CONCEPT_SIZE, 1)
        xm_flat = out[:, LANE:]
        if IMAGE_CHANNEL == 1:
            x_mean = xm_flat.reshape(batch, IMAGE_CHANNEL, IMAGE_SIZE, IMAGE_SIZE)
        else:
            x_mean = jnp.transpose(
                xm_flat.reshape(batch, IMAGE_SIZE, IMAGE_SIZE, IMAGE_CHANNEL), (0, 3, 1, 2))
        return z_post, x_mean, z_pad

    return lambda x: forward(x, consts)


# ----------------------------------- main --------------------------------------
if __name__ == "__main__":
    root = jax.random.PRNGKey(0)
    k_params, k_x = jax.random.split(root)
    params = init_params(k_params)
    consts = preprocess_params(params)
    forward = build_forward(consts, BATCH)

    x = jax.random.uniform(k_x, (BATCH, IMAGE_CHANNEL, IMAGE_SIZE, IMAGE_SIZE),
                           dtype=jnp.float32)
    z_post, x_mean, z_pad = forward(x)
    jax.block_until_ready((z_post, x_mean, z_pad))

    assert z_post.shape == (BATCH, NUM_CONCEPT, CONCEPT_SIZE, 1), z_post.shape
    assert x_mean.shape == (BATCH, IMAGE_CHANNEL, IMAGE_SIZE, IMAGE_SIZE), x_mean.shape
    assert bool(jnp.all(jnp.isfinite(z_post)))
    assert bool(jnp.all(jnp.isfinite(x_mean)))
    assert bool(jnp.all((x_mean >= 0.0) & (x_mean <= 1.0)))          # exact sigmoid output
    # lane-padding plumbing check: padded z columns must be exactly zero
    assert bool(jnp.all(jnp.abs(z_pad[:, TOTAL_SIZE:]) < 1e-6))

    print("KERNEL_OK")
</pallas_src>

<mosaic_0001>
module attributes {stable_mosaic.version = 11 : i64} {
  func.func @_autoencoder_kernel(%arg0: i32, %arg1: memref<2x256xf32, #tpu.memory_space<vmem>>, %arg2: memref<512x512xbf16, #tpu.memory_space<vmem>>, %arg3: memref<1152x256xbf16, #tpu.memory_space<vmem>>, %arg4: memref<512x128xbf16, #tpu.memory_space<vmem>>, %arg5: memref<14x256xf32, #tpu.memory_space<vmem>>, %arg6: memref<512x8xf32, #tpu.memory_space<vmem>>, %arg7: memref<8x512xf32, #tpu.memory_space<vmem>>, %arg8: memref<256x16xf32, #tpu.memory_space<vmem>>, %arg9: memref<16x256xf32, #tpu.memory_space<vmem>>, %arg10: memref<2x384xf32, #tpu.memory_space<vmem>>) attributes {dimension_semantics = [#tpu.dimension_semantics<arbitrary>], iteration_bounds = array<i64: 1>, scalar_prefetch = 0 : i64, scratch_operands = 0 : i64, tpu.core_type = #tpu.core_type<tc>, window_params = [{pipeline_mode = #tpu.pipeline_mode<synchronous>, transform_indices = @transform_0, window_bounds = array<i64: 2, 256>}, {pipeline_mode = #tpu.pipeline_mode<synchronous>, transform_indices = @transform_1, window_bounds = array<i64: 512, 512>}, {pipeline_mode = #tpu.pipeline_mode<synchronous>, transform_indices = @transform_2, window_bounds = array<i64: 1152, 256>}, {pipeline_mode = #tpu.pipeline_mode<synchronous>, transform_indices = @transform_3, window_bounds = array<i64: 512, 128>}, {pipeline_mode = #tpu.pipeline_mode<synchronous>, transform_indices = @transform_4, window_bounds = array<i64: 14, 256>}, {pipeline_mode = #tpu.pipeline_mode<synchronous>, transform_indices = @transform_5, window_bounds = array<i64: 512, 8>}, {pipeline_mode = #tpu.pipeline_mode<synchronous>, transform_indices = @transform_6, window_bounds = array<i64: 8, 512>}, {pipeline_mode = #tpu.pipeline_mode<synchronous>, transform_indices = @transform_7, window_bounds = array<i64: 256, 16>}, {pipeline_mode = #tpu.pipeline_mode<synchronous>, transform_indices = @transform_8, window_bounds = array<i64: 16, 256>}, {pipeline_mode = #tpu.pipeline_mode<synchronous>, transform_indices = @transform_9, window_bounds = array<i64: 2, 384>}]} {
    %c0 = arith.constant 0 : index
    %c0_0 = arith.constant 0 : index
    %0 = vector.load %arg5[%c0, %c0_0] : memref<14x256xf32, #tpu.memory_space<vmem>>, vector<14x256xf32>
    %c0_1 = arith.constant 0 : index
    %c0_2 = arith.constant 0 : index
    %1 = vector.load %arg6[%c0_1, %c0_2] : memref<512x8xf32, #tpu.memory_space<vmem>>, vector<512x8xf32>
    %c0_3 = arith.constant 0 : index
    %c0_4 = arith.constant 0 : index
    %2 = vector.load %arg7[%c0_3, %c0_4] : memref<8x512xf32, #tpu.memory_space<vmem>>, vector<8x512xf32>
    %c0_5 = arith.constant 0 : index
    %c0_6 = arith.constant 0 : index
    %3 = vector.load %arg8[%c0_5, %c0_6] : memref<256x16xf32, #tpu.memory_space<vmem>>, vector<256x16xf32>
    %c0_7 = arith.constant 0 : index
    %c0_8 = arith.constant 0 : index
    %4 = vector.load %arg9[%c0_7, %c0_8] : memref<16x256xf32, #tpu.memory_space<vmem>>, vector<16x256xf32>
    %c0_9 = arith.constant 0 : index
    %c0_10 = arith.constant 0 : index
    %5 = vector.load %arg1[%c0_9, %c0_10] : memref<2x256xf32, #tpu.memory_space<vmem>>, vector<2x256xf32>
    %c0_11 = arith.constant 0 : index
    %c0_12 = arith.constant 0 : index
    %6 = vector.load %arg2[%c0_11, %c0_12] : memref<512x512xbf16, #tpu.memory_space<vmem>>, vector<256x512xbf16>
    %7 = arith.truncf %5 : vector<2x256xf32> to vector<2x256xbf16>
    %cst = arith.constant dense<0.000000e+00> : vector<2x512xf32>
    %8 = tpu.matmul %7, %6, %cst {dimension_numbers = #tpu.dot_dimension_numbers<[1], [0], [0], [1], [0, 0, 1, 1], [], []>} : vector<2x256xbf16>, vector<256x512xbf16>, vector<2x512xf32> -> vector<2x512xf32>
    %9 = vector.extract_strided_slice %0 {offsets = [0, 0], sizes = [1, 8], strides = [1, 1]} : vector<14x256xf32> to vector<1x8xf32>
    %10 = vector.extract_strided_slice %0 {offsets = [1, 0], sizes = [1, 8], strides = [1, 1]} : vector<14x256xf32> to vector<1x8xf32>
    %cst_13 = arith.constant dense<0.000000e+00> : vector<2x8xf32>
    %11 = tpu.matmul %8, %1, %cst_13 {dimension_numbers = #tpu.dot_dimension_numbers<[1], [0], [0], [1], [0, 0, 1, 1], [], []>} : vector<2x512xf32>, vector<512x8xf32>, vector<2x8xf32> -> vector<2x8xf32>
    %12 = arith.mulf %8, %8 : vector<2x512xf32>
    %cst_14 = arith.constant dense<0.000000e+00> : vector<2x8xf32>
    %13 = tpu.matmul %12, %1, %cst_14 {dimension_numbers = #tpu.dot_dimension_numbers<[1], [0], [0], [1], [0, 0, 1, 1], [], []>} : vector<2x512xf32>, vector<512x8xf32>, vector<2x8xf32> -> vector<2x8xf32>
    %cst_15 = arith.constant dense<0.000000e+00> : vector<8xf32>
    %14 = vector.multi_reduction <add>, %11, %cst_15 [0] : vector<2x8xf32> to vector<8xf32>
    %15 = vector.shape_cast %14 : vector<8xf32> to vector<1x8xf32>
    %cst_16 = arith.constant 5.000000e-01 : f32
    %16 = vector.broadcast %cst_16 : f32 to vector<1x8xf32>
    %17 = arith.mulf %15, %16 : vector<1x8xf32>
    %cst_17 = arith.constant dense<0.000000e+00> : vector<8xf32>
    %18 = vector.multi_reduction <add>, %13, %cst_17 [0] : vector<2x8xf32> to vector<8xf32>
    %19 = vector.shape_cast %18 : vector<8xf32> to vector<1x8xf32>
    %cst_18 = arith.constant 5.000000e-01 : f32
    %20 = vector.broadcast %cst_18 : f32 to vector<1x8xf32>
    %21 = arith.mulf %19, %20 : vector<1x8xf32>
    %22 = arith.mulf %17, %17 : vector<1x8xf32>
    %23 = arith.subf %21, %22 : vector<1x8xf32>
    %cst_19 = arith.constant 0.000000e+00 : f32
    %24 = vector.broadcast %cst_19 : f32 to vector<1x8xf32>
    %25 = arith.maximumf %23, %24 : vector<1x8xf32>
    %cst_20 = arith.constant 9.99999974E-6 : f32
    %26 = vector.broadcast %cst_20 : f32 to vector<1x8xf32>
    %27 = arith.addf %25, %26 : vector<1x8xf32>
    %28 = math.rsqrt %27 : vector<1x8xf32>
    %29 = arith.mulf %9, %28 : vector<1x8xf32>
    %30 = arith.mulf %17, %29 : vector<1x8xf32>
    %31 = arith.subf %10, %30 : vector<1x8xf32>
    %32 = tpu.concatenate %29, %31 in 0 : vector<1x8xf32>, vector<1x8xf32> -> vector<2x8xf32>
    %cst_21 = arith.constant dense<0.000000e+00> : vector<2x512xf32>
    %33 = tpu.matmul %32, %2, %cst_21 {dimension_numbers = #tpu.dot_dimension_numbers<[1], [0], [0], [1], [0, 0, 1, 1], [], []>} : vector<2x8xf32>, vector<8x512xf32>, vector<2x512xf32> -> vector<2x512xf32>
    %34 = vector.extract_strided_slice %33 {offsets = [0, 0], sizes = [1, 512], strides = [1, 1]} : vector<2x512xf32> to vector<1x512xf32>
    %35 = vector.broadcast %34 : vector<1x512xf32> to vector<2x512xf32>
    %36 = arith.mulf %8, %35 : vector<2x512xf32>
    %37 = vector.extract_strided_slice %33 {offsets = [1, 0], sizes = [1, 512], strides = [1, 1]} : vector<2x512xf32> to vector<1x512xf32>
    %38 = vector.broadcast %37 : vector<1x512xf32> to vector<2x512xf32>
    %39 = arith.addf %36, %38 : vector<2x512xf32>
    %cst_22 = arith.constant 0.000000e+00 : f32
    %40 = vector.broadcast %cst_22 : f32 to vector<2x512xf32>
    %41 = arith.maximumf %39, %40 : vector<2x512xf32>
    %c0_23 = arith.constant 0 : index
    %c0_24 = arith.constant 0 : index
    %42 = vector.load %arg3[%c0_23, %c0_24] : memref<1152x256xbf16, #tpu.memory_space<vmem>>, vector<512x256xbf16>
    %43 = arith.truncf %41 : vector<2x512xf32> to vector<2x512xbf16>
    %cst_25 = arith.constant dense<0.000000e+00> : vector<2x256xf32>
    %44 = tpu.matmul %43, %42, %cst_25 {dimension_numbers = #tpu.dot_dimension_numbers<[1], [0], [0], [1], [0, 0, 1, 1], [], []>} : vector<2x512xbf16>, vector<512x256xbf16>, vector<2x256xf32> -> vector<2x256xf32>
    %45 = vector.extract_strided_slice %0 {offsets = [2, 0], sizes = [1, 16], strides = [1, 1]} : vector<14x256xf32> to vector<1x16xf32>
    %46 = vector.extract_strided_slice %0 {offsets = [3, 0], sizes = [1, 16], strides = [1, 1]} : vector<14x256xf32> to vector<1x16xf32>
    %cst_26 = arith.constant dense<0.000000e+00> : vector<2x16xf32>
    %47 = tpu.matmul %44, %3, %cst_26 {dimension_numbers = #tpu.dot_dimension_numbers<[1], [0], [0], [1], [0, 0, 1, 1], [], []>} : vector<2x256xf32>, vector<256x16xf32>, vector<2x16xf32> -> vector<2x16xf32>
    %48 = arith.mulf %44, %44 : vector<2x256xf32>
    %cst_27 = arith.constant dense<0.000000e+00> : vector<2x16xf32>
    %49 = tpu.matmul %48, %3, %cst_27 {dimension_numbers = #tpu.dot_dimension_numbers<[1], [0], [0], [1], [0, 0, 1, 1], [], []>} : vector<2x256xf32>, vector<256x16xf32>, vector<2x16xf32> -> vector<2x16xf32>
    %cst_28 = arith.constant dense<0.000000e+00> : vector<16xf32>
    %50 = vector.multi_reduction <add>, %47, %cst_28 [0] : vector<2x16xf32> to vector<16xf32>
    %51 = vector.shape_cast %50 : vector<16xf32> to vector<1x16xf32>
    %cst_29 = arith.constant 5.000000e-01 : f32
    %52 = vector.broadcast %cst_29 : f32 to vector<1x16xf32>
    %53 = arith.mulf %51, %52 : vector<1x16xf32>
    %cst_30 = arith.constant dense<0.000000e+00> : vector<16xf32>
    %54 = vector.multi_reduction <add>, %49, %cst_30 [0] : vector<2x16xf32> to vector<16xf32>
    %55 = vector.shape_cast %54 : vector<16xf32> to vector<1x16xf32>
    %cst_31 = arith.constant 5.000000e-01 : f32
    %56 = vector.broadcast %cst_31 : f32 to vector<1x16xf32>
    %57 = arith.mulf %55, %56 : vector<1x16xf32>
    %58 = arith.mulf %53, %53 : vector<1x16xf32>
    %59 = arith.subf %57, %58 : vector<1x16xf32>
    %cst_32 = arith.constant 0.000000e+00 : f32
    %60 = vector.broadcast %cst_32 : f32 to vector<1x16xf32>
    %61 = arith.maximumf %59, %60 : vector<1x16xf32>
    %cst_33 = arith.constant 9.99999974E-6 : f32
    %62 = vector.broadcast %cst_33 : f32 to vector<1x16xf32>
    %63 = arith.addf %61, %62 : vector<1x16xf32>
    %64 = math.rsqrt %63 : vector<1x16xf32>
    %65 = arith.mulf %45, %64 : vector<1x16xf32>
    %66 = arith.mulf %53, %65 : vector<1x16xf32>
    %67 = arith.subf %46, %66 : vector<1x16xf32>
    %68 = tpu.concatenate %65, %67 in 0 : vector<1x16xf32>, vector<1x16xf32> -> vector<2x16xf32>
    %cst_34 = arith.constant dense<0.000000e+00> : vector<2x256xf32>
    %69 = tpu.matmul %68, %4, %cst_34 {dimension_numbers = #tpu.dot_dimension_numbers<[1], [0], [0], [1], [0, 0, 1, 1], [], []>} : vector<2x16xf32>, vector<16x256xf32>, vector<2x256xf32> -> vector<2x256xf32>
    %70 = vector.extract_strided_slice %69 {offsets = [0, 0], sizes = [1, 256], strides = [1, 1]} : vector<2x256xf32> to vector<1x256xf32>
    %71 = vector.broadcast %70 : vector<1x256xf32> to vector<2x256xf32>
    %72 = arith.mulf %44, %71 : vector<2x256xf32>
    %73 = vector.extract_strided_slice %69 {offsets = [1, 0], sizes = [1, 256], strides = [1, 1]} : vector<2x256xf32> to vector<1x256xf32>
    %74 = vector.broadcast %73 : vector<1x256xf32> to vector<2x256xf32>
    %75 = arith.addf %72, %74 : vector<2x256xf32>
    %cst_35 = arith.constant 0.000000e+00 : f32
    %76 = vector.broadcast %cst_35 : f32 to vector<2x256xf32>
    %77 = arith.maximumf %75, %76 : vector<2x256xf32>
    %c0_36 = arith.constant 0 : index
    %c0_37 = arith.constant 0 : index
    %78 = vector.load %arg4[%c0_36, %c0_37] : memref<512x128xbf16, #tpu.memory_space<vmem>>, vector<256x128xbf16>
    %79 = arith.truncf %77 : vector<2x256xf32> to vector<2x256xbf16>
    %cst_38 = arith.constant dense<0.000000e+00> : vector<2x128xf32>
    %80 = tpu.matmul %79, %78, %cst_38 {dimension_numbers = #tpu.dot_dimension_numbers<[1], [0], [0], [1], [0, 0, 1, 1], [], []>} : vector<2x256xbf16>, vector<256x128xbf16>, vector<2x128xf32> -> vector<2x128xf32>
    %81 = vector.extract_strided_slice %0 {offsets = [4, 0], sizes = [1, 128], strides = [1, 1]} : vector<14x256xf32> to vector<1x128xf32>
    %82 = vector.extract_strided_slice %0 {offsets = [5, 0], sizes = [1, 128], strides = [1, 1]} : vector<14x256xf32> to vector<1x128xf32>
    %cst_39 = arith.constant dense<0.000000e+00> : vector<128xf32>
    %83 = vector.multi_reduction <add>, %80, %cst_39 [0] : vector<2x128xf32> to vector<128xf32>
    %84 = vector.shape_cast %83 : vector<128xf32> to vector<1x128xf32>
    %cst_40 = arith.constant 5.000000e-01 : f32
    %85 = vector.broadcast %cst_40 : f32 to vector<1x128xf32>
    %86 = arith.mulf %84, %85 : vector<1x128xf32>
    %87 = arith.mulf %80, %80 : vector<2x128xf32>
    %cst_41 = arith.constant dense<0.000000e+00> : vector<128xf32>
    %88 = vector.multi_reduction <add>, %87, %cst_41 [0] : vector<2x128xf32> to vector<128xf32>
    %89 = vector.shape_cast %88 : vector<128xf32> to vector<1x128xf32>
    %cst_42 = arith.constant 5.000000e-01 : f32
    %90 = vector.broadcast %cst_42 : f32 to vector<1x128xf32>
    %91 = arith.mulf %89, %90 : vector<1x128xf32>
    %92 = arith.mulf %86, %86 : vector<1x128xf32>
    %93 = arith.subf %91, %92 : vector<1x128xf32>
    %cst_43 = arith.constant 0.000000e+00 : f32
    %94 = vector.broadcast %cst_43 : f32 to vector<1x128xf32>
    %95 = arith.maximumf %93, %94 : vector<1x128xf32>
    %cst_44 = arith.constant 9.99999974E-6 : f32
    %96 = vector.broadcast %cst_44 : f32 to vector<1x128xf32>
    %97 = arith.addf %95, %96 : vector<1x128xf32>
    %98 = math.rsqrt %97 : vector<1x128xf32>
    %99 = arith.mulf %81, %98 : vector<1x128xf32>
    %100 = vector.broadcast %99 : vector<1x128xf32> to vector<2x128xf32>
    %101 = arith.mulf %80, %100 : vector<2x128xf32>
    %102 = arith.mulf %86, %99 : vector<1x128xf32>
    %103 = arith.subf %82, %102 : vector<1x128xf32>
    %104 = vector.broadcast %103 : vector<1x128xf32> to vector<2x128xf32>
    %105 = arith.addf %101, %104 : vector<2x128xf32>
    %cst_45 = arith.constant 0.000000e+00 : f32
    %106 = vector.broadcast %cst_45 : f32 to vector<2x128xf32>
    %107 = arith.maximumf %105, %106 : vector<2x128xf32>
    %c256 = arith.constant 256 : index
    %c0_46 = arith.constant 0 : index
    %108 = vector.load %arg4[%c256, %c0_46] : memref<512x128xbf16, #tpu.memory_space<vmem>>, vector<128x128xbf16>
    %109 = arith.truncf %107 : vector<2x128xf32> to vector<2x128xbf16>
    %cst_47 = arith.constant dense<0.000000e+00> : vector<2x128xf32>
    %110 = tpu.matmul %109, %108, %cst_47 {dimension_numbers = #tpu.dot_dimension_numbers<[1], [0], [0], [1], [0, 0, 1, 1], [], []>} : vector<2x128xbf16>, vector<128x128xbf16>, vector<2x128xf32> -> vector<2x128xf32>
    %111 = vector.extract_strided_slice %0 {offsets = [12, 0], sizes = [1, 128], strides = [1, 1]} : vector<14x256xf32> to vector<1x128xf32>
    %112 = vector.broadcast %111 : vector<1x128xf32> to vector<2x128xf32>
    %113 = arith.addf %110, %112 : vector<2x128xf32>
    %c384 = arith.constant 384 : index
    %c0_48 = arith.constant 0 : index
    %114 = vector.load %arg4[%c384, %c0_48] : memref<512x128xbf16, #tpu.memory_space<vmem>>, vector<128x128xbf16>
    %115 = arith.truncf %113 : vector<2x128xf32> to vector<2x128xbf16>
    %cst_49 = arith.constant dense<0.000000e+00> : vector<2x128xf32>
    %116 = tpu.matmul %115, %114, %cst_49 {dimension_numbers = #tpu.dot_dimension_numbers<[1], [0], [0], [1], [0, 0, 1, 1], [], []>} : vector<2x128xbf16>, vector<128x128xbf16>, vector<2x128xf32> -> vector<2x128xf32>
    %117 = vector.extract_strided_slice %0 {offsets = [6, 0], sizes = [1, 128], strides = [1, 1]} : vector<14x256xf32> to vector<1x128xf32>
    %118 = vector.extract_strided_slice %0 {offsets = [7, 0], sizes = [1, 128], strides = [1, 1]} : vector<14x256xf32> to vector<1x128xf32>
    %cst_50 = arith.constant dense<0.000000e+00> : vector<128xf32>
    %119 = vector.multi_reduction <add>, %116, %cst_50 [0] : vector<2x128xf32> to vector<128xf32>
    %120 = vector.shape_cast %119 : vector<128xf32> to vector<1x128xf32>
    %cst_51 = arith.constant 5.000000e-01 : f32
    %121 = vector.broadcast %cst_51 : f32 to vector<1x128xf32>
    %122 = arith.mulf %120, %121 : vector<1x128xf32>
    %123 = arith.mulf %116, %116 : vector<2x128xf32>
    %cst_52 = arith.constant dense<0.000000e+00> : vector<128xf32>
    %124 = vector.multi_reduction <add>, %123, %cst_52 [0] : vector<2x128xf32> to vector<128xf32>
    %125 = vector.shape_cast %124 : vector<128xf32> to vector<1x128xf32>
    %cst_53 = arith.constant 5.000000e-01 : f32
    %126 = vector.broadcast %cst_53 : f32 to vector<1x128xf32>
    %127 = arith.mulf %125, %126 : vector<1x128xf32>
    %128 = arith.mulf %122, %122 : vector<1x128xf32>
    %129 = arith.subf %127, %128 : vector<1x128xf32>
    %cst_54 = arith.constant 0.000000e+00 : f32
    %130 = vector.broadcast %cst_54 : f32 to vector<1x128xf32>
    %131 = arith.maximumf %129, %130 : vector<1x128xf32>
    %cst_55 = arith.constant 9.99999974E-6 : f32
    %132 = vector.broadcast %cst_55 : f32 to vector<1x128xf32>
    %133 = arith.addf %131, %132 : vector<1x128xf32>
    %134 = math.rsqrt %133 : vector<1x128xf32>
    %135 = arith.mulf %117, %134 : vector<1x128xf32>
    %136 = vector.broadcast %135 : vector<1x128xf32> to vector<2x128xf32>
    %137 = arith.mulf %116, %136 : vector<2x128xf32>
    %138 = arith.mulf %122, %135 : vector<1x128xf32>
    %139 = arith.subf %118, %138 : vector<1x128xf32>
    %140 = vector.broadcast %139 : vector<1x128xf32> to vector<2x128xf32>
    %141 = arith.addf %137, %140 : vector<2x128xf32>
    %cst_56 = arith.constant 0.000000e+00 : f32
    %142 = vector.broadcast %cst_56 : f32 to vector<2x128xf32>
    %143 = arith.cmpf oge, %141, %142 : vector<2x128xf32>
    %cst_57 = arith.constant 0.00999999977 : f32
    %144 = vector.broadcast %cst_57 : f32 to vector<2x128xf32>
    %145 = arith.mulf %144, %141 : vector<2x128xf32>
    %146 = arith.select %143, %141, %145 : vector<2x128xi1>, vector<2x128xf32>
    %c1024 = arith.constant 1024 : index
    %c0_58 = arith.constant 0 : index
    %147 = vector.load %arg3[%c1024, %c0_58] : memref<1152x256xbf16, #tpu.memory_space<vmem>>, vector<128x256xbf16>
    %148 = arith.truncf %146 : vector<2x128xf32> to vector<2x128xbf16>
    %cst_59 = arith.constant dense<0.000000e+00> : vector<2x256xf32>
    %149 = tpu.matmul %148, %147, %cst_59 {dimension_numbers = #tpu.dot_dimension_numbers<[1], [0], [0], [1], [0, 0, 1, 1], [], []>} : vector<2x128xbf16>, vector<128x256xbf16>, vector<2x256xf32> -> vector<2x256xf32>
    %150 = vector.extract_strided_slice %0 {offsets = [8, 0], sizes = [1, 16], strides = [1, 1]} : vector<14x256xf32> to vector<1x16xf32>
    %151 = vector.extract_strided_slice %0 {offsets = [9, 0], sizes = [1, 16], strides = [1, 1]} : vector<14x256xf32> to vector<1x16xf32>
    %cst_60 = arith.constant dense<0.000000e+00> : vector<2x16xf32>
    %152 = tpu.matmul %149, %3, %cst_60 {dimension_numbers = #tpu.dot_dimension_numbers<[1], [0], [0], [1], [0, 0, 1, 1], [], []>} : vector<2x256xf32>, vector<256x16xf32>, vector<2x16xf32> -> vector<2x16xf32>
    %153 = arith.mulf %149, %149 : vector<2x256xf32>
    %cst_61 = arith.constant dense<0.000000e+00> : vector<2x16xf32>
    %154 = tpu.matmul %153, %3, %cst_61 {dimension_numbers = #tpu.dot_dimension_numbers<[1], [0], [0], [1], [0, 0, 1, 1], [], []>} : vector<2x256xf32>, vector<256x16xf32>, vector<2x16xf32> -> vector<2x16xf32>
    %cst_62 = arith.constant dense<0.000000e+00> : vector<16xf32>
    %155 = vector.multi_reduction <add>, %152, %cst_62 [0] : vector<2x16xf32> to vector<16xf32>
    %156 = vector.shape_cast %155 : vector<16xf32> to vector<1x16xf32>
    %cst_63 = arith.constant 5.000000e-01 : f32
    %157 = vector.broadcast %cst_63 : f32 to vector<1x16xf32>
    %158 = arith.mulf %156, %157 : vector<1x16xf32>
    %cst_64 = arith.constant dense<0.000000e+00> : vector<16xf32>
    %159 = vector.multi_reduction <add>, %154, %cst_64 [0] : vector<2x16xf32> to vector<16xf32>
    %160 = vector.shape_cast %159 : vector<16xf32> to vector<1x16xf32>
    %cst_65 = arith.constant 5.000000e-01 : f32
    %161 = vector.broadcast %cst_65 : f32 to vector<1x16xf32>
    %162 = arith.mulf %160, %161 : vector<1x16xf32>
    %163 = arith.mulf %158, %158 : vector<1x16xf32>
    %164 = arith.subf %162, %163 : vector<1x16xf32>
    %cst_66 = arith.constant 0.000000e+00 : f32
    %165 = vector.broadcast %cst_66 : f32 to vector<1x16xf32>
    %166 = arith.maximumf %164, %165 : vector<1x16xf32>
    %cst_67 = arith.constant 9.99999974E-6 : f32
    %167 = vector.broadcast %cst_67 : f32 to vector<1x16xf32>
    %168 = arith.addf %166, %167 : vector<1x16xf32>
    %169 = math.rsqrt %168 : vector<1x16xf32>
    %170 = arith.mulf %150, %169 : vector<1x16xf32>
    %171 = arith.mulf %158, %170 : vector<1x16xf32>
    %172 = arith.subf %151, %171 : vector<1x16xf32>
    %173 = tpu.concatenate %170, %172 in 0 : vector<1x16xf32>, vector<1x16xf32> -> vector<2x16xf32>
    %cst_68 = arith.constant dense<0.000000e+00> : vector<2x256xf32>
    %174 = tpu.matmul %173, %4, %cst_68 {dimension_numbers = #tpu.dot_dimension_numbers<[1], [0], [0], [1], [0, 0, 1, 1], [], []>} : vector<2x16xf32>, vector<16x256xf32>, vector<2x256xf32> -> vector<2x256xf32>
    %175 = vector.extract_strided_slice %174 {offsets = [0, 0], sizes = [1, 256], strides = [1, 1]} : vector<2x256xf32> to vector<1x256xf32>
    %176 = vector.broadcast %175 : vector<1x256xf32> to vector<2x256xf32>
    %177 = arith.mulf %149, %176 : vector<2x256xf32>
    %178 = vector.extract_strided_slice %174 {offsets = [1, 0], sizes = [1, 256], strides = [1, 1]} : vector<2x256xf32> to vector<1x256xf32>
    %179 = vector.broadcast %178 : vector<1x256xf32> to vector<2x256xf32>
    %180 = arith.addf %177, %179 : vector<2x256xf32>
    %cst_69 = arith.constant 0.000000e+00 : f32
    %181 = vector.broadcast %cst_69 : f32 to vector<2x256xf32>
    %182 = arith.cmpf oge, %180, %181 : vector<2x256xf32>
    %cst_70 = arith.constant 0.00999999977 : f32
    %183 = vector.broadcast %cst_70 : f32 to vector<2x256xf32>
    %184 = arith.mulf %183, %180 : vector<2x256xf32>
    %185 = arith.select %182, %180, %184 : vector<2x256xi1>, vector<2x256xf32>
    %c256_71 = arith.constant 256 : index
    %c0_72 = arith.constant 0 : index
    %186 = vector.load %arg2[%c256_71, %c0_72] : memref<512x512xbf16, #tpu.memory_space<vmem>>, vector<256x512xbf16>
    %187 = arith.truncf %185 : vector<2x256xf32> to vector<2x256xbf16>
    %cst_73 = arith.constant dense<0.000000e+00> : vector<2x512xf32>
    %188 = tpu.matmul %187, %186, %cst_73 {dimension_numbers = #tpu.dot_dimension_numbers<[1], [0], [0], [1], [0, 0, 1, 1], [], []>} : vector<2x256xbf16>, vector<256x512xbf16>, vector<2x512xf32> -> vector<2x512xf32>
    %189 = vector.extract_strided_slice %0 {offsets = [10, 0], sizes = [1, 8], strides = [1, 1]} : vector<14x256xf32> to vector<1x8xf32>
    %190 = vector.extract_strided_slice %0 {offsets = [11, 0], sizes = [1, 8], strides = [1, 1]} : vector<14x256xf32> to vector<1x8xf32>
    %cst_74 = arith.constant dense<0.000000e+00> : vector<2x8xf32>
    %191 = tpu.matmul %188, %1, %cst_74 {dimension_numbers = #tpu.dot_dimension_numbers<[1], [0], [0], [1], [0, 0, 1, 1], [], []>} : vector<2x512xf32>, vector<512x8xf32>, vector<2x8xf32> -> vector<2x8xf32>
    %192 = arith.mulf %188, %188 : vector<2x512xf32>
    %cst_75 = arith.constant dense<0.000000e+00> : vector<2x8xf32>
    %193 = tpu.matmul %192, %1, %cst_75 {dimension_numbers = #tpu.dot_dimension_numbers<[1], [0], [0], [1], [0, 0, 1, 1], [], []>} : vector<2x512xf32>, vector<512x8xf32>, vector<2x8xf32> -> vector<2x8xf32>
    %cst_76 = arith.constant dense<0.000000e+00> : vector<8xf32>
    %194 = vector.multi_reduction <add>, %191, %cst_76 [0] : vector<2x8xf32> to vector<8xf32>
    %195 = vector.shape_cast %194 : vector<8xf32> to vector<1x8xf32>
    %cst_77 = arith.constant 5.000000e-01 : f32
    %196 = vector.broadcast %cst_77 : f32 to vector<1x8xf32>
    %197 = arith.mulf %195, %196 : vector<1x8xf32>
    %cst_78 = arith.constant dense<0.000000e+00> : vector<8xf32>
    %198 = vector.multi_reduction <add>, %193, %cst_78 [0] : vector<2x8xf32> to vector<8xf32>
    %199 = vector.shape_cast %198 : vector<8xf32> to vector<1x8xf32>
    %cst_79 = arith.constant 5.000000e-01 : f32
    %200 = vector.broadcast %cst_79 : f32 to vector<1x8xf32>
    %201 = arith.mulf %199, %200 : vector<1x8xf32>
    %202 = arith.mulf %197, %197 : vector<1x8xf32>
    %203 = arith.subf %201, %202 : vector<1x8xf32>
    %cst_80 = arith.constant 0.000000e+00 : f32
    %204 = vector.broadcast %cst_80 : f32 to vector<1x8xf32>
    %205 = arith.maximumf %203, %204 : vector<1x8xf32>
    %cst_81 = arith.constant 9.99999974E-6 : f32
    %206 = vector.broadcast %cst_81 : f32 to vector<1x8xf32>
    %207 = arith.addf %205, %206 : vector<1x8xf32>
    %208 = math.rsqrt %207 : vector<1x8xf32>
    %209 = arith.mulf %189, %208 : vector<1x8xf32>
    %210 = arith.mulf %197, %209 : vector<1x8xf32>
    %211 = arith.subf %190, %210 : vector<1x8xf32>
    %212 = tpu.concatenate %209, %211 in 0 : vector<1x8xf32>, vector<1x8xf32> -> vector<2x8xf32>
    %cst_82 = arith.constant dense<0.000000e+00> : vector<2x512xf32>
    %213 = tpu.matmul %212, %2, %cst_82 {dimension_numbers = #tpu.dot_dimension_numbers<[1], [0], [0], [1], [0, 0, 1, 1], [], []>} : vector<2x8xf32>, vector<8x512xf32>, vector<2x512xf32> -> vector<2x512xf32>
    %214 = vector.extract_strided_slice %213 {offsets = [0, 0], sizes = [1, 512], strides = [1, 1]} : vector<2x512xf32> to vector<1x512xf32>
    %215 = vector.broadcast %214 : vector<1x512xf32> to vector<2x512xf32>
    %216 = arith.mulf %188, %215 : vector<2x512xf32>
    %217 = vector.extract_strided_slice %213 {offsets = [1, 0], sizes = [1, 512], strides = [1, 1]} : vector<2x512xf32> to vector<1x512xf32>
    %218 = vector.broadcast %217 : vector<1x512xf32> to vector<2x512xf32>
    %219 = arith.addf %216, %218 : vector<2x512xf32>
    %cst_83 = arith.constant 0.000000e+00 : f32
    %220 = vector.broadcast %cst_83 : f32 to vector<2x512xf32>
    %221 = arith.cmpf oge, %219, %220 : vector<2x512xf32>
    %cst_84 = arith.constant 0.00999999977 : f32
    %222 = vector.broadcast %cst_84 : f32 to vector<2x512xf32>
    %223 = arith.mulf %222, %219 : vector<2x512xf32>
    %224 = arith.select %221, %219, %223 : vector<2x512xi1>, vector<2x512xf32>
    %c512 = arith.constant 512 : index
    %c0_85 = arith.constant 0 : index
    %225 = vector.load %arg3[%c512, %c0_85] : memref<1152x256xbf16, #tpu.memory_space<vmem>>, vector<512x256xbf16>
    %226 = arith.truncf %224 : vector<2x512xf32> to vector<2x512xbf16>
    %cst_86 = arith.constant dense<0.000000e+00> : vector<2x256xf32>
    %227 = tpu.matmul %226, %225, %cst_86 {dimension_numbers = #tpu.dot_dimension_numbers<[1], [0], [0], [1], [0, 0, 1, 1], [], []>} : vector<2x512xbf16>, vector<512x256xbf16>, vector<2x256xf32> -> vector<2x256xf32>
    %228 = vector.extract_strided_slice %0 {offsets = [13, 0], sizes = [1, 256], strides = [1, 1]} : vector<14x256xf32> to vector<1x256xf32>
    %229 = vector.broadcast %228 : vector<1x256xf32> to vector<2x256xf32>
    %230 = arith.addf %227, %229 : vector<2x256xf32>
    %231 = math.absf %230 : vector<2x256xf32>
    %cst_87 = arith.constant 0.000000e+00 : f32
    %232 = vector.broadcast %cst_87 : f32 to vector<2x256xf32>
    %233 = arith.subf %232, %231 : vector<2x256xf32>
    %234 = math.exp %233 : vector<2x256xf32>
    %cst_88 = arith.constant 0.000000e+00 : f32
    %235 = vector.broadcast %cst_88 : f32 to vector<2x256xf32>
    %236 = arith.cmpf oge, %230, %235 : vector<2x256xf32>
    %cst_89 = arith.constant 1.000000e+00 : f32
    %237 = vector.broadcast %cst_89 : f32 to vector<2x256xf32>
    %238 = arith.select %236, %237, %234 : vector<2x256xi1>, vector<2x256xf32>
    %cst_90 = arith.constant 1.000000e+00 : f32
    %239 = vector.broadcast %cst_90 : f32 to vector<2x256xf32>
    %240 = arith.addf %239, %234 : vector<2x256xf32>
    %241 = arith.divf %238, %240 : vector<2x256xf32>
    %242 = tpu.concatenate %113, %241 in 1 : vector<2x128xf32>, vector<2x256xf32> -> vector<2x384xf32>
    %c0_91 = arith.constant 0 : index
    %c0_92 = arith.constant 0 : index
    %243 = vector.load %arg10[%c0_91, %c0_92] : memref<2x384xf32, #tpu.memory_space<vmem>>, vector<2x384xf32>
    tpu.vector_store %arg10[%c0_91, %c0_92], %242 {strides = array<i32>} : memref<2x384xf32, #tpu.memory_space<vmem>>, vector<2x384xf32>,
    return
  }
  func.func @transform_0(%arg0: i32) -> (i32, i32) {
    %c0_i32 = arith.constant 0 : i32
    %c0_i32_0 = arith.constant 0 : i32
    %c0_i32_1 = arith.constant 0 : i32
    return %c0_i32, %c0_i32_0 : i32, i32
  }
  func.func @transform_1(%arg0: i32) -> (i32, i32) {
    %c0_i32 = arith.constant 0 : i32
    %c0_i32_0 = arith.constant 0 : i32
    %c0_i32_1 = arith.constant 0 : i32
    return %c0_i32, %c0_i32_0 : i32, i32
  }
  func.func @transform_2(%arg0: i32) -> (i32, i32) {
    %c0_i32 = arith.constant 0 : i32
    %c0_i32_0 = arith.constant 0 : i32
    %c0_i32_1 = arith.constant 0 : i32
    return %c0_i32, %c0_i32_0 : i32, i32
  }
  func.func @transform_3(%arg0: i32) -> (i32, i32) {
    %c0_i32 = arith.constant 0 : i32
    %c0_i32_0 = arith.constant 0 : i32
    %c0_i32_1 = arith.constant 0 : i32
    return %c0_i32, %c0_i32_0 : i32, i32
  }
  func.func @transform_4(%arg0: i32) -> (i32, i32) {
    %c0_i32 = arith.constant 0 : i32
    %c0_i32_0 = arith.constant 0 : i32
    %c0_i32_1 = arith.constant 0 : i32
    return %c0_i32, %c0_i32_0 : i32, i32
  }
  func.func @transform_5(%arg0: i32) -> (i32, i32) {
    %c0_i32 = arith.constant 0 : i32
    %c0_i32_0 = arith.constant 0 : i32
    %c0_i32_1 = arith.constant 0 : i32
    return %c0_i32, %c0_i32_0 : i32, i32
  }
  func.func @transform_6(%arg0: i32) -> (i32, i32) {
    %c0_i32 = arith.constant 0 : i32
    %c0_i32_0 = arith.constant 0 : i32
    %c0_i32_1 = arith.constant 0 : i32
    return %c0_i32, %c0_i32_0 : i32, i32
  }
  func.func @transform_7(%arg0: i32) -> (i32, i32) {
    %c0_i32 = arith.constant 0 : i32
    %c0_i32_0 = arith.constant 0 : i32
    %c0_i32_1 = arith.constant 0 : i32
    return %c0_i32, %c0_i32_0 : i32, i32
  }
  func.func @transform_8(%arg0: i32) -> (i32, i32) {
    %c0_i32 = arith.constant 0 : i32
    %c0_i32_0 = arith.constant 0 : i32
    %c0_i32_1 = arith.constant 0 : i32
    return %c0_i32, %c0_i32_0 : i32, i32
  }
  func.func @transform_9(%arg0: i32) -> (i32, i32) {
    %c0_i32 = arith.constant 0 : i32
    %c0_i32_0 = arith.constant 0 : i32
    %c0_i32_1 = arith.constant 0 : i32
    return %c0_i32, %c0_i32_0 : i32, i32
  }
}

</mosaic_0001>

<llo_original>
// kernel: forward.1
$region0: #{forward.1}
  #allocation0 [shape = 'u32[]', space=smem, size = 0x4, offset = 0x4, fixed_abs, tag = 'smem constant byte address 0x4 - core index']
  #allocation1 [shape = 'u32[144,128]{1,0:T(1,128)}', space=vmem, size = 0x12000, scoped, tag = 'internal scratch']
  %s0 = inlined_call_operand.vmem [shape: f32[2,256], index: 0, kind: input, shape index: {}]
  %s1 = inlined_call_operand.hbm [shape: bf16[512,512], index: 1, kind: input, shape index: {}]
  %s2 = inlined_call_operand.hbm [shape: bf16[1152,256], index: 2, kind: input, shape index: {}]
  %s3 = inlined_call_operand.vmem [shape: bf16[512,128], index: 3, kind: input, shape index: {}]
  %s4 = inlined_call_operand.vmem [shape: f32[14,256], index: 4, kind: input, shape index: {}]
  %s5 = inlined_call_operand.vmem [shape: f32[512,8], index: 5, kind: input, shape index: {}]
  %s6 = inlined_call_operand.vmem [shape: f32[8,512], index: 6, kind: input, shape index: {}]
  %s7 = inlined_call_operand.vmem [shape: f32[256,16], index: 7, kind: input, shape index: {}]
  %s8 = inlined_call_operand.vmem [shape: f32[16,256], index: 8, kind: input, shape index: {}]
  %s9 = inlined_call_operand.vmem [shape: f32[2,384], index: 9, kind: output, shape index: {}]
  %s10 = sld [smem:[#allocation0]]
  $region54: #{forward.1} parent=0
    _
  %s12 = ssub.s32 1, %s10
  %s13 = scalar_select 0, %s12, %s10
  $region1: #{forward.1} parent=0
    #allocation2 [shape = 'u8[524288]{0}', space=vmem, size = 0x80000, scoped, tag = 'input window, operand 1, single buffered']
    #allocation3 [shape = 's32[1]{0}', space=sflag, size = 0x4, scoped, tag = 'scoped memory for forward.1']
    #allocation4 [shape = 'u8[589824]{0}', space=vmem, size = 0x90000, scoped, tag = 'input window, operand 2, single buffered']
    #allocation5 [shape = 's32[1]{0}', space=sflag, size = 0x4, scoped, tag = 'scoped memory for forward.1']
    %14 = vsyncpa [#allocation3], 0
    %15 = vsyncpa [#allocation5], 0
    // Predicated region
    $region2: #{forward.1} parent=1 // pred_check
      _
    $region3: #{forward.1} parent=1 // pred_check_branch
      %17 = sbr.rel (0) target = $region5
    $region4: #{forward.1} parent=1 // pred_region
      _
    $region5: #{forward.1} parent=1 // pred_fallthru
      _
    // Predicated region
    $region6: #{forward.1} parent=1 // pred_check
      _
    $region7: #{forward.1} parent=1 // pred_check_branch
      %19 = sbr.rel (0) target = $region9
    $region8: #{forward.1} parent=1 // pred_region
      %s21 = ssub.s32 16384, 16384
      %22 = vsyncadd [#allocation3], %s21
      %s23 = sshll.u32 [#allocation2], 4
      %s24 = int_to_ptr.vmem [resolvable:$true] %s23
      %29 = dma.hbm_to_vmem [thread:$0]  %s1, 16384, %s24, [#allocation3], 256, 256, 16
    $region9: #{forward.1} parent=1 // pred_fallthru
      _
    // Predicated region
    $region10: #{forward.1} parent=1 // pred_check
      _
    $region11: #{forward.1} parent=1 // pred_check_branch
      %31 = sbr.rel (0) target = $region13
    $region12: #{forward.1} parent=1 // pred_region
      %s33 = ssub.s32 18432, 18432
      %34 = vsyncadd [#allocation5], %s33
      %s35 = sshll.u32 [#allocation4], 4
      %s36 = int_to_ptr.vmem [resolvable:$true] %s35
      %41 = dma.hbm_to_vmem [thread:$0]  %s2, 18432, %s36, [#allocation5], 128, 128, 8
    $region13: #{forward.1} parent=1 // pred_fallthru
      _
    // Predicated region
    $region14: #{forward.1} parent=1 // pred_check
      _
    $region15: #{forward.1} parent=1 // pred_check_branch
      %43 = sbr.rel (0) target = $region17
    $region16: #{forward.1} parent=1 // pred_region
      _
    $region17: #{forward.1} parent=1 // pred_fallthru
      _
    // Predicated region
    $region18: #{forward.1} parent=1 // pred_check
      _
    $region19: #{forward.1} parent=1 // pred_check_branch
      %45 = sbr.rel (0) target = $region21
    $region20: #{forward.1} parent=1 // pred_region
      _
    $region21: #{forward.1} parent=1 // pred_fallthru
      _
    // Predicated region
    $region22: #{forward.1} parent=1 // pred_check
      _
    $region23: #{forward.1} parent=1 // pred_check_branch
      %47 = sbr.rel (0) target = $region25
    $region24: #{forward.1} parent=1 // pred_region
      _
    $region25: #{forward.1} parent=1 // pred_fallthru
      _
    // Predicated region
    $region26: #{forward.1} parent=1 // pred_check
      _
    $region27: #{forward.1} parent=1 // pred_check_branch
      %49 = sbr.rel (0) target = $region29
    $region28: #{forward.1} parent=1 // pred_region
      _
    $region29: #{forward.1} parent=1 // pred_fallthru
      _
    // Predicated region
    $region30: #{forward.1} parent=1 // pred_check
      _
    $region31: #{forward.1} parent=1 // pred_check_branch
      %51 = sbr.rel (0) target = $region33
    $region32: #{forward.1} parent=1 // pred_region
      _
    $region33: #{forward.1} parent=1 // pred_fallthru
      _
    // Predicated region
    $region34: #{forward.1} parent=1 // pred_check
      _
    $region35: #{forward.1} parent=1 // pred_check_branch
      %53 = sbr.rel (0) target = $region37
    $region36: #{forward.1} parent=1 // pred_region
      _
    $region37: #{forward.1} parent=1 // pred_fallthru
      _
    // Predicated region
    $region38: #{forward.1} parent=1 // pred_check
      _
    $region39: #{forward.1} parent=1 // pred_check_branch
      %55 = sbr.rel (0) target = $region41
    $region40: #{forward.1} parent=1 // pred_region
      %56 = dma.done [#allocation3], 16384
    $region41: #{forward.1} parent=1 // pred_fallthru
      _
    // Predicated region
    $region42: #{forward.1} parent=1 // pred_check
      _
    $region43: #{forward.1} parent=1 // pred_check_branch
      %58 = sbr.rel (0) target = $region45
    $region44: #{forward.1} parent=1 // pred_region
      %59 = dma.done [#allocation5], 18432
    $region45: #{forward.1} parent=1 // pred_fallthru
      _
    %v61 = vld [vmem:[%s4] sm:$0xff]
    %v62 = vld [vmem:[%s4 + $0x10] sm:$0x3f]
    %v63 = vld [vmem:[%s4 + $0x18] sm:$0x3f]
    %v64 = vld [vmem:[%s5] sm:$0xff]
    %v65 = vld [vmem:[%s5 + $0x8] sm:$0xff]
    %v66 = vld [vmem:[%s5 + $0x10] sm:$0xff]
    %v67 = vld [vmem:[%s5 + $0x18] sm:$0xff]
    %v68 = vld [vmem:[%s5 + $0x20] sm:$0xff]
    %v69 = vld [vmem:[%s5 + $0x28] sm:$0xff]
    %v70 = vld [vmem:[%s5 + $0x30] sm:$0xff]
    %v71 = vld [vmem:[%s5 + $0x38] sm:$0xff]
    %v72 = vld [vmem:[%s5 + $0x40] sm:$0xff]
    %v73 = vld [vmem:[%s5 + $0x48] sm:$0xff]
    %v74 = vld [vmem:[%s5 + $0x50] sm:$0xff]
    %v75 = vld [vmem:[%s5 + $0x58] sm:$0xff]
    %v76 = vld [vmem:[%s5 + $0x60] sm:$0xff]
    %v77 = vld [vmem:[%s5 + $0x68] sm:$0xff]
    %v78 = vld [vmem:[%s5 + $0x70] sm:$0xff]
    %v79 = vld [vmem:[%s5 + $0x78] sm:$0xff]
    %v80 = vld [vmem:[%s5 + $0x80] sm:$0xff]
    %v81 = vld [vmem:[%s5 + $0x88] sm:$0xff]
    %v82 = vld [vmem:[%s5 + $0x90] sm:$0xff]
    %v83 = vld [vmem:[%s5 + $0x98] sm:$0xff]
    %v84 = vld [vmem:[%s5 + $0xa0] sm:$0xff]
    %v85 = vld [vmem:[%s5 + $0xa8] sm:$0xff]
    %v86 = vld [vmem:[%s5 + $0xb0] sm:$0xff]
    %v87 = vld [vmem:[%s5 + $0xb8] sm:$0xff]
    %v88 = vld [vmem:[%s5 + $0xc0] sm:$0xff]
    %v89 = vld [vmem:[%s5 + $0xc8] sm:$0xff]
    %v90 = vld [vmem:[%s5 + $0xd0] sm:$0xff]
    %v91 = vld [vmem:[%s5 + $0xd8] sm:$0xff]
    %v92 = vld [vmem:[%s5 + $0xe0] sm:$0xff]
    %v93 = vld [vmem:[%s5 + $0xe8] sm:$0xff]
    %v94 = vld [vmem:[%s5 + $0xf0] sm:$0xff]
    %v95 = vld [vmem:[%s5 + $0xf8] sm:$0xff]
    %v96 = vld [vmem:[%s5 + $0x100] sm:$0xff]
    %v97 = vld [vmem:[%s5 + $0x108] sm:$0xff]
    %v98 = vld [vmem:[%s5 + $0x110] sm:$0xff]
    %v99 = vld [vmem:[%s5 + $0x118] sm:$0xff]
    %v100 = vld [vmem:[%s5 + $0x120] sm:$0xff]
    %v101 = vld [vmem:[%s5 + $0x128] sm:$0xff]
    %v102 = vld [vmem:[%s5 + $0x130] sm:$0xff]
    %v103 = vld [vmem:[%s5 + $0x138] sm:$0xff]
    %v104 = vld [vmem:[%s5 + $0x140] sm:$0xff]
    %v105 = vld [vmem:[%s5 + $0x148] sm:$0xff]
    %v106 = vld [vmem:[%s5 + $0x150] sm:$0xff]
    %v107 = vld [vmem:[%s5 + $0x158] sm:$0xff]
    %v108 = vld [vmem:[%s5 + $0x160] sm:$0xff]
    %v109 = vld [vmem:[%s5 + $0x168] sm:$0xff]
    %v110 = vld [vmem:[%s5 + $0x170] sm:$0xff]
    %v111 = vld [vmem:[%s5 + $0x178] sm:$0xff]
    %v112 = vld [vmem:[%s5 + $0x180] sm:$0xff]
    %v113 = vld [vmem:[%s5 + $0x188] sm:$0xff]
    %v114 = vld [vmem:[%s5 + $0x190] sm:$0xff]
    %v115 = vld [vmem:[%s5 + $0x198] sm:$0xff]
    %v116 = vld [vmem:[%s5 + $0x1a0] sm:$0xff]
    %v117 = vld [vmem:[%s5 + $0x1a8] sm:$0xff]
    %v118 = vld [vmem:[%s5 + $0x1b0] sm:$0xff]
    %v119 = vld [vmem:[%s5 + $0x1b8] sm:$0xff]
    %v120 = vld [vmem:[%s5 + $0x1c0] sm:$0xff]
    %v121 = vld [vmem:[%s5 + $0x1c8] sm:$0xff]
    %v122 = vld [vmem:[%s5 + $0x1d0] sm:$0xff]
    %v123 = vld [vmem:[%s5 + $0x1d8] sm:$0xff]
    %v124 = vld [vmem:[%s5 + $0x1e0] sm:$0xff]
    %v125 = vld [vmem:[%s5 + $0x1e8] sm:$0xff]
    %v126 = vld [vmem:[%s5 + $0x1f0] sm:$0xff]
    %v127 = vld [vmem:[%s5 + $0x1f8] sm:$0xff]
    %v128 = vld [vmem:[%s6] sm:$0xff]
    %v129 = vld [vmem:[%s6 + $0x8] sm:$0xff]
    %v130 = vld [vmem:[%s6 + $0x10] sm:$0xff]
    %v131 = vld [vmem:[%s6 + $0x18] sm:$0xff]
    %v132 = vld [vmem:[%s7] sm:$0xff]
    %v133 = vld [vmem:[%s7 + $0x8] sm:$0xff]
    %v134 = vld [vmem:[%s7 + $0x10] sm:$0xff]
    %v135 = vld [vmem:[%s7 + $0x18] sm:$0xff]
    %v136 = vld [vmem:[%s7 + $0x20] sm:$0xff]
    %v137 = vld [vmem:[%s7 + $0x28] sm:$0xff]
    %v138 = vld [vmem:[%s7 + $0x30] sm:$0xff]
    %v139 = vld [vmem:[%s7 + $0x38] sm:$0xff]
    %v140 = vld [vmem:[%s7 + $0x40] sm:$0xff]
    %v141 = vld [vmem:[%s7 + $0x48] sm:$0xff]
    %v142 = vld [vmem:[%s7 + $0x50] sm:$0xff]
    %v143 = vld [vmem:[%s7 + $0x58] sm:$0xff]
    %v144 = vld [vmem:[%s7 + $0x60] sm:$0xff]
    %v145 = vld [vmem:[%s7 + $0x68] sm:$0xff]
    %v146 = vld [vmem:[%s7 + $0x70] sm:$0xff]
    %v147 = vld [vmem:[%s7 + $0x78] sm:$0xff]
    %v148 = vld [vmem:[%s7 + $0x80] sm:$0xff]
    %v149 = vld [vmem:[%s7 + $0x88] sm:$0xff]
    %v150 = vld [vmem:[%s7 + $0x90] sm:$0xff]
    %v151 = vld [vmem:[%s7 + $0x98] sm:$0xff]
    %v152 = vld [vmem:[%s7 + $0xa0] sm:$0xff]
    %v153 = vld [vmem:[%s7 + $0xa8] sm:$0xff]
    %v154 = vld [vmem:[%s7 + $0xb0] sm:$0xff]
    %v155 = vld [vmem:[%s7 + $0xb8] sm:$0xff]
    %v156 = vld [vmem:[%s7 + $0xc0] sm:$0xff]
    %v157 = vld [vmem:[%s7 + $0xc8] sm:$0xff]
    %v158 = vld [vmem:[%s7 + $0xd0] sm:$0xff]
    %v159 = vld [vmem:[%s7 + $0xd8] sm:$0xff]
    %v160 = vld [vmem:[%s7 + $0xe0] sm:$0xff]
    %v161 = vld [vmem:[%s7 + $0xe8] sm:$0xff]
    %v162 = vld [vmem:[%s7 + $0xf0] sm:$0xff]
    %v163 = vld [vmem:[%s7 + $0xf8] sm:$0xff]
    %v164 = vld [vmem:[%s8] sm:$0xff]
    %v165 = vld [vmem:[%s8 + $0x8] sm:$0xff]
    %v166 = vld [vmem:[%s8 + $0x10] sm:$0xff]
    %v167 = vld [vmem:[%s8 + $0x18] sm:$0xff]
    %v168 = vld [vmem:[%s0] sm:$0xf]
    %v169 = vld [vmem:[#allocation2] sm:$0xff]
    %v170 = vld [vmem:[#allocation2 + $0x8] sm:$0xff]
    %v171 = vld [vmem:[#allocation2 + $0x10] sm:$0xff]
    %v172 = vld [vmem:[#allocation2 + $0x18] sm:$0xff]
    %v173 = vld [vmem:[#allocation2 + $0x20] sm:$0xff]
    %v174 = vld [vmem:[#allocation2 + $0x28] sm:$0xff]
    %v175 = vld [vmem:[#allocation2 + $0x30] sm:$0xff]
    %v176 = vld [vmem:[#allocation2 + $0x38] sm:$0xff]
    %v177 = vld [vmem:[#allocation2 + $0x40] sm:$0xff]
    %v178 = vld [vmem:[#allocation2 + $0x48] sm:$0xff]
    %v179 = vld [vmem:[#allocation2 + $0x50] sm:$0xff]
    %v180 = vld [vmem:[#allocation2 + $0x58] sm:$0xff]
    %v181 = vld [vmem:[#allocation2 + $0x60] sm:$0xff]
    %v182 = vld [vmem:[#allocation2 + $0x68] sm:$0xff]
    %v183 = vld [vmem:[#allocation2 + $0x70] sm:$0xff]
    %v184 = vld [vmem:[#allocation2 + $0x78] sm:$0xff]
    %v185 = vld [vmem:[#allocation2 + $0x80] sm:$0xff]
    %v186 = vld [vmem:[#allocation2 + $0x88] sm:$0xff]
    %v187 = vld [vmem:[#allocation2 + $0x90] sm:$0xff]
    %v188 = vld [vmem:[#allocation2 + $0x98] sm:$0xff]
    %v189 = vld [vmem:[#allocation2 + $0xa0] sm:$0xff]
    %v190 = vld [vmem:[#allocation2 + $0xa8] sm:$0xff]
    %v191 = vld [vmem:[#allocation2 + $0xb0] sm:$0xff]
    %v192 = vld [vmem:[#allocation2 + $0xb8] sm:$0xff]
    %v193 = vld [vmem:[#allocation2 + $0xc0] sm:$0xff]
    %v194 = vld [vmem:[#allocation2 + $0xc8] sm:$0xff]
    %v195 = vld [vmem:[#allocation2 + $0xd0] sm:$0xff]
    %v196 = vld [vmem:[#allocation2 + $0xd8] sm:$0xff]
    %v197 = vld [vmem:[#allocation2 + $0xe0] sm:$0xff]
    %v198 = vld [vmem:[#allocation2 + $0xe8] sm:$0xff]
    %v199 = vld [vmem:[#allocation2 + $0xf0] sm:$0xff]
    %v200 = vld [vmem:[#allocation2 + $0xf8] sm:$0xff]
    %v201 = vld [vmem:[#allocation2 + $0x100] sm:$0xff]
    %v202 = vld [vmem:[#allocation2 + $0x108] sm:$0xff]
    %v203 = vld [vmem:[#allocation2 + $0x110] sm:$0xff]
    %v204 = vld [vmem:[#allocation2 + $0x118] sm:$0xff]
    %v205 = vld [vmem:[#allocation2 + $0x120] sm:$0xff]
    %v206 = vld [vmem:[#allocation2 + $0x128] sm:$0xff]
    %v207 = vld [vmem:[#allocation2 + $0x130] sm:$0xff]
    %v208 = vld [vmem:[#allocation2 + $0x138] sm:$0xff]
    %v209 = vld [vmem:[#allocation2 + $0x140] sm:$0xff]
    %v210 = vld [vmem:[#allocation2 + $0x148] sm:$0xff]
    %v211 = vld [vmem:[#allocation2 + $0x150] sm:$0xff]
    %v212 = vld [vmem:[#allocation2 + $0x158] sm:$0xff]
    %v213 = vld [vmem:[#allocation2 + $0x160] sm:$0xff]
    %v214 = vld [vmem:[#allocation2 + $0x168] sm:$0xff]
    %v215 = vld [vmem:[#allocation2 + $0x170] sm:$0xff]
    %v216 = vld [vmem:[#allocation2 + $0x178] sm:$0xff]
    %v217 = vld [vmem:[#allocation2 + $0x180] sm:$0xff]
    %v218 = vld [vmem:[#allocation2 + $0x188] sm:$0xff]
    %v219 = vld [vmem:[#allocation2 + $0x190] sm:$0xff]
    %v220 = vld [vmem:[#allocation2 + $0x198] sm:$0xff]
    %v221 = vld [vmem:[#allocation2 + $0x1a0] sm:$0xff]
    %v222 = vld [vmem:[#allocation2 + $0x1a8] sm:$0xff]
    %v223 = vld [vmem:[#allocation2 + $0x1b0] sm:$0xff]
    %v224 = vld [vmem:[#allocation2 + $0x1b8] sm:$0xff]
    %v225 = vld [vmem:[#allocation2 + $0x1c0] sm:$0xff]
    %v226 = vld [vmem:[#allocation2 + $0x1c8] sm:$0xff]
    %v227 = vld [vmem:[#allocation2 + $0x1d0] sm:$0xff]
    %v228 = vld [vmem:[#allocation2 + $0x1d8] sm:$0xff]
    %v229 = vld [vmem:[#allocation2 + $0x1e0] sm:$0xff]
    %v230 = vld [vmem:[#allocation2 + $0x1e8] sm:$0xff]
    %v231 = vld [vmem:[#allocation2 + $0x1f0] sm:$0xff]
    %v232 = vld [vmem:[#allocation2 + $0x1f8] sm:$0xff]
    %v235 = vunpack.c.l.s4 1983009808
    %v236 = vunpack.c.0.s8 %v235
    %v237 = vlaneseq
    %v238 = vshrl.u32 %v237, 7
    %v239 = vsub.s32 %v236, %v238
    %v240 = vrot.slane %v168, %v239
    %v241 = vcombine.high %v240, %v240
    %v244 = vpack.c.bf16 %v240, %v240
    %v245 = vpack.c.bf16 %v241, %v241
    %v310 = vunpack.c.l.b16 %v169
    %v311 = vunpack.c.h.b16 %v169
    %v312 = vunpack.c.l.b16 %v170
    %v313 = vunpack.c.h.b16 %v170
    %v314 = vunpack.c.l.b16 %v171
    %v315 = vunpack.c.h.b16 %v171
    %v316 = vunpack.c.l.b16 %v172
    %v317 = vunpack.c.h.b16 %v172
    %v318 = vunpack.c.l.b16 %v173
    %v319 = vunpack.c.h.b16 %v173
    %v320 = vunpack.c.l.b16 %v174
    %v321 = vunpack.c.h.b16 %v174
    %v322 = vunpack.c.l.b16 %v175
    %v323 = vunpack.c.h.b16 %v175
    %v324 = vunpack.c.l.b16 %v176
    %v325 = vunpack.c.h.b16 %v176
    %v326 = vunpack.c.l.b16 %v177
    %v327 = vunpack.c.h.b16 %v177
    %v328 = vunpack.c.l.b16 %v178
    %v329 = vunpack.c.h.b16 %v178
    %v330 = vunpack.c.l.b16 %v179
    %v331 = vunpack.c.h.b16 %v179
    %v332 = vunpack.c.l.b16 %v180
    %v333 = vunpack.c.h.b16 %v180
    %v334 = vunpack.c.l.b16 %v181
    %v335 = vunpack.c.h.b16 %v181
    %v336 = vunpack.c.l.b16 %v182
    %v337 = vunpack.c.h.b16 %v182
    %v338 = vunpack.c.l.b16 %v183
    %v339 = vunpack.c.h.b16 %v183
    %v340 = vunpack.c.l.b16 %v184
    %v341 = vunpack.c.h.b16 %v184
    %v342 = vunpack.c.l.b16 %v185
    %v343 = vunpack.c.h.b16 %v185
    %v344 = vunpack.c.l.b16 %v186
    %v345 = vunpack.c.h.b16 %v186
    %v346 = vunpack.c.l.b16 %v187
    %v347 = vunpack.c.h.b16 %v187
    %v348 = vunpack.c.l.b16 %v188
    %v349 = vunpack.c.h.b16 %v188
    %v350 = vunpack.c.l.b16 %v189
    %v351 = vunpack.c.h.b16 %v189
    %v352 = vunpack.c.l.b16 %v190
    %v353 = vunpack.c.h.b16 %v190
    %v354 = vunpack.c.l.b16 %v191
    %v355 = vunpack.c.h.b16 %v191
    %v356 = vunpack.c.l.b16 %v192
    %v357 = vunpack.c.h.b16 %v192
    %v358 = vunpack.c.l.b16 %v193
    %v359 = vunpack.c.h.b16 %v193
    %v360 = vunpack.c.l.b16 %v194
    %v361 = vunpack.c.h.b16 %v194
    %v362 = vunpack.c.l.b16 %v195
    %v363 = vunpack.c.h.b16 %v195
    %v364 = vunpack.c.l.b16 %v196
    %v365 = vunpack.c.h.b16 %v196
    %v366 = vunpack.c.l.b16 %v197
    %v367 = vunpack.c.h.b16 %v197
    %v368 = vunpack.c.l.b16 %v198
    %v369 = vunpack.c.h.b16 %v198
    %v370 = vunpack.c.l.b16 %v199
    %v371 = vunpack.c.h.b16 %v199
    %v372 = vunpack.c.l.b16 %v200
    %v373 = vunpack.c.h.b16 %v200
    %v374 = vunpack.c.l.b16 %v201
    %v375 = vunpack.c.h.b16 %v201
    %v376 = vunpack.c.l.b16 %v202
    %v377 = vunpack.c.h.b16 %v202
    %v378 = vunpack.c.l.b16 %v203
    %v379 = vunpack.c.h.b16 %v203
    %v380 = vunpack.c.l.b16 %v204
    %v381 = vunpack.c.h.b16 %v204
    %v382 = vunpack.c.l.b16 %v205
    %v383 = vunpack.c.h.b16 %v205
    %v384 = vunpack.c.l.b16 %v206
    %v385 = vunpack.c.h.b16 %v206
    %v386 = vunpack.c.l.b16 %v207
    %v387 = vunpack.c.h.b16 %v207
    %v388 = vunpack.c.l.b16 %v208
    %v389 = vunpack.c.h.b16 %v208
    %v390 = vunpack.c.l.b16 %v209
    %v391 = vunpack.c.h.b16 %v209
    %v392 = vunpack.c.l.b16 %v210
    %v393 = vunpack.c.h.b16 %v210
    %v394 = vunpack.c.l.b16 %v211
    %v395 = vunpack.c.h.b16 %v211
    %v396 = vunpack.c.l.b16 %v212
    %v397 = vunpack.c.h.b16 %v212
    %v398 = vunpack.c.l.b16 %v213
    %v399 = vunpack.c.h.b16 %v213
    %v400 = vunpack.c.l.b16 %v214
    %v401 = vunpack.c.h.b16 %v214
    %v402 = vunpack.c.l.b16 %v215
    %v403 = vunpack.c.h.b16 %v215
    %v404 = vunpack.c.l.b16 %v216
    %v405 = vunpack.c.h.b16 %v216
    %v406 = vunpack.c.l.b16 %v217
    %v407 = vunpack.c.h.b16 %v217
    %v408 = vunpack.c.l.b16 %v218
    %v409 = vunpack.c.h.b16 %v218
    %v410 = vunpack.c.l.b16 %v219
    %v411 = vunpack.c.h.b16 %v219
    %v412 = vunpack.c.l.b16 %v220
    %v413 = vunpack.c.h.b16 %v220
    %v414 = vunpack.c.l.b16 %v221
    %v415 = vunpack.c.h.b16 %v221
    %v416 = vunpack.c.l.b16 %v222
    %v417 = vunpack.c.h.b16 %v222
    %v418 = vunpack.c.l.b16 %v223
    %v419 = vunpack.c.h.b16 %v223
    %v420 = vunpack.c.l.b16 %v224
    %v421 = vunpack.c.h.b16 %v224
    %v422 = vunpack.c.l.b16 %v225
    %v423 = vunpack.c.h.b16 %v225
    %v424 = vunpack.c.l.b16 %v226
    %v425 = vunpack.c.h.b16 %v226
    %v426 = vunpack.c.l.b16 %v227
    %v427 = vunpack.c.h.b16 %v227
    %v428 = vunpack.c.l.b16 %v228
    %v429 = vunpack.c.h.b16 %v228
    %v430 = vunpack.c.l.b16 %v229
    %v431 = vunpack.c.h.b16 %v229
    %v432 = vunpack.c.l.b16 %v230
    %v433 = vunpack.c.h.b16 %v230
    %v434 = vunpack.c.l.b16 %v231
    %v435 = vunpack.c.h.b16 %v231
    %v436 = vunpack.c.l.b16 %v232
    %v437 = vunpack.c.h.b16 %v232
    %v438 = vpack.c.b16 %v314, %v310
    %v439 = vpack.c.b16 %v315, %v311
    %v440 = vpack.c.b16 %v316, %v312
    %v441 = vpack.c.b16 %v317, %v313
    %v442 = vpack.c.b16 %v322, %v318
    %v443 = vpack.c.b16 %v323, %v319
    %v444 = vpack.c.b16 %v324, %v320
    %v445 = vpack.c.b16 %v325, %v321
    %v446 = vpack.c.b16 %v330, %v326
    %v447 = vpack.c.b16 %v331, %v327
    %v448 = vpack.c.b16 %v332, %v328
    %v449 = vpack.c.b16 %v333, %v329
    %v450 = vpack.c.b16 %v338, %v334
    %v451 = vpack.c.b16 %v339, %v335
    %v452 = vpack.c.b16 %v340, %v336
    %v453 = vpack.c.b16 %v341, %v337
    %v454 = vpack.c.b16 %v346, %v342
    %v455 = vpack.c.b16 %v347, %v343
    %v456 = vpack.c.b16 %v348, %v344
    %v457 = vpack.c.b16 %v349, %v345
    %v458 = vpack.c.b16 %v354, %v350
    %v459 = vpack.c.b16 %v355, %v351
    %v460 = vpack.c.b16 %v356, %v352
    %v461 = vpack.c.b16 %v357, %v353
    %v462 = vpack.c.b16 %v362, %v358
    %v463 = vpack.c.b16 %v363, %v359
    %v464 = vpack.c.b16 %v364, %v360
    %v465 = vpack.c.b16 %v365, %v361
    %v466 = vpack.c.b16 %v370, %v366
    %v467 = vpack.c.b16 %v371, %v367
    %v468 = vpack.c.b16 %v372, %v368
    %v469 = vpack.c.b16 %v373, %v369
    %v470 = vpack.c.b16 %v378, %v374
    %v471 = vpack.c.b16 %v379, %v375
    %v472 = vpack.c.b16 %v380, %v376
    %v473 = vpack.c.b16 %v381, %v377
    %v474 = vpack.c.b16 %v386, %v382
    %v475 = vpack.c.b16 %v387, %v383
    %v476 = vpack.c.b16 %v388, %v384
    %v477 = vpack.c.b16 %v389, %v385
    %v478 = vpack.c.b16 %v394, %v390
    %v479 = vpack.c.b16 %v395, %v391
    %v480 = vpack.c.b16 %v396, %v392
    %v481 = vpack.c.b16 %v397, %v393
    %v482 = vpack.c.b16 %v402, %v398
    %v483 = vpack.c.b16 %v403, %v399
    %v484 = vpack.c.b16 %v404, %v400
    %v485 = vpack.c.b16 %v405, %v401
    %v486 = vpack.c.b16 %v410, %v406
    %v487 = vpack.c.b16 %v411, %v407
    %v488 = vpack.c.b16 %v412, %v408
    %v489 = vpack.c.b16 %v413, %v409
    %v490 = vpack.c.b16 %v418, %v414
    %v491 = vpack.c.b16 %v419, %v415
    %v492 = vpack.c.b16 %v420, %v416
    %v493 = vpack.c.b16 %v421, %v417
    %v494 = vpack.c.b16 %v426, %v422
    %v495 = vpack.c.b16 %v427, %v423
    %v496 = vpack.c.b16 %v428, %v424
    %v497 = vpack.c.b16 %v429, %v425
    %v498 = vpack.c.b16 %v434, %v430
    %v499 = vpack.c.b16 %v435, %v431
    %v500 = vpack.c.b16 %v436, %v432
    %v501 = vpack.c.b16 %v437, %v433
    %566 = vmatprep.subr.bf16.mxu0 %v439
    %567 = vmatpush1.bf16.msra.mxu0 %v438
    %568 = vmatprep.subr.bf16.mxu0 %v443
    %569 = vmatpush1.bf16.msra.mxu0 %v442
    %570 = vmatprep.subr.bf16.mxu0 %v447
    %571 = vmatpush1.bf16.msra.mxu0 %v446
    %572 = vmatprep.subr.bf16.mxu0 %v451
    %573 = vmatpush1.bf16.msra.mxu0 %v450
    %574 = vmatprep.subr.bf16.mxu0 %v455
    %575 = vmatpush1.bf16.msra.mxu0 %v454
    %576 = vmatprep.subr.bf16.mxu0 %v459
    %577 = vmatpush1.bf16.msra.mxu0 %v458
    %578 = vmatprep.subr.bf16.mxu0 %v463
    %579 = vmatpush1.bf16.msra.mxu0 %v462
    %580 = vmatprep.subr.bf16.mxu0 %v467
    %581 = vmatpush1.bf16.msra.mxu0 %v466
    %582 = vmatprep.subr.bf16.mxu0 %v471
    %583 = vmatpush1.bf16.msra.mxu0 %v470
    %584 = vmatprep.subr.bf16.mxu0 %v475
    %585 = vmatpush1.bf16.msra.mxu0 %v474
    %586 = vmatprep.subr.bf16.mxu0 %v479
    %587 = vmatpush1.bf16.msra.mxu0 %v478
    %588 = vmatprep.subr.bf16.mxu0 %v483
    %589 = vmatpush1.bf16.msra.mxu0 %v482
    %590 = vmatprep.subr.bf16.mxu0 %v487
    %591 = vmatpush1.bf16.msra.mxu0 %v486
    %592 = vmatprep.subr.bf16.mxu0 %v491
    %593 = vmatpush1.bf16.msra.mxu0 %v490
    %594 = vmatprep.subr.bf16.mxu0 %v495
    %595 = vmatpush1.bf16.msra.mxu0 %v494
    %596 = vmatprep.subr.bf16.mxu0 %v499
    %597 = vmatpush1.bf16.msra.mxu0 %v498
    %598 = vmatprep.mubr.bf16.mxu0 %v245
    %599 = vmatmul.mubr.bf16.gmra.mrb[0].mxu0 %v244
    %v600 = vpop.f32.mrb[0].mxu0
    %v601 = vadd.f32 0.0, %v600
    %v602 = vpop.f32.mrb[0].mxu0
    %v603 = vadd.f32 0.0, %v602
    %v604 = vpop.f32.mrb[0].mxu0
    %v605 = vpop.f32.mrb[0].mxu0
    %606 = vdwg.mxu0
    %607 = vmatprep.subr.bf16.mxu0 %v441
    %608 = vmatpush1.bf16.msra.mxu0 %v440
    %609 = vmatprep.subr.bf16.mxu0 %v445
    %610 = vmatpush1.bf16.msra.mxu0 %v444
    %611 = vmatprep.subr.bf16.mxu0 %v449
    %612 = vmatpush1.bf16.msra.mxu0 %v448
    %613 = vmatprep.subr.bf16.mxu0 %v453
    %614 = vmatpush1.bf16.msra.mxu0 %v452
    %615 = vmatprep.subr.bf16.mxu0 %v457
    %616 = vmatpush1.bf16.msra.mxu0 %v456
    %617 = vmatprep.subr.bf16.mxu0 %v461
    %618 = vmatpush1.bf16.msra.mxu0 %v460
    %619 = vmatprep.subr.bf16.mxu0 %v465
    %620 = vmatpush1.bf16.msra.mxu0 %v464
    %621 = vmatprep.subr.bf16.mxu0 %v469
    %622 = vmatpush1.bf16.msra.mxu0 %v468
    %623 = vmatprep.subr.bf16.mxu0 %v473
    %624 = vmatpush1.bf16.msra.mxu0 %v472
    %625 = vmatprep.subr.bf16.mxu0 %v477
    %626 = vmatpush1.bf16.msra.mxu0 %v476
    %627 = vmatprep.subr.bf16.mxu0 %v481
    %628 = vmatpush1.bf16.msra.mxu0 %v480
    %629 = vmatprep.subr.bf16.mxu0 %v485
    %630 = vmatpush1.bf16.msra.mxu0 %v484
    %631 = vmatprep.subr.bf16.mxu0 %v489
    %632 = vmatpush1.bf16.msra.mxu0 %v488
    %633 = vmatprep.subr.bf16.mxu0 %v493
    %634 = vmatpush1.bf16.msra.mxu0 %v492
    %635 = vmatprep.subr.bf16.mxu0 %v497
    %636 = vmatpush1.bf16.msra.mxu0 %v496
    %637 = vmatprep.subr.bf16.mxu0 %v501
    %638 = vmatpush1.bf16.msra.mxu0 %v500
    %639 = vmatprep.mubr.bf16.mxu0 %v245
    %640 = vmatmul.mubr.bf16.gmra.mrb[0].mxu0 %v244
    %v641 = vpop.f32.mrb[0].mxu0
    %v642 = vadd.f32 0.0, %v641
    %v643 = vpop.f32.mrb[0].mxu0
    %v644 = vadd.f32 0.0, %v643
    %v645 = vpop.f32.mrb[0].mxu0
    %v646 = vpop.f32.mrb[0].mxu0
    %647 = vdwg.mxu0
    %648 = vmatprep.subr.mxu0 0.0
    %649 = vmatpush1.msra.mxu0 %v64
    %650 = vmatprep.subr.mxu0 0.0
    %651 = vmatpush1.msra.mxu0 %v65
    %652 = vmatprep.subr.mxu0 0.0
    %653 = vmatpush1.msra.mxu0 %v66
    %654 = vmatprep.subr.mxu0 0.0
    %655 = vmatpush1.msra.mxu0 %v67
    %656 = vmatprep.subr.mxu0 0.0
    %657 = vmatpush1.msra.mxu0 %v68
    %658 = vmatprep.subr.mxu0 0.0
    %659 = vmatpush1.msra.mxu0 %v69
    %660 = vmatprep.subr.mxu0 0.0
    %661 = vmatpush1.msra.mxu0 %v70
    %662 = vmatprep.subr.mxu0 0.0
    %663 = vmatpush1.msra.mxu0 %v71
    %664 = vmatprep.subr.mxu0 0.0
    %665 = vmatpush1.msra.mxu0 %v72
    %666 = vmatprep.subr.mxu0 0.0
    %667 = vmatpush1.msra.mxu0 %v73
    %668 = vmatprep.subr.mxu0 0.0
    %669 = vmatpush1.msra.mxu0 %v74
    %670 = vmatprep.subr.mxu0 0.0
    %671 = vmatpush1.msra.mxu0 %v75
    %672 = vmatprep.subr.mxu0 0.0
    %673 = vmatpush1.msra.mxu0 %v76
    %674 = vmatprep.subr.mxu0 0.0
    %675 = vmatpush1.msra.mxu0 %v77
    %676 = vmatprep.subr.mxu0 0.0
    %677 = vmatpush1.msra.mxu0 %v78
    %678 = vmatprep.subr.mxu0 0.0
    %679 = vmatpush1.msra.mxu0 %v79
    %680 = vmatprep.subr.mxu0 0.0
    %681 = vmatpush1.msra.mxu0 %v80
    %682 = vmatprep.subr.mxu0 0.0
    %683 = vmatpush1.msra.mxu0 %v81
    %684 = vmatprep.subr.mxu0 0.0
    %685 = vmatpush1.msra.mxu0 %v82
    %686 = vmatprep.subr.mxu0 0.0
    %687 = vmatpush1.msra.mxu0 %v83
    %688 = vmatprep.subr.mxu0 0.0
    %689 = vmatpush1.msra.mxu0 %v84
    %690 = vmatprep.subr.mxu0 0.0
    %691 = vmatpush1.msra.mxu0 %v85
    %692 = vmatprep.subr.mxu0 0.0
    %693 = vmatpush1.msra.mxu0 %v86
    %694 = vmatprep.subr.mxu0 0.0
    %695 = vmatpush1.msra.mxu0 %v87
    %696 = vmatprep.subr.mxu0 0.0
    %697 = vmatpush1.msra.mxu0 %v88
    %698 = vmatprep.subr.mxu0 0.0
    %699 = vmatpush1.msra.mxu0 %v89
    %700 = vmatprep.subr.mxu0 0.0
    %701 = vmatpush1.msra.mxu0 %v90
    %702 = vmatprep.subr.mxu0 0.0
    %703 = vmatpush1.msra.mxu0 %v91
    %704 = vmatprep.subr.mxu0 0.0
    %705 = vmatpush1.msra.mxu0 %v92
    %706 = vmatprep.subr.mxu0 0.0
    %707 = vmatpush1.msra.mxu0 %v93
    %708 = vmatprep.subr.mxu0 0.0
    %709 = vmatpush1.msra.mxu0 %v94
    %710 = vmatprep.subr.mxu0 0.0
    %711 = vmatpush1.msra.mxu0 %v95
    %712 = vmatprep.mubr.f32.mxu0 %v603
    %713 = vmatmul.mubr.f32.gmra.mrb[0].mxu0 %v601
    %v714 = vpop.f32.mrb[0].mxu0
    %v715 = vadd.f32 0.0, %v714
    %v716 = vpop.f32.mrb[0].mxu0
    %717 = vdwg.mxu0
    %718 = vmatprep.subr.mxu0 0.0
    %719 = vmatpush1.msra.mxu0 %v96
    %720 = vmatprep.subr.mxu0 0.0
    %721 = vmatpush1.msra.mxu0 %v97
    %722 = vmatprep.subr.mxu0 0.0
    %723 = vmatpush1.msra.mxu0 %v98
    %724 = vmatprep.subr.mxu0 0.0
    %725 = vmatpush1.msra.mxu0 %v99
    %726 = vmatprep.subr.mxu0 0.0
    %727 = vmatpush1.msra.mxu0 %v100
    %728 = vmatprep.subr.mxu0 0.0
    %729 = vmatpush1.msra.mxu0 %v101
    %730 = vmatprep.subr.mxu0 0.0
    %731 = vmatpush1.msra.mxu0 %v102
    %732 = vmatprep.subr.mxu0 0.0
    %733 = vmatpush1.msra.mxu0 %v103
    %734 = vmatprep.subr.mxu0 0.0
    %735 = vmatpush1.msra.mxu0 %v104
    %736 = vmatprep.subr.mxu0 0.0
    %737 = vmatpush1.msra.mxu0 %v105
    %738 = vmatprep.subr.mxu0 0.0
    %739 = vmatpush1.msra.mxu0 %v106
    %740 = vmatprep.subr.mxu0 0.0
    %741 = vmatpush1.msra.mxu0 %v107
    %742 = vmatprep.subr.mxu0 0.0
    %743 = vmatpush1.msra.mxu0 %v108
    %744 = vmatprep.subr.mxu0 0.0
    %745 = vmatpush1.msra.mxu0 %v109
    %746 = vmatprep.subr.mxu0 0.0
    %747 = vmatpush1.msra.mxu0 %v110
    %748 = vmatprep.subr.mxu0 0.0
    %749 = vmatpush1.msra.mxu0 %v111
    %750 = vmatprep.subr.mxu0 0.0
    %751 = vmatpush1.msra.mxu0 %v112
    %752 = vmatprep.subr.mxu0 0.0
    %753 = vmatpush1.msra.mxu0 %v113
    %754 = vmatprep.subr.mxu0 0.0
    %755 = vmatpush1.msra.mxu0 %v114
    %756 = vmatprep.subr.mxu0 0.0
    %757 = vmatpush1.msra.mxu0 %v115
    %758 = vmatprep.subr.mxu0 0.0
    %759 = vmatpush1.msra.mxu0 %v116
    %760 = vmatprep.subr.mxu0 0.0
    %761 = vmatpush1.msra.mxu0 %v117
    %762 = vmatprep.subr.mxu0 0.0
    %763 = vmatpush1.msra.mxu0 %v118
    %764 = vmatprep.subr.mxu0 0.0
    %765 = vmatpush1.msra.mxu0 %v119
    %766 = vmatprep.subr.mxu0 0.0
    %767 = vmatpush1.msra.mxu0 %v120
    %768 = vmatprep.subr.mxu0 0.0
    %769 = vmatpush1.msra.mxu0 %v121
    %770 = vmatprep.subr.mxu0 0.0
    %771 = vmatpush1.msra.mxu0 %v122
    %772 = vmatprep.subr.mxu0 0.0
    %773 = vmatpush1.msra.mxu0 %v123
    %774 = vmatprep.subr.mxu0 0.0
    %775 = vmatpush1.msra.mxu0 %v124
    %776 = vmatprep.subr.mxu0 0.0
    %777 = vmatpush1.msra.mxu0 %v125
    %778 = vmatprep.subr.mxu0 0.0
    %779 = vmatpush1.msra.mxu0 %v126
    %780 = vmatprep.subr.mxu0 0.0
    %781 = vmatpush1.msra.mxu0 %v127
    %782 = vmatprep.mubr.f32.mxu0 %v644
    %783 = vmatmul.mubr.f32.gmra.mrb[0].mxu0 %v642
    %v784 = vpop.f32.mrb[0].mxu0
    %v785 = vadd.f32 %v715, %v784
    %v786 = vpop.f32.mrb[0].mxu0
    %787 = vdwg.mxu0
    %v788 = vmul.f32 %v601, %v601
    %v789 = vmul.f32 %v603, %v603
    %v790 = vmul.f32 %v642, %v642
    %v791 = vmul.f32 %v644, %v644
    %792 = vmatprep.subr.mxu0 0.0
    %793 = vmatpush1.msra.mxu0 %v64
    %794 = vmatprep.subr.mxu0 0.0
    %795 = vmatpush1.msra.mxu0 %v65
    %796 = vmatprep.subr.mxu0 0.0
    %797 = vmatpush1.msra.mxu0 %v66
    %798 = vmatprep.subr.mxu0 0.0
    %799 = vmatpush1.msra.mxu0 %v67
    %800 = vmatprep.subr.mxu0 0.0
    %801 = vmatpush1.msra.mxu0 %v68
    %802 = vmatprep.subr.mxu0 0.0
    %803 = vmatpush1.msra.mxu0 %v69
    %804 = vmatprep.subr.mxu0 0.0
    %805 = vmatpush1.msra.mxu0 %v70
    %806 = vmatprep.subr.mxu0 0.0
    %807 = vmatpush1.msra.mxu0 %v71
    %808 = vmatprep.subr.mxu0 0.0
    %809 = vmatpush1.msra.mxu0 %v72
    %810 = vmatprep.subr.mxu0 0.0
    %811 = vmatpush1.msra.mxu0 %v73
    %812 = vmatprep.subr.mxu0 0.0
    %813 = vmatpush1.msra.mxu0 %v74
    %814 = vmatprep.subr.mxu0 0.0
    %815 = vmatpush1.msra.mxu0 %v75
    %816 = vmatprep.subr.mxu0 0.0
    %817 = vmatpush1.msra.mxu0 %v76
    %818 = vmatprep.subr.mxu0 0.0
    %819 = vmatpush1.msra.mxu0 %v77
    %820 = vmatprep.subr.mxu0 0.0
    %821 = vmatpush1.msra.mxu0 %v78
    %822 = vmatprep.subr.mxu0 0.0
    %823 = vmatpush1.msra.mxu0 %v79
    %824 = vmatprep.subr.mxu0 0.0
    %825 = vmatpush1.msra.mxu0 %v80
    %826 = vmatprep.subr.mxu0 0.0
    %827 = vmatpush1.msra.mxu0 %v81
    %828 = vmatprep.subr.mxu0 0.0
    %829 = vmatpush1.msra.mxu0 %v82
    %830 = vmatprep.subr.mxu0 0.0
    %831 = vmatpush1.msra.mxu0 %v83
    %832 = vmatprep.subr.mxu0 0.0
    %833 = vmatpush1.msra.mxu0 %v84
    %834 = vmatprep.subr.mxu0 0.0
    %835 = vmatpush1.msra.mxu0 %v85
    %836 = vmatprep.subr.mxu0 0.0
    %837 = vmatpush1.msra.mxu0 %v86
    %838 = vmatprep.subr.mxu0 0.0
    %839 = vmatpush1.msra.mxu0 %v87
    %840 = vmatprep.subr.mxu0 0.0
    %841 = vmatpush1.msra.mxu0 %v88
    %842 = vmatprep.subr.mxu0 0.0
    %843 = vmatpush1.msra.mxu0 %v89
    %844 = vmatprep.subr.mxu0 0.0
    %845 = vmatpush1.msra.mxu0 %v90
    %846 = vmatprep.subr.mxu0 0.0
    %847 = vmatpush1.msra.mxu0 %v91
    %848 = vmatprep.subr.mxu0 0.0
    %849 = vmatpush1.msra.mxu0 %v92
    %850 = vmatprep.subr.mxu0 0.0
    %851 = vmatpush1.msra.mxu0 %v93
    %852 = vmatprep.subr.mxu0 0.0
    %853 = vmatpush1.msra.mxu0 %v94
    %854 = vmatprep.subr.mxu0 0.0
    %855 = vmatpush1.msra.mxu0 %v95
    %856 = vmatprep.mubr.f32.mxu0 %v789
    %857 = vmatmul.mubr.f32.gmra.mrb[0].mxu0 %v788
    %v858 = vpop.f32.mrb[0].mxu0
    %v859 = vadd.f32 0.0, %v858
    %v860 = vpop.f32.mrb[0].mxu0
    %861 = vdwg.mxu0
    %862 = vmatprep.subr.mxu0 0.0
    %863 = vmatpush1.msra.mxu0 %v96
    %864 = vmatprep.subr.mxu0 0.0
    %865 = vmatpush1.msra.mxu0 %v97
    %866 = vmatprep.subr.mxu0 0.0
    %867 = vmatpush1.msra.mxu0 %v98
    %868 = vmatprep.subr.mxu0 0.0
    %869 = vmatpush1.msra.mxu0 %v99
    %870 = vmatprep.subr.mxu0 0.0
    %871 = vmatpush1.msra.mxu0 %v100
    %872 = vmatprep.subr.mxu0 0.0
    %873 = vmatpush1.msra.mxu0 %v101
    %874 = vmatprep.subr.mxu0 0.0
    %875 = vmatpush1.msra.mxu0 %v102
    %876 = vmatprep.subr.mxu0 0.0
    %877 = vmatpush1.msra.mxu0 %v103
    %878 = vmatprep.subr.mxu0 0.0
    %879 = vmatpush1.msra.mxu0 %v104
    %880 = vmatprep.subr.mxu0 0.0
    %881 = vmatpush1.msra.mxu0 %v105
    %882 = vmatprep.subr.mxu0 0.0
    %883 = vmatpush1.msra.mxu0 %v106
    %884 = vmatprep.subr.mxu0 0.0
    %885 = vmatpush1.msra.mxu0 %v107
    %886 = vmatprep.subr.mxu0 0.0
    %887 = vmatpush1.msra.mxu0 %v108
    %888 = vmatprep.subr.mxu0 0.0
    %889 = vmatpush1.msra.mxu0 %v109
    %890 = vmatprep.subr.mxu0 0.0
    %891 = vmatpush1.msra.mxu0 %v110
    %892 = vmatprep.subr.mxu0 0.0
    %893 = vmatpush1.msra.mxu0 %v111
    %894 = vmatprep.subr.mxu0 0.0
    %895 = vmatpush1.msra.mxu0 %v112
    %896 = vmatprep.subr.mxu0 0.0
    %897 = vmatpush1.msra.mxu0 %v113
    %898 = vmatprep.subr.mxu0 0.0
    %899 = vmatpush1.msra.mxu0 %v114
    %900 = vmatprep.subr.mxu0 0.0
    %901 = vmatpush1.msra.mxu0 %v115
    %902 = vmatprep.subr.mxu0 0.0
    %903 = vmatpush1.msra.mxu0 %v116
    %904 = vmatprep.subr.mxu0 0.0
    %905 = vmatpush1.msra.mxu0 %v117
    %906 = vmatprep.subr.mxu0 0.0
    %907 = vmatpush1.msra.mxu0 %v118
    %908 = vmatprep.subr.mxu0 0.0
    %909 = vmatpush1.msra.mxu0 %v119
    %910 = vmatprep.subr.mxu0 0.0
    %911 = vmatpush1.msra.mxu0 %v120
    %912 = vmatprep.subr.mxu0 0.0
    %913 = vmatpush1.msra.mxu0 %v121
    %914 = vmatprep.subr.mxu0 0.0
    %915 = vmatpush1.msra.mxu0 %v122
    %916 = vmatprep.subr.mxu0 0.0
    %917 = vmatpush1.msra.mxu0 %v123
    %918 = vmatprep.subr.mxu0 0.0
    %919 = vmatpush1.msra.mxu0 %v124
    %920 = vmatprep.subr.mxu0 0.0
    %921 = vmatpush1.msra.mxu0 %v125
    %922 = vmatprep.subr.mxu0 0.0
    %923 = vmatpush1.msra.mxu0 %v126
    %924 = vmatprep.subr.mxu0 0.0
    %925 = vmatpush1.msra.mxu0 %v127
    %926 = vmatprep.mubr.f32.mxu0 %v791
    %927 = vmatmul.mubr.f32.gmra.mrb[0].mxu0 %v790
    %v928 = vpop.f32.mrb[0].mxu0
    %v929 = vadd.f32 %v859, %v928
    %v930 = vpop.f32.mrb[0].mxu0
    %931 = vdwg.mxu0
    %vm932 = vcmask 58368
    %v933 = vsel %vm932, %v785, 0.0
    %v934 = vrot.slane %v933, 4
    %v935 = vadd.f32 %v933, %v934
    %v936 = vrot.slane %v935, 2
    %v937 = vadd.f32 %v935, %v936
    %v938 = vrot.slane %v937, 1
    %v939 = vadd.f32 %v937, %v938
    %v940 = vmul.f32 %v939, 0.5
    %v941 = vsel %vm932, %v929, 0.0
    %v942 = vrot.slane %v941, 4
    %v943 = vadd.f32 %v941, %v942
    %v944 = vrot.slane %v943, 2
    %v945 = vadd.f32 %v943, %v944
    %v946 = vrot.slane %v945, 1
    %v947 = vadd.f32 %v945, %v946
    %v948 = vmul.f32 %v947, 0.5
    %v949 = vmul.f32 %v940, %v940
    %v950 = vsub.f32 %v948, %v949
    %v951 = vmax.f32 %v950, 0.0
    %v952 = vadd.f32 %v951, 1e-05
    %v953 = vrsqrt.pop %v952
    %v954 = vmul.f32 %v61, %v953
    %v955 = vmul.f32 %v940, %v954
    %v957 = vrot.slane %v955, 7
    %v959 = vsub.f32 %v61, %v957
    %vm960 = vcmask 1040384
    %v961 = vsel %vm960, %v954, %v959
    %vm962 = vcmask 64512
    %v964 = vsel %vm962, %v961, 0
    %966 = vmatprep.subr.mxu0 %v129
    %967 = vmatpush1.msra.mxu0 %v128
    %968 = vmatprep.subr.mxu0 0.0
    %969 = vmatpush1.msra.mxu0 0.0
    %970 = vmatprep.subr.mxu0 0.0
    %971 = vmatpush1.msra.mxu0 0.0
    %972 = vmatprep.subr.mxu0 0.0
    %973 = vmatpush1.msra.mxu0 0.0
    %974 = vmatprep.subr.mxu0 0.0
    %975 = vmatpush1.msra.mxu0 0.0
    %976 = vmatprep.subr.mxu0 0.0
    %977 = vmatpush1.msra.mxu0 0.0
    %978 = vmatprep.subr.mxu0 0.0
    %979 = vmatpush1.msra.mxu0 0.0
    %980 = vmatprep.subr.mxu0 0.0
    %981 = vmatpush1.msra.mxu0 0.0
    %982 = vmatprep.subr.mxu0 0.0
    %983 = vmatpush1.msra.mxu0 0.0
    %984 = vmatprep.subr.mxu0 0.0
    %985 = vmatpush1.msra.mxu0 0.0
    %986 = vmatprep.subr.mxu0 0.0
    %987 = vmatpush1.msra.mxu0 0.0
    %988 = vmatprep.subr.mxu0 0.0
    %989 = vmatpush1.msra.mxu0 0.0
    %990 = vmatprep.subr.mxu0 0.0
    %991 = vmatpush1.msra.mxu0 0.0
    %992 = vmatprep.subr.mxu0 0.0
    %993 = vmatpush1.msra.mxu0 0.0
    %994 = vmatprep.subr.mxu0 0.0
    %995 = vmatpush1.msra.mxu0 0.0
    %996 = vmatprep.subr.mxu0 0.0
    %997 = vmatpush1.msra.mxu0 0.0
    %998 = vmatprep.subr.mxu0 0.0
    %999 = vmatpush1.msra.mxu0 0.0
    %1000 = vmatprep.subr.mxu0 0.0
    %1001 = vmatpush1.msra.mxu0 0.0
    %1002 = vmatprep.subr.mxu0 0.0
    %1003 = vmatpush1.msra.mxu0 0.0
    %1004 = vmatprep.subr.mxu0 0.0
    %1005 = vmatpush1.msra.mxu0 0.0
    %1006 = vmatprep.subr.mxu0 0.0
    %1007 = vmatpush1.msra.mxu0 0.0
    %1008 = vmatprep.subr.mxu0 0.0
    %1009 = vmatpush1.msra.mxu0 0.0
    %1010 = vmatprep.subr.mxu0 0.0
    %1011 = vmatpush1.msra.mxu0 0.0
    %1012 = vmatprep.subr.mxu0 0.0
    %1013 = vmatpush1.msra.mxu0 0.0
    %1014 = vmatprep.subr.mxu0 0.0
    %1015 = vmatpush1.msra.mxu0 0.0
    %1016 = vmatprep.subr.mxu0 0.0
    %1017 = vmatpush1.msra.mxu0 0.0
    %1018 = vmatprep.subr.mxu0 0.0
    %1019 = vmatpush1.msra.mxu0 0.0
    %1020 = vmatprep.subr.mxu0 0.0
    %1021 = vmatpush1.msra.mxu0 0.0
    %1022 = vmatprep.subr.mxu0 0.0
    %1023 = vmatpush1.msra.mxu0 0.0
    %1024 = vmatprep.subr.mxu0 0.0
    %1025 = vmatpush1.msra.mxu0 0.0
    %1026 = vmatprep.subr.mxu0 0.0
    %1027 = vmatpush1.msra.mxu0 0.0
    %1028 = vmatprep.subr.mxu0 0.0
    %1029 = vmatpush1.msra.mxu0 0.0
    %1030 = vmatprep.mubr.f32.mxu0 0.0
    %1031 = vmatmul.mubr.f32.gmra.mrb[0].mxu0 %v964
    %v1032 = vpop.f32.mrb[0].mxu0
    %v1033 = vadd.f32 0.0, %v1032
    %v1034 = vpop.f32.mrb[0].mxu0
    %v1035 = vadd.f32 0.0, %v1034
    %1036 = vdwg.mxu0
    %1037 = vmatprep.subr.mxu0 %v131
    %1038 = vmatpush1.msra.mxu0 %v130
    %1039 = vmatprep.subr.mxu0 0.0
    %1040 = vmatpush1.msra.mxu0 0.0
    %1041 = vmatprep.subr.mxu0 0.0
    %1042 = vmatpush1.msra.mxu0 0.0
    %1043 = vmatprep.subr.mxu0 0.0
    %1044 = vmatpush1.msra.mxu0 0.0
    %1045 = vmatprep.subr.mxu0 0.0
    %1046 = vmatpush1.msra.mxu0 0.0
    %1047 = vmatprep.subr.mxu0 0.0
    %1048 = vmatpush1.msra.mxu0 0.0
    %1049 = vmatprep.subr.mxu0 0.0
    %1050 = vmatpush1.msra.mxu0 0.0
    %1051 = vmatprep.subr.mxu0 0.0
    %1052 = vmatpush1.msra.mxu0 0.0
    %1053 = vmatprep.subr.mxu0 0.0
    %1054 = vmatpush1.msra.mxu0 0.0
    %1055 = vmatprep.subr.mxu0 0.0
    %1056 = vmatpush1.msra.mxu0 0.0
    %1057 = vmatprep.subr.mxu0 0.0
    %1058 = vmatpush1.msra.mxu0 0.0
    %1059 = vmatprep.subr.mxu0 0.0
    %1060 = vmatpush1.msra.mxu0 0.0
    %1061 = vmatprep.subr.mxu0 0.0
    %1062 = vmatpush1.msra.mxu0 0.0
    %1063 = vmatprep.subr.mxu0 0.0
    %1064 = vmatpush1.msra.mxu0 0.0
    %1065 = vmatprep.subr.mxu0 0.0
    %1066 = vmatpush1.msra.mxu0 0.0
    %1067 = vmatprep.subr.mxu0 0.0
    %1068 = vmatpush1.msra.mxu0 0.0
    %1069 = vmatprep.subr.mxu0 0.0
    %1070 = vmatpush1.msra.mxu0 0.0
    %1071 = vmatprep.subr.mxu0 0.0
    %1072 = vmatpush1.msra.mxu0 0.0
    %1073 = vmatprep.subr.mxu0 0.0
    %1074 = vmatpush1.msra.mxu0 0.0
    %1075 = vmatprep.subr.mxu0 0.0
    %1076 = vmatpush1.msra.mxu0 0.0
    %1077 = vmatprep.subr.mxu0 0.0
    %1078 = vmatpush1.msra.mxu0 0.0
    %1079 = vmatprep.subr.mxu0 0.0
    %1080 = vmatpush1.msra.mxu0 0.0
    %1081 = vmatprep.subr.mxu0 0.0
    %1082 = vmatpush1.msra.mxu0 0.0
    %1083 = vmatprep.subr.mxu0 0.0
    %1084 = vmatpush1.msra.mxu0 0.0
    %1085 = vmatprep.subr.mxu0 0.0
    %1086 = vmatpush1.msra.mxu0 0.0
    %1087 = vmatprep.subr.mxu0 0.0
    %1088 = vmatpush1.msra.mxu0 0.0
    %1089 = vmatprep.subr.mxu0 0.0
    %1090 = vmatpush1.msra.mxu0 0.0
    %1091 = vmatprep.subr.mxu0 0.0
    %1092 = vmatpush1.msra.mxu0 0.0
    %1093 = vmatprep.subr.mxu0 0.0
    %1094 = vmatpush1.msra.mxu0 0.0
    %1095 = vmatprep.subr.mxu0 0.0
    %1096 = vmatpush1.msra.mxu0 0.0
    %1097 = vmatprep.subr.mxu0 0.0
    %1098 = vmatpush1.msra.mxu0 0.0
    %1099 = vmatprep.subr.mxu0 0.0
    %1100 = vmatpush1.msra.mxu0 0.0
    %1101 = vmatprep.mubr.f32.mxu0 0.0
    %1102 = vmatmul.mubr.f32.gmra.mrb[0].mxu0 %v964
    %v1103 = vpop.f32.mrb[0].mxu0
    %v1104 = vadd.f32 0.0, %v1103
    %v1105 = vpop.f32.mrb[0].mxu0
    %v1106 = vadd.f32 0.0, %v1105
    %1107 = vdwg.mxu0
    %v1108 = vlaneseq
    %v1109 = vshrl.u32 %v1108, 7
    %v1110 = vsub.s32 0, %v1109
    %v1111 = vrot.slane %v1033, %v1110
    %v1112 = vlaneseq
    %v1113 = vshrl.u32 %v1112, 7
    %v1114 = vsub.s32 0, %v1113
    %v1115 = vrot.slane %v1035, %v1114
    %v1116 = vlaneseq
    %v1117 = vshrl.u32 %v1116, 7
    %v1118 = vsub.s32 0, %v1117
    %v1119 = vrot.slane %v1104, %v1118
    %v1120 = vlaneseq
    %v1121 = vshrl.u32 %v1120, 7
    %v1122 = vsub.s32 0, %v1121
    %v1123 = vrot.slane %v1106, %v1122
    %v1124 = vmul.f32 %v601, %v1111
    %v1125 = vmul.f32 %v603, %v1115
    %v1126 = vmul.f32 %v642, %v1119
    %v1127 = vmul.f32 %v644, %v1123
    %v1128 = vlaneseq
    %v1129 = vshrl.u32 %v1128, 7
    %v1130 = vsub.s32 1, %v1129
    %v1131 = vrot.slane %v1033, %v1130
    %v1132 = vlaneseq
    %v1133 = vshrl.u32 %v1132, 7
    %v1134 = vsub.s32 1, %v1133
    %v1135 = vrot.slane %v1035, %v1134
    %v1136 = vlaneseq
    %v1137 = vshrl.u32 %v1136, 7
    %v1138 = vsub.s32 1, %v1137
    %v1139 = vrot.slane %v1104, %v1138
    %v1140 = vlaneseq
    %v1141 = vshrl.u32 %v1140, 7
    %v1142 = vsub.s32 1, %v1141
    %v1143 = vrot.slane %v1106, %v1142
    %v1144 = vadd.f32 %v1124, %v1131
    %v1145 = vadd.f32 %v1125, %v1135
    %v1146 = vadd.f32 %v1126, %v1139
    %v1147 = vadd.f32 %v1127, %v1143
    %v1148 = vmax.f32 %v1144, 0.0
    %v1149 = vmax.f32 %v1145, 0.0
    %v1150 = vmax.f32 %v1146, 0.0
    %v1151 = vmax.f32 %v1147, 0.0
    %v1152 = vld [vmem:[#allocation4] sm:$0xff]
    %v1153 = vld [vmem:[#allocation4 + $0x8] sm:$0xff]
    %v1154 = vld [vmem:[#allocation4 + $0x10] sm:$0xff]
    %v1155 = vld [vmem:[#allocation4 + $0x18] sm:$0xff]
    %v1156 = vld [vmem:[#allocation4 + $0x20] sm:$0xff]
    %v1157 = vld [vmem:[#allocation4 + $0x28] sm:$0xff]
    %v1158 = vld [vmem:[#allocation4 + $0x30] sm:$0xff]
    %v1159 = vld [vmem:[#allocation4 + $0x38] sm:$0xff]
    %v1160 = vld [vmem:[#allocation4 + $0x40] sm:$0xff]
    %v1161 = vld [vmem:[#allocation4 + $0x48] sm:$0xff]
    %v1162 = vld [vmem:[#allocation4 + $0x50] sm:$0xff]
    %v1163 = vld [vmem:[#allocation4 + $0x58] sm:$0xff]
    %v1164 = vld [vmem:[#allocation4 + $0x60] sm:$0xff]
    %v1165 = vld [vmem:[#allocation4 + $0x68] sm:$0xff]
    %v1166 = vld [vmem:[#allocation4 + $0x70] sm:$0xff]
    %v1167 = vld [vmem:[#allocation4 + $0x78] sm:$0xff]
    %v1168 = vld [vmem:[#allocation4 + $0x80] sm:$0xff]
    %v1169 = vld [vmem:[#allocation4 + $0x88] sm:$0xff]
    %v1170 = vld [vmem:[#allocation4 + $0x90] sm:$0xff]
    %v1171 = vld [vmem:[#allocation4 + $0x98] sm:$0xff]
    %v1172 = vld [vmem:[#allocation4 + $0xa0] sm:$0xff]
    %v1173 = vld [vmem:[#allocation4 + $0xa8] sm:$0xff]
    %v1174 = vld [vmem:[#allocation4 + $0xb0] sm:$0xff]
    %v1175 = vld [vmem:[#allocation4 + $0xb8] sm:$0xff]
    %v1176 = vld [vmem:[#allocation4 + $0xc0] sm:$0xff]
    %v1177 = vld [vmem:[#allocation4 + $0xc8] sm:$0xff]
    %v1178 = vld [vmem:[#allocation4 + $0xd0] sm:$0xff]
    %v1179 = vld [vmem:[#allocation4 + $0xd8] sm:$0xff]
    %v1180 = vld [vmem:[#allocation4 + $0xe0] sm:$0xff]
    %v1181 = vld [vmem:[#allocation4 + $0xe8] sm:$0xff]
    %v1182 = vld [vmem:[#allocation4 + $0xf0] sm:$0xff]
    %v1183 = vld [vmem:[#allocation4 + $0xf8] sm:$0xff]
    %v1184 = vld [vmem:[#allocation4 + $0x100] sm:$0xff]
    %v1185 = vld [vmem:[#allocation4 + $0x108] sm:$0xff]
    %v1186 = vld [vmem:[#allocation4 + $0x110] sm:$0xff]
    %v1187 = vld [vmem:[#allocation4 + $0x118] sm:$0xff]
    %v1188 = vld [vmem:[#allocation4 + $0x120] sm:$0xff]
    %v1189 = vld [vmem:[#allocation4 + $0x128] sm:$0xff]
    %v1190 = vld [vmem:[#allocation4 + $0x130] sm:$0xff]
    %v1191 = vld [vmem:[#allocation4 + $0x138] sm:$0xff]
    %v1192 = vld [vmem:[#allocation4 + $0x140] sm:$0xff]
    %v1193 = vld [vmem:[#allocation4 + $0x148] sm:$0xff]
    %v1194 = vld [vmem:[#allocation4 + $0x150] sm:$0xff]
    %v1195 = vld [vmem:[#allocation4 + $0x158] sm:$0xff]
    %v1196 = vld [vmem:[#allocation4 + $0x160] sm:$0xff]
    %v1197 = vld [vmem:[#allocation4 + $0x168] sm:$0xff]
    %v1198 = vld [vmem:[#allocation4 + $0x170] sm:$0xff]
    %v1199 = vld [vmem:[#allocation4 + $0x178] sm:$0xff]
    %v1200 = vld [vmem:[#allocation4 + $0x180] sm:$0xff]
    %v1201 = vld [vmem:[#allocation4 + $0x188] sm:$0xff]
    %v1202 = vld [vmem:[#allocation4 + $0x190] sm:$0xff]
    %v1203 = vld [vmem:[#allocation4 + $0x198] sm:$0xff]
    %v1204 = vld [vmem:[#allocation4 + $0x1a0] sm:$0xff]
    %v1205 = vld [vmem:[#allocation4 + $0x1a8] sm:$0xff]
    %v1206 = vld [vmem:[#allocation4 + $0x1b0] sm:$0xff]
    %v1207 = vld [vmem:[#allocation4 + $0x1b8] sm:$0xff]
    %v1208 = vld [vmem:[#allocation4 + $0x1c0] sm:$0xff]
    %v1209 = vld [vmem:[#allocation4 + $0x1c8] sm:$0xff]
    %v1210 = vld [vmem:[#allocation4 + $0x1d0] sm:$0xff]
    %v1211 = vld [vmem:[#allocation4 + $0x1d8] sm:$0xff]
    %v1212 = vld [vmem:[#allocation4 + $0x1e0] sm:$0xff]
    %v1213 = vld [vmem:[#allocation4 + $0x1e8] sm:$0xff]
    %v1214 = vld [vmem:[#allocation4 + $0x1f0] sm:$0xff]
    %v1215 = vld [vmem:[#allocation4 + $0x1f8] sm:$0xff]
    %v1216 = vpack.c.bf16 %v1148, %v1148
    %v1217 = vpack.c.bf16 %v1149, %v1149
    %v1218 = vpack.c.bf16 %v1150, %v1150
    %v1219 = vpack.c.bf16 %v1151, %v1151
    %v1284 = vunpack.c.l.b16 %v1152
    %v1285 = vunpack.c.h.b16 %v1152
    %v1286 = vunpack.c.l.b16 %v1153
    %v1287 = vunpack.c.h.b16 %v1153
    %v1288 = vunpack.c.l.b16 %v1154
    %v1289 = vunpack.c.h.b16 %v1154
    %v1290 = vunpack.c.l.b16 %v1155
    %v1291 = vunpack.c.h.b16 %v1155
    %v1292 = vunpack.c.l.b16 %v1156
    %v1293 = vunpack.c.h.b16 %v1156
    %v1294 = vunpack.c.l.b16 %v1157
    %v1295 = vunpack.c.h.b16 %v1157
    %v1296 = vunpack.c.l.b16 %v1158
    %v1297 = vunpack.c.h.b16 %v1158
    %v1298 = vunpack.c.l.b16 %v1159
    %v1299 = vunpack.c.h.b16 %v1159
    %v1300 = vunpack.c.l.b16 %v1160
    %v1301 = vunpack.c.h.b16 %v1160
    %v1302 = vunpack.c.l.b16 %v1161
    %v1303 = vunpack.c.h.b16 %v1161
    %v1304 = vunpack.c.l.b16 %v1162
    %v1305 = vunpack.c.h.b16 %v1162
    %v1306 = vunpack.c.l.b16 %v1163
    %v1307 = vunpack.c.h.b16 %v1163
    %v1308 = vunpack.c.l.b16 %v1164
    %v1309 = vunpack.c.h.b16 %v1164
    %v1310 = vunpack.c.l.b16 %v1165
    %v1311 = vunpack.c.h.b16 %v1165
    %v1312 = vunpack.c.l.b16 %v1166
    %v1313 = vunpack.c.h.b16 %v1166
    %v1314 = vunpack.c.l.b16 %v1167
    %v1315 = vunpack.c.h.b16 %v1167
    %v1316 = vunpack.c.l.b16 %v1168
    %v1317 = vunpack.c.h.b16 %v1168
    %v1318 = vunpack.c.l.b16 %v1169
    %v1319 = vunpack.c.h.b16 %v1169
    %v1320 = vunpack.c.l.b16 %v1170
    %v1321 = vunpack.c.h.b16 %v1170
    %v1322 = vunpack.c.l.b16 %v1171
    %v1323 = vunpack.c.h.b16 %v1171
    %v1324 = vunpack.c.l.b16 %v1172
    %v1325 = vunpack.c.h.b16 %v1172
    %v1326 = vunpack.c.l.b16 %v1173
    %v1327 = vunpack.c.h.b16 %v1173
    %v1328 = vunpack.c.l.b16 %v1174
    %v1329 = vunpack.c.h.b16 %v1174
    %v1330 = vunpack.c.l.b16 %v1175
    %v1331 = vunpack.c.h.b16 %v1175
    %v1332 = vunpack.c.l.b16 %v1176
    %v1333 = vunpack.c.h.b16 %v1176
    %v1334 = vunpack.c.l.b16 %v1177
    %v1335 = vunpack.c.h.b16 %v1177
    %v1336 = vunpack.c.l.b16 %v1178
    %v1337 = vunpack.c.h.b16 %v1178
    %v1338 = vunpack.c.l.b16 %v1179
    %v1339 = vunpack.c.h.b16 %v1179
    %v1340 = vunpack.c.l.b16 %v1180
    %v1341 = vunpack.c.h.b16 %v1180
    %v1342 = vunpack.c.l.b16 %v1181
    %v1343 = vunpack.c.h.b16 %v1181
    %v1344 = vunpack.c.l.b16 %v1182
    %v1345 = vunpack.c.h.b16 %v1182
    %v1346 = vunpack.c.l.b16 %v1183
    %v1347 = vunpack.c.h.b16 %v1183
    %v1348 = vunpack.c.l.b16 %v1184
    %v1349 = vunpack.c.h.b16 %v1184
    %v1350 = vunpack.c.l.b16 %v1185
    %v1351 = vunpack.c.h.b16 %v1185
    %v1352 = vunpack.c.l.b16 %v1186
    %v1353 = vunpack.c.h.b16 %v1186
    %v1354 = vunpack.c.l.b16 %v1187
    %v1355 = vunpack.c.h.b16 %v1187
    %v1356 = vunpack.c.l.b16 %v1188
    %v1357 = vunpack.c.h.b16 %v1188
    %v1358 = vunpack.c.l.b16 %v1189
    %v1359 = vunpack.c.h.b16 %v1189
    %v1360 = vunpack.c.l.b16 %v1190
    %v1361 = vunpack.c.h.b16 %v1190
    %v1362 = vunpack.c.l.b16 %v1191
    %v1363 = vunpack.c.h.b16 %v1191
    %v1364 = vunpack.c.l.b16 %v1192
    %v1365 = vunpack.c.h.b16 %v1192
    %v1366 = vunpack.c.l.b16 %v1193
    %v1367 = vunpack.c.h.b16 %v1193
    %v1368 = vunpack.c.l.b16 %v1194
    %v1369 = vunpack.c.h.b16 %v1194
    %v1370 = vunpack.c.l.b16 %v1195
    %v1371 = vunpack.c.h.b16 %v1195
    %v1372 = vunpack.c.l.b16 %v1196
    %v1373 = vunpack.c.h.b16 %v1196
    %v1374 = vunpack.c.l.b16 %v1197
    %v1375 = vunpack.c.h.b16 %v1197
    %v1376 = vunpack.c.l.b16 %v1198
    %v1377 = vunpack.c.h.b16 %v1198
    %v1378 = vunpack.c.l.b16 %v1199
    %v1379 = vunpack.c.h.b16 %v1199
    %v1380 = vunpack.c.l.b16 %v1200
    %v1381 = vunpack.c.h.b16 %v1200
    %v1382 = vunpack.c.l.b16 %v1201
    %v1383 = vunpack.c.h.b16 %v1201
    %v1384 = vunpack.c.l.b16 %v1202
    %v1385 = vunpack.c.h.b16 %v1202
    %v1386 = vunpack.c.l.b16 %v1203
    %v1387 = vunpack.c.h.b16 %v1203
    %v1388 = vunpack.c.l.b16 %v1204
    %v1389 = vunpack.c.h.b16 %v1204
    %v1390 = vunpack.c.l.b16 %v1205
    %v1391 = vunpack.c.h.b16 %v1205
    %v1392 = vunpack.c.l.b16 %v1206
    %v1393 = vunpack.c.h.b16 %v1206
    %v1394 = vunpack.c.l.b16 %v1207
    %v1395 = vunpack.c.h.b16 %v1207
    %v1396 = vunpack.c.l.b16 %v1208
    %v1397 = vunpack.c.h.b16 %v1208
    %v1398 = vunpack.c.l.b16 %v1209
    %v1399 = vunpack.c.h.b16 %v1209
    %v1400 = vunpack.c.l.b16 %v1210
    %v1401 = vunpack.c.h.b16 %v1210
    %v1402 = vunpack.c.l.b16 %v1211
    %v1403 = vunpack.c.h.b16 %v1211
    %v1404 = vunpack.c.l.b16 %v1212
    %v1405 = vunpack.c.h.b16 %v1212
    %v1406 = vunpack.c.l.b16 %v1213
    %v1407 = vunpack.c.h.b16 %v1213
    %v1408 = vunpack.c.l.b16 %v1214
    %v1409 = vunpack.c.h.b16 %v1214
    %v1410 = vunpack.c.l.b16 %v1215
    %v1411 = vunpack.c.h.b16 %v1215
    %v1412 = vpack.c.b16 %v1286, %v1284
    %v1413 = vpack.c.b16 %v1287, %v1285
    %v1414 = vpack.c.b16 %v1290, %v1288
    %v1415 = vpack.c.b16 %v1291, %v1289
    %v1416 = vpack.c.b16 %v1294, %v1292
    %v1417 = vpack.c.b16 %v1295, %v1293
    %v1418 = vpack.c.b16 %v1298, %v1296
    %v1419 = vpack.c.b16 %v1299, %v1297
    %v1420 = vpack.c.b16 %v1302, %v1300
    %v1421 = vpack.c.b16 %v1303, %v1301
    %v1422 = vpack.c.b16 %v1306, %v1304
    %v1423 = vpack.c.b16 %v1307, %v1305
    %v1424 = vpack.c.b16 %v1310, %v1308
    %v1425 = vpack.c.b16 %v1311, %v1309
    %v1426 = vpack.c.b16 %v1314, %v1312
    %v1427 = vpack.c.b16 %v1315, %v1313
    %v1428 = vpack.c.b16 %v1318, %v1316
    %v1429 = vpack.c.b16 %v1319, %v1317
    %v1430 = vpack.c.b16 %v1322, %v1320
    %v1431 = vpack.c.b16 %v1323, %v1321
    %v1432 = vpack.c.b16 %v1326, %v1324
    %v1433 = vpack.c.b16 %v1327, %v1325
    %v1434 = vpack.c.b16 %v1330, %v1328
    %v1435 = vpack.c.b16 %v1331, %v1329
    %v1436 = vpack.c.b16 %v1334, %v1332
    %v1437 = vpack.c.b16 %v1335, %v1333
    %v1438 = vpack.c.b16 %v1338, %v1336
    %v1439 = vpack.c.b16 %v1339, %v1337
    %v1440 = vpack.c.b16 %v1342, %v1340
    %v1441 = vpack.c.b16 %v1343, %v1341
    %v1442 = vpack.c.b16 %v1346, %v1344
    %v1443 = vpack.c.b16 %v1347, %v1345
    %v1444 = vpack.c.b16 %v1350, %v1348
    %v1445 = vpack.c.b16 %v1351, %v1349
    %v1446 = vpack.c.b16 %v1354, %v1352
    %v1447 = vpack.c.b16 %v1355, %v1353
    %v1448 = vpack.c.b16 %v1358, %v1356
    %v1449 = vpack.c.b16 %v1359, %v1357
    %v1450 = vpack.c.b16 %v1362, %v1360
    %v1451 = vpack.c.b16 %v1363, %v1361
    %v1452 = vpack.c.b16 %v1366, %v1364
    %v1453 = vpack.c.b16 %v1367, %v1365
    %v1454 = vpack.c.b16 %v1370, %v1368
    %v1455 = vpack.c.b16 %v1371, %v1369
    %v1456 = vpack.c.b16 %v1374, %v1372
    %v1457 = vpack.c.b16 %v1375, %v1373
    %v1458 = vpack.c.b16 %v1378, %v1376
    %v1459 = vpack.c.b16 %v1379, %v1377
    %v1460 = vpack.c.b16 %v1382, %v1380
    %v1461 = vpack.c.b16 %v1383, %v1381
    %v1462 = vpack.c.b16 %v1386, %v1384
    %v1463 = vpack.c.b16 %v1387, %v1385
    %v1464 = vpack.c.b16 %v1390, %v1388
    %v1465 = vpack.c.b16 %v1391, %v1389
    %v1466 = vpack.c.b16 %v1394, %v1392
    %v1467 = vpack.c.b16 %v1395, %v1393
    %v1468 = vpack.c.b16 %v1398, %v1396
    %v1469 = vpack.c.b16 %v1399, %v1397
    %v1470 = vpack.c.b16 %v1402, %v1400
    %v1471 = vpack.c.b16 %v1403, %v1401
    %v1472 = vpack.c.b16 %v1406, %v1404
    %v1473 = vpack.c.b16 %v1407, %v1405
    %v1474 = vpack.c.b16 %v1410, %v1408
    %v1475 = vpack.c.b16 %v1411, %v1409
    %1540 = vmatprep.subr.bf16.mxu0 %v1413
    %1541 = vmatpush1.bf16.msra.mxu0 %v1412
    %1542 = vmatprep.subr.bf16.mxu0 %v1415
    %1543 = vmatpush1.bf16.msra.mxu0 %v1414
    %1544 = vmatprep.subr.bf16.mxu0 %v1417
    %1545 = vmatpush1.bf16.msra.mxu0 %v1416
    %1546 = vmatprep.subr.bf16.mxu0 %v1419
    %1547 = vmatpush1.bf16.msra.mxu0 %v1418
    %1548 = vmatprep.subr.bf16.mxu0 %v1421
    %1549 = vmatpush1.bf16.msra.mxu0 %v1420
    %1550 = vmatprep.subr.bf16.mxu0 %v1423
    %1551 = vmatpush1.bf16.msra.mxu0 %v1422
    %1552 = vmatprep.subr.bf16.mxu0 %v1425
    %1553 = vmatpush1.bf16.msra.mxu0 %v1424
    %1554 = vmatprep.subr.bf16.mxu0 %v1427
    %1555 = vmatpush1.bf16.msra.mxu0 %v1426
    %1556 = vmatprep.subr.bf16.mxu0 %v1429
    %1557 = vmatpush1.bf16.msra.mxu0 %v1428
    %1558 = vmatprep.subr.bf16.mxu0 %v1431
    %1559 = vmatpush1.bf16.msra.mxu0 %v1430
    %1560 = vmatprep.subr.bf16.mxu0 %v1433
    %1561 = vmatpush1.bf16.msra.mxu0 %v1432
    %1562 = vmatprep.subr.bf16.mxu0 %v1435
    %1563 = vmatpush1.bf16.msra.mxu0 %v1434
    %1564 = vmatprep.subr.bf16.mxu0 %v1437
    %1565 = vmatpush1.bf16.msra.mxu0 %v1436
    %1566 = vmatprep.subr.bf16.mxu0 %v1439
    %1567 = vmatpush1.bf16.msra.mxu0 %v1438
    %1568 = vmatprep.subr.bf16.mxu0 %v1441
    %1569 = vmatpush1.bf16.msra.mxu0 %v1440
    %1570 = vmatprep.subr.bf16.mxu0 %v1443
    %1571 = vmatpush1.bf16.msra.mxu0 %v1442
    %1572 = vmatprep.mubr.bf16.mxu0 %v1217
    %1573 = vmatmul.mubr.bf16.gmra.mrb[0].mxu0 %v1216
    %v1574 = vpop.f32.mrb[0].mxu0
    %v1575 = vadd.f32 0.0, %v1574
    %v1576 = vpop.f32.mrb[0].mxu0
    %v1577 = vadd.f32 0.0, %v1576
    %v1578 = vpop.f32.mrb[0].mxu0
    %v1579 = vpop.f32.mrb[0].mxu0
    %1580 = vdwg.mxu0
    %1581 = vmatprep.subr.bf16.mxu0 %v1445
    %1582 = vmatpush1.bf16.msra.mxu0 %v1444
    %1583 = vmatprep.subr.bf16.mxu0 %v1447
    %1584 = vmatpush1.bf16.msra.mxu0 %v1446
    %1585 = vmatprep.subr.bf16.mxu0 %v1449
    %1586 = vmatpush1.bf16.msra.mxu0 %v1448
    %1587 = vmatprep.subr.bf16.mxu0 %v1451
    %1588 = vmatpush1.bf16.msra.mxu0 %v1450
    %1589 = vmatprep.subr.bf16.mxu0 %v1453
    %1590 = vmatpush1.bf16.msra.mxu0 %v1452
    %1591 = vmatprep.subr.bf16.mxu0 %v1455
    %1592 = vmatpush1.bf16.msra.mxu0 %v1454
    %1593 = vmatprep.subr.bf16.mxu0 %v1457
    %1594 = vmatpush1.bf16.msra.mxu0 %v1456
    %1595 = vmatprep.subr.bf16.mxu0 %v1459
    %1596 = vmatpush1.bf16.msra.mxu0 %v1458
    %1597 = vmatprep.subr.bf16.mxu0 %v1461
    %1598 = vmatpush1.bf16.msra.mxu0 %v1460
    %1599 = vmatprep.subr.bf16.mxu0 %v1463
    %1600 = vmatpush1.bf16.msra.mxu0 %v1462
    %1601 = vmatprep.subr.bf16.mxu0 %v1465
    %1602 = vmatpush1.bf16.msra.mxu0 %v1464
    %1603 = vmatprep.subr.bf16.mxu0 %v1467
    %1604 = vmatpush1.bf16.msra.mxu0 %v1466
    %1605 = vmatprep.subr.bf16.mxu0 %v1469
    %1606 = vmatpush1.bf16.msra.mxu0 %v1468
    %1607 = vmatprep.subr.bf16.mxu0 %v1471
    %1608 = vmatpush1.bf16.msra.mxu0 %v1470
    %1609 = vmatprep.subr.bf16.mxu0 %v1473
    %1610 = vmatpush1.bf16.msra.mxu0 %v1472
    %1611 = vmatprep.subr.bf16.mxu0 %v1475
    %1612 = vmatpush1.bf16.msra.mxu0 %v1474
    %1613 = vmatprep.mubr.bf16.mxu0 %v1219
    %1614 = vmatmul.mubr.bf16.gmra.mrb[0].mxu0 %v1218
    %v1615 = vpop.f32.mrb[0].mxu0
    %v1616 = vadd.f32 %v1575, %v1615
    %v1617 = vpop.f32.mrb[0].mxu0
    %v1618 = vadd.f32 %v1577, %v1617
    %v1619 = vpop.f32.mrb[0].mxu0
    %v1620 = vpop.f32.mrb[0].mxu0
    %1621 = vdwg.mxu0
    %1622 = vmatprep.subr.mxu0 0.0
    %1623 = vmatpush1.msra.mxu0 %v132
    %1624 = vmatprep.subr.mxu0 0.0
    %1625 = vmatpush1.msra.mxu0 %v133
    %1626 = vmatprep.subr.mxu0 0.0
    %1627 = vmatpush1.msra.mxu0 %v134
    %1628 = vmatprep.subr.mxu0 0.0
    %1629 = vmatpush1.msra.mxu0 %v135
    %1630 = vmatprep.subr.mxu0 0.0
    %1631 = vmatpush1.msra.mxu0 %v136
    %1632 = vmatprep.subr.mxu0 0.0
    %1633 = vmatpush1.msra.mxu0 %v137
    %1634 = vmatprep.subr.mxu0 0.0
    %1635 = vmatpush1.msra.mxu0 %v138
    %1636 = vmatprep.subr.mxu0 0.0
    %1637 = vmatpush1.msra.mxu0 %v139
    %1638 = vmatprep.subr.mxu0 0.0
    %1639 = vmatpush1.msra.mxu0 %v140
    %1640 = vmatprep.subr.mxu0 0.0
    %1641 = vmatpush1.msra.mxu0 %v141
    %1642 = vmatprep.subr.mxu0 0.0
    %1643 = vmatpush1.msra.mxu0 %v142
    %1644 = vmatprep.subr.mxu0 0.0
    %1645 = vmatpush1.msra.mxu0 %v143
    %1646 = vmatprep.subr.mxu0 0.0
    %1647 = vmatpush1.msra.mxu0 %v144
    %1648 = vmatprep.subr.mxu0 0.0
    %1649 = vmatpush1.msra.mxu0 %v145
    %1650 = vmatprep.subr.mxu0 0.0
    %1651 = vmatpush1.msra.mxu0 %v146
    %1652 = vmatprep.subr.mxu0 0.0
    %1653 = vmatpush1.msra.mxu0 %v147
    %1654 = vmatprep.subr.mxu0 0.0
    %1655 = vmatpush1.msra.mxu0 %v148
    %1656 = vmatprep.subr.mxu0 0.0
    %1657 = vmatpush1.msra.mxu0 %v149
    %1658 = vmatprep.subr.mxu0 0.0
    %1659 = vmatpush1.msra.mxu0 %v150
    %1660 = vmatprep.subr.mxu0 0.0
    %1661 = vmatpush1.msra.mxu0 %v151
    %1662 = vmatprep.subr.mxu0 0.0
    %1663 = vmatpush1.msra.mxu0 %v152
    %1664 = vmatprep.subr.mxu0 0.0
    %1665 = vmatpush1.msra.mxu0 %v153
    %1666 = vmatprep.subr.mxu0 0.0
    %1667 = vmatpush1.msra.mxu0 %v154
    %1668 = vmatprep.subr.mxu0 0.0
    %1669 = vmatpush1.msra.mxu0 %v155
    %1670 = vmatprep.subr.mxu0 0.0
    %1671 = vmatpush1.msra.mxu0 %v156
    %1672 = vmatprep.subr.mxu0 0.0
    %1673 = vmatpush1.msra.mxu0 %v157
    %1674 = vmatprep.subr.mxu0 0.0
    %1675 = vmatpush1.msra.mxu0 %v158
    %1676 = vmatprep.subr.mxu0 0.0
    %1677 = vmatpush1.msra.mxu0 %v159
    %1678 = vmatprep.subr.mxu0 0.0
    %1679 = vmatpush1.msra.mxu0 %v160
    %1680 = vmatprep.subr.mxu0 0.0
    %1681 = vmatpush1.msra.mxu0 %v161
    %1682 = vmatprep.subr.mxu0 0.0
    %1683 = vmatpush1.msra.mxu0 %v162
    %1684 = vmatprep.subr.mxu0 0.0
    %1685 = vmatpush1.msra.mxu0 %v163
    %1686 = vmatprep.mubr.f32.mxu0 %v1618
    %1687 = vmatmul.mubr.f32.gmra.mrb[0].mxu0 %v1616
    %v1688 = vpop.f32.mrb[0].mxu0
    %v1689 = vadd.f32 0.0, %v1688
    %v1690 = vpop.f32.mrb[0].mxu0
    %1691 = vdwg.mxu0
    %v1692 = vmul.f32 %v1616, %v1616
    %v1693 = vmul.f32 %v1618, %v1618
    %1694 = vmatprep.subr.mxu0 0.0
    %1695 = vmatpush1.msra.mxu0 %v132
    %1696 = vmatprep.subr.mxu0 0.0
    %1697 = vmatpush1.msra.mxu0 %v133
    %1698 = vmatprep.subr.mxu0 0.0
    %1699 = vmatpush1.msra.mxu0 %v134
    %1700 = vmatprep.subr.mxu0 0.0
    %1701 = vmatpush1.msra.mxu0 %v135
    %1702 = vmatprep.subr.mxu0 0.0
    %1703 = vmatpush1.msra.mxu0 %v136
    %1704 = vmatprep.subr.mxu0 0.0
    %1705 = vmatpush1.msra.mxu0 %v137
    %1706 = vmatprep.subr.mxu0 0.0
    %1707 = vmatpush1.msra.mxu0 %v138
    %1708 = vmatprep.subr.mxu0 0.0
    %1709 = vmatpush1.msra.mxu0 %v139
    %1710 = vmatprep.subr.mxu0 0.0
    %1711 = vmatpush1.msra.mxu0 %v140
    %1712 = vmatprep.subr.mxu0 0.0
    %1713 = vmatpush1.msra.mxu0 %v141
    %1714 = vmatprep.subr.mxu0 0.0
    %1715 = vmatpush1.msra.mxu0 %v142
    %1716 = vmatprep.subr.mxu0 0.0
    %1717 = vmatpush1.msra.mxu0 %v143
    %1718 = vmatprep.subr.mxu0 0.0
    %1719 = vmatpush1.msra.mxu0 %v144
    %1720 = vmatprep.subr.mxu0 0.0
    %1721 = vmatpush1.msra.mxu0 %v145
    %1722 = vmatprep.subr.mxu0 0.0
    %1723 = vmatpush1.msra.mxu0 %v146
    %1724 = vmatprep.subr.mxu0 0.0
    %1725 = vmatpush1.msra.mxu0 %v147
    %1726 = vmatprep.subr.mxu0 0.0
    %1727 = vmatpush1.msra.mxu0 %v148
    %1728 = vmatprep.subr.mxu0 0.0
    %1729 = vmatpush1.msra.mxu0 %v149
    %1730 = vmatprep.subr.mxu0 0.0
    %1731 = vmatpush1.msra.mxu0 %v150
    %1732 = vmatprep.subr.mxu0 0.0
    %1733 = vmatpush1.msra.mxu0 %v151
    %1734 = vmatprep.subr.mxu0 0.0
    %1735 = vmatpush1.msra.mxu0 %v152
    %1736 = vmatprep.subr.mxu0 0.0
    %1737 = vmatpush1.msra.mxu0 %v153
    %1738 = vmatprep.subr.mxu0 0.0
    %1739 = vmatpush1.msra.mxu0 %v154
    %1740 = vmatprep.subr.mxu0 0.0
    %1741 = vmatpush1.msra.mxu0 %v155
    %1742 = vmatprep.subr.mxu0 0.0
    %1743 = vmatpush1.msra.mxu0 %v156
    %1744 = vmatprep.subr.mxu0 0.0
    %1745 = vmatpush1.msra.mxu0 %v157
    %1746 = vmatprep.subr.mxu0 0.0
    %1747 = vmatpush1.msra.mxu0 %v158
    %1748 = vmatprep.subr.mxu0 0.0
    %1749 = vmatpush1.msra.mxu0 %v159
    %1750 = vmatprep.subr.mxu0 0.0
    %1751 = vmatpush1.msra.mxu0 %v160
    %1752 = vmatprep.subr.mxu0 0.0
    %1753 = vmatpush1.msra.mxu0 %v161
    %1754 = vmatprep.subr.mxu0 0.0
    %1755 = vmatpush1.msra.mxu0 %v162
    %1756 = vmatprep.subr.mxu0 0.0
    %1757 = vmatpush1.msra.mxu0 %v163
    %1758 = vmatprep.mubr.f32.mxu0 %v1693
    %1759 = vmatmul.mubr.f32.gmra.mrb[0].mxu0 %v1692
    %v1760 = vpop.f32.mrb[0].mxu0
    %v1761 = vadd.f32 0.0, %v1760
    %v1762 = vpop.f32.mrb[0].mxu0
    %1763 = vdwg.mxu0
    %vm1764 = vcmask 123904
    %v1765 = vsel %vm1764, %v1689, 0.0
    %v1766 = vrot.slane %v1765, 4
    %v1767 = vadd.f32 %v1765, %v1766
    %v1768 = vrot.slane %v1767, 2
    %v1769 = vadd.f32 %v1767, %v1768
    %v1770 = vrot.slane %v1769, 1
    %v1771 = vadd.f32 %v1769, %v1770
    %v1772 = vmul.f32 %v1771, 0.5
    %v1773 = vsel %vm1764, %v1761, 0.0
    %v1774 = vrot.slane %v1773, 4
    %v1775 = vadd.f32 %v1773, %v1774
    %v1776 = vrot.slane %v1775, 2
    %v1777 = vadd.f32 %v1775, %v1776
    %v1778 = vrot.slane %v1777, 1
    %v1779 = vadd.f32 %v1777, %v1778
    %v1780 = vmul.f32 %v1779, 0.5
    %v1781 = vmul.f32 %v1772, %v1772
    %v1782 = vsub.f32 %v1780, %v1781
    %v1783 = vmax.f32 %v1782, 0.0
    %v1784 = vadd.f32 %v1783, 1e-05
    %v1785 = vrsqrt.pop %v1784
    %v1786 = vmul.f32 %v61, %v1785
    %v1787 = vmul.f32 %v1772, %v1786
    %v1789 = vrot.slane %v1787, 7
    %v1791 = vsub.f32 %v61, %v1789
    %v1793 = vrot.slane %v1786, 2
    %v1796 = vrot.slane %v1791, 2
    %v1798 = vsel %vm960, %v1793, %v1796
    %vm1799 = vcmask 130048
    %v1801 = vsel %vm1799, %v1798, 0
    %1803 = vmatprep.subr.mxu0 %v165
    %1804 = vmatpush1.msra.mxu0 %v164
    %1805 = vmatprep.subr.mxu0 %v167
    %1806 = vmatpush1.msra.mxu0 %v166
    %1807 = vmatprep.subr.mxu0 0.0
    %1808 = vmatpush1.msra.mxu0 0.0
    %1809 = vmatprep.subr.mxu0 0.0
    %1810 = vmatpush1.msra.mxu0 0.0
    %1811 = vmatprep.subr.mxu0 0.0
    %1812 = vmatpush1.msra.mxu0 0.0
    %1813 = vmatprep.subr.mxu0 0.0
    %1814 = vmatpush1.msra.mxu0 0.0
    %1815 = vmatprep.subr.mxu0 0.0
    %1816 = vmatpush1.msra.mxu0 0.0
    %1817 = vmatprep.subr.mxu0 0.0
    %1818 = vmatpush1.msra.mxu0 0.0
    %1819 = vmatprep.subr.mxu0 0.0
    %1820 = vmatpush1.msra.mxu0 0.0
    %1821 = vmatprep.subr.mxu0 0.0
    %1822 = vmatpush1.msra.mxu0 0.0
    %1823 = vmatprep.subr.mxu0 0.0
    %1824 = vmatpush1.msra.mxu0 0.0
    %1825 = vmatprep.subr.mxu0 0.0
    %1826 = vmatpush1.msra.mxu0 0.0
    %1827 = vmatprep.subr.mxu0 0.0
    %1828 = vmatpush1.msra.mxu0 0.0
    %1829 = vmatprep.subr.mxu0 0.0
    %1830 = vmatpush1.msra.mxu0 0.0
    %1831 = vmatprep.subr.mxu0 0.0
    %1832 = vmatpush1.msra.mxu0 0.0
    %1833 = vmatprep.subr.mxu0 0.0
    %1834 = vmatpush1.msra.mxu0 0.0
    %1835 = vmatprep.subr.mxu0 0.0
    %1836 = vmatpush1.msra.mxu0 0.0
    %1837 = vmatprep.subr.mxu0 0.0
    %1838 = vmatpush1.msra.mxu0 0.0
    %1839 = vmatprep.subr.mxu0 0.0
    %1840 = vmatpush1.msra.mxu0 0.0
    %1841 = vmatprep.subr.mxu0 0.0
    %1842 = vmatpush1.msra.mxu0 0.0
    %1843 = vmatprep.subr.mxu0 0.0
    %1844 = vmatpush1.msra.mxu0 0.0
    %1845 = vmatprep.subr.mxu0 0.0
    %1846 = vmatpush1.msra.mxu0 0.0
    %1847 = vmatprep.subr.mxu0 0.0
    %1848 = vmatpush1.msra.mxu0 0.0
    %1849 = vmatprep.subr.mxu0 0.0
    %1850 = vmatpush1.msra.mxu0 0.0
    %1851 = vmatprep.subr.mxu0 0.0
    %1852 = vmatpush1.msra.mxu0 0.0
    %1853 = vmatprep.subr.mxu0 0.0
    %1854 = vmatpush1.msra.mxu0 0.0
    %1855 = vmatprep.subr.mxu0 0.0
    %1856 = vmatpush1.msra.mxu0 0.0
    %1857 = vmatprep.subr.mxu0 0.0
    %1858 = vmatpush1.msra.mxu0 0.0
    %1859 = vmatprep.subr.mxu0 0.0
    %1860 = vmatpush1.msra.mxu0 0.0
    %1861 = vmatprep.subr.mxu0 0.0
    %1862 = vmatpush1.msra.mxu0 0.0
    %1863 = vmatprep.subr.mxu0 0.0
    %1864 = vmatpush1.msra.mxu0 0.0
    %1865 = vmatprep.subr.mxu0 0.0
    %1866 = vmatpush1.msra.mxu0 0.0
    %1867 = vmatprep.mubr.f32.mxu0 0.0
    %1868 = vmatmul.mubr.f32.gmra.mrb[0].mxu0 %v1801
    %v1869 = vpop.f32.mrb[0].mxu0
    %v1870 = vadd.f32 0.0, %v1869
    %v1871 = vpop.f32.mrb[0].mxu0
    %v1872 = vadd.f32 0.0, %v1871
    %1873 = vdwg.mxu0
    %v1874 = vlaneseq
    %v1875 = vshrl.u32 %v1874, 7
    %v1876 = vsub.s32 0, %v1875
    %v1877 = vrot.slane %v1870, %v1876
    %v1878 = vlaneseq
    %v1879 = vshrl.u32 %v1878, 7
    %v1880 = vsub.s32 0, %v1879
    %v1881 = vrot.slane %v1872, %v1880
    %v1882 = vmul.f32 %v1616, %v1877
    %v1883 = vmul.f32 %v1618, %v1881
    %v1884 = vlaneseq
    %v1885 = vshrl.u32 %v1884, 7
    %v1886 = vsub.s32 1, %v1885
    %v1887 = vrot.slane %v1870, %v1886
    %v1888 = vlaneseq
    %v1889 = vshrl.u32 %v1888, 7
    %v1890 = vsub.s32 1, %v1889
    %v1891 = vrot.slane %v1872, %v1890
    %v1892 = vadd.f32 %v1882, %v1887
    %v1893 = vadd.f32 %v1883, %v1891
    %v1894 = vmax.f32 %v1892, 0.0
    %v1895 = vmax.f32 %v1893, 0.0
    %v1896 = vld [vmem:[%s3] sm:$0xf]
    %v1897 = vld [vmem:[%s3 + $0x4] sm:$0xf]
    %v1898 = vld [vmem:[%s3 + $0x8] sm:$0xf]
    %v1899 = vld [vmem:[%s3 + $0xc] sm:$0xf]
    %v1900 = vld [vmem:[%s3 + $0x10] sm:$0xf]
    %v1901 = vld [vmem:[%s3 + $0x14] sm:$0xf]
    %v1902 = vld [vmem:[%s3 + $0x18] sm:$0xf]
    %v1903 = vld [vmem:[%s3 + $0x1c] sm:$0xf]
    %v1904 = vld [vmem:[%s3 + $0x20] sm:$0xf]
    %v1905 = vld [vmem:[%s3 + $0x24] sm:$0xf]
    %v1906 = vld [vmem:[%s3 + $0x28] sm:$0xf]
    %v1907 = vld [vmem:[%s3 + $0x2c] sm:$0xf]
    %v1908 = vld [vmem:[%s3 + $0x30] sm:$0xf]
    %v1909 = vld [vmem:[%s3 + $0x34] sm:$0xf]
    %v1910 = vld [vmem:[%s3 + $0x38] sm:$0xf]
    %v1911 = vld [vmem:[%s3 + $0x3c] sm:$0xf]
    %v1912 = vld [vmem:[%s3 + $0x40] sm:$0xf]
    %v1913 = vld [vmem:[%s3 + $0x44] sm:$0xf]
    %v1914 = vld [vmem:[%s3 + $0x48] sm:$0xf]
    %v1915 = vld [vmem:[%s3 + $0x4c] sm:$0xf]
    %v1916 = vld [vmem:[%s3 + $0x50] sm:$0xf]
    %v1917 = vld [vmem:[%s3 + $0x54] sm:$0xf]
    %v1918 = vld [vmem:[%s3 + $0x58] sm:$0xf]
    %v1919 = vld [vmem:[%s3 + $0x5c] sm:$0xf]
    %v1920 = vld [vmem:[%s3 + $0x60] sm:$0xf]
    %v1921 = vld [vmem:[%s3 + $0x64] sm:$0xf]
    %v1922 = vld [vmem:[%s3 + $0x68] sm:$0xf]
    %v1923 = vld [vmem:[%s3 + $0x6c] sm:$0xf]
    %v1924 = vld [vmem:[%s3 + $0x70] sm:$0xf]
    %v1925 = vld [vmem:[%s3 + $0x74] sm:$0xf]
    %v1926 = vld [vmem:[%s3 + $0x78] sm:$0xf]
    %v1927 = vld [vmem:[%s3 + $0x7c] sm:$0xf]
    %v1928 = vpack.c.bf16 %v1894, %v1894
    %v1929 = vpack.c.bf16 %v1895, %v1895
    %v1962 = vunpack.c.l.b16 %v1896
    %v1963 = vunpack.c.l.b16 %v1897
    %v1964 = vunpack.c.l.b16 %v1898
    %v1965 = vunpack.c.l.b16 %v1899
    %v1966 = vunpack.c.l.b16 %v1900
    %v1967 = vunpack.c.l.b16 %v1901
    %v1968 = vunpack.c.l.b16 %v1902
    %v1969 = vunpack.c.l.b16 %v1903
    %v1970 = vunpack.c.l.b16 %v1904
    %v1971 = vunpack.c.l.b16 %v1905
    %v1972 = vunpack.c.l.b16 %v1906
    %v1973 = vunpack.c.l.b16 %v1907
    %v1974 = vunpack.c.l.b16 %v1908
    %v1975 = vunpack.c.l.b16 %v1909
    %v1976 = vunpack.c.l.b16 %v1910
    %v1977 = vunpack.c.l.b16 %v1911
    %v1978 = vunpack.c.l.b16 %v1912
    %v1979 = vunpack.c.l.b16 %v1913
    %v1980 = vunpack.c.l.b16 %v1914
    %v1981 = vunpack.c.l.b16 %v1915
    %v1982 = vunpack.c.l.b16 %v1916
    %v1983 = vunpack.c.l.b16 %v1917
    %v1984 = vunpack.c.l.b16 %v1918
    %v1985 = vunpack.c.l.b16 %v1919
    %v1986 = vunpack.c.l.b16 %v1920
    %v1987 = vunpack.c.l.b16 %v1921
    %v1988 = vunpack.c.l.b16 %v1922
    %v1989 = vunpack.c.l.b16 %v1923
    %v1990 = vunpack.c.l.b16 %v1924
    %v1991 = vunpack.c.l.b16 %v1925
    %v1992 = vunpack.c.l.b16 %v1926
    %v1993 = vunpack.c.l.b16 %v1927
    %v1994 = vpack.c.b16 %v1963, %v1962
    %v1995 = vpack.c.b16 %v1965, %v1964
    %v1996 = vpack.c.b16 %v1967, %v1966
    %v1997 = vpack.c.b16 %v1969, %v1968
    %v1998 = vpack.c.b16 %v1971, %v1970
    %v1999 = vpack.c.b16 %v1973, %v1972
    %v2000 = vpack.c.b16 %v1975, %v1974
    %v2001 = vpack.c.b16 %v1977, %v1976
    %v2002 = vpack.c.b16 %v1979, %v1978
    %v2003 = vpack.c.b16 %v1981, %v1980
    %v2004 = vpack.c.b16 %v1983, %v1982
    %v2005 = vpack.c.b16 %v1985, %v1984
    %v2006 = vpack.c.b16 %v1987, %v1986
    %v2007 = vpack.c.b16 %v1989, %v1988
    %v2008 = vpack.c.b16 %v1991, %v1990
    %v2009 = vpack.c.b16 %v1993, %v1992
    %2026 = vmatprep.subr.bf16.mxu0 0
    %2027 = vmatpush1.bf16.msra.mxu0 %v1994
    %2028 = vmatprep.subr.bf16.mxu0 0
    %2029 = vmatpush1.bf16.msra.mxu0 %v1995
    %2030 = vmatprep.subr.bf16.mxu0 0
    %2031 = vmatpush1.bf16.msra.mxu0 %v1996
    %2032 = vmatprep.subr.bf16.mxu0 0
    %2033 = vmatpush1.bf16.msra.mxu0 %v1997
    %2034 = vmatprep.subr.bf16.mxu0 0
    %2035 = vmatpush1.bf16.msra.mxu0 %v1998
    %2036 = vmatprep.subr.bf16.mxu0 0
    %2037 = vmatpush1.bf16.msra.mxu0 %v1999
    %2038 = vmatprep.subr.bf16.mxu0 0
    %2039 = vmatpush1.bf16.msra.mxu0 %v2000
    %2040 = vmatprep.subr.bf16.mxu0 0
    %2041 = vmatpush1.bf16.msra.mxu0 %v2001
    %2042 = vmatprep.subr.bf16.mxu0 0
    %2043 = vmatpush1.bf16.msra.mxu0 %v2002
    %2044 = vmatprep.subr.bf16.mxu0 0
    %2045 = vmatpush1.bf16.msra.mxu0 %v2003
    %2046 = vmatprep.subr.bf16.mxu0 0
    %2047 = vmatpush1.bf16.msra.mxu0 %v2004
    %2048 = vmatprep.subr.bf16.mxu0 0
    %2049 = vmatpush1.bf16.msra.mxu0 %v2005
    %2050 = vmatprep.subr.bf16.mxu0 0
    %2051 = vmatpush1.bf16.msra.mxu0 %v2006
    %2052 = vmatprep.subr.bf16.mxu0 0
    %2053 = vmatpush1.bf16.msra.mxu0 %v2007
    %2054 = vmatprep.subr.bf16.mxu0 0
    %2055 = vmatpush1.bf16.msra.mxu0 %v2008
    %2056 = vmatprep.subr.bf16.mxu0 0
    %2057 = vmatpush1.bf16.msra.mxu0 %v2009
    %2058 = vmatprep.mubr.bf16.mxu0 %v1929
    %2059 = vmatmul.mubr.bf16.gmra.mrb[0].mxu0 %v1928
    %v2060 = vpop.f32.mrb[0].mxu0
    %v2061 = vadd.f32 0.0, %v2060
    %v2062 = vpop.f32.mrb[0].mxu0
    %v2063 = vpop.f32.mrb[0].mxu0
    %v2064 = vpop.f32.mrb[0].mxu0
    %2065 = vdwg.mxu0
    %vm2066 = vcmask 1041408
    %v2067 = vsel %vm2066, %v2061, 0.0
    %v2068 = vrot.slane %v2067, 4
    %v2069 = vadd.f32 %v2067, %v2068
    %v2070 = vrot.slane %v2069, 2
    %v2071 = vadd.f32 %v2069, %v2070
    %v2072 = vrot.slane %v2071, 1
    %v2073 = vadd.f32 %v2071, %v2072
    %v2074 = vmul.f32 %v2073, 0.5
    %v2075 = vmul.f32 %v2061, %v2061
    %v2076 = vsel %vm2066, %v2075, 0.0
    %v2077 = vrot.slane %v2076, 4
    %v2078 = vadd.f32 %v2076, %v2077
    %v2079 = vrot.slane %v2078, 2
    %v2080 = vadd.f32 %v2078, %v2079
    %v2081 = vrot.slane %v2080, 1
    %v2082 = vadd.f32 %v2080, %v2081
    %v2083 = vmul.f32 %v2082, 0.5
    %v2084 = vmul.f32 %v2074, %v2074
    %v2085 = vsub.f32 %v2083, %v2084
    %v2086 = vmax.f32 %v2085, 0.0
    %v2087 = vadd.f32 %v2086, 1e-05
    %v2088 = vrsqrt.pop %v2087
    %v2089 = vmul.f32 %v61, %v2088
    %v2090 = vlaneseq
    %v2091 = vshrl.u32 %v2090, 7
    %v2092 = vsub.s32 4, %v2091
    %v2093 = vrot.slane %v2089, %v2092
    %v2094 = vmul.f32 %v2061, %v2093
    %v2095 = vmul.f32 %v2074, %v2089
    %v2097 = vrot.slane %v2095, 7
    %v2099 = vsub.f32 %v61, %v2097
    %v2100 = vlaneseq
    %v2101 = vshrl.u32 %v2100, 7
    %v2102 = vsub.s32 5, %v2101
    %v2103 = vrot.slane %v2099, %v2102
    %v2104 = vadd.f32 %v2094, %v2103
    %v2105 = vmax.f32 %v2104, 0.0
    %v2106 = vld [vmem:[%s3 + $0x80] sm:$0xf]
    %v2107 = vld [vmem:[%s3 + $0x84] sm:$0xf]
    %v2108 = vld [vmem:[%s3 + $0x88] sm:$0xf]
    %v2109 = vld [vmem:[%s3 + $0x8c] sm:$0xf]
    %v2110 = vld [vmem:[%s3 + $0x90] sm:$0xf]
    %v2111 = vld [vmem:[%s3 + $0x94] sm:$0xf]
    %v2112 = vld [vmem:[%s3 + $0x98] sm:$0xf]
    %v2113 = vld [vmem:[%s3 + $0x9c] sm:$0xf]
    %v2114 = vld [vmem:[%s3 + $0xa0] sm:$0xf]
    %v2115 = vld [vmem:[%s3 + $0xa4] sm:$0xf]
    %v2116 = vld [vmem:[%s3 + $0xa8] sm:$0xf]
    %v2117 = vld [vmem:[%s3 + $0xac] sm:$0xf]
    %v2118 = vld [vmem:[%s3 + $0xb0] sm:$0xf]
    %v2119 = vld [vmem:[%s3 + $0xb4] sm:$0xf]
    %v2120 = vld [vmem:[%s3 + $0xb8] sm:$0xf]
    %v2121 = vld [vmem:[%s3 + $0xbc] sm:$0xf]
    %v2122 = vpack.c.bf16 %v2105, %v2105
    %v2123 = vlaneseq
    %v2124 = vshrl.u32 %v2123, 7
    %v2125 = vsub.s32 4, %v2124
    %v2126 = vrot.slane %v62, %v2125
    %v2143 = vunpack.c.l.b16 %v2106
    %v2144 = vunpack.c.l.b16 %v2107
    %v2145 = vunpack.c.l.b16 %v2108
    %v2146 = vunpack.c.l.b16 %v2109
    %v2147 = vunpack.c.l.b16 %v2110
    %v2148 = vunpack.c.l.b16 %v2111
    %v2149 = vunpack.c.l.b16 %v2112
    %v2150 = vunpack.c.l.b16 %v2113
    %v2151 = vunpack.c.l.b16 %v2114
    %v2152 = vunpack.c.l.b16 %v2115
    %v2153 = vunpack.c.l.b16 %v2116
    %v2154 = vunpack.c.l.b16 %v2117
    %v2155 = vunpack.c.l.b16 %v2118
    %v2156 = vunpack.c.l.b16 %v2119
    %v2157 = vunpack.c.l.b16 %v2120
    %v2158 = vunpack.c.l.b16 %v2121
    %v2159 = vpack.c.b16 %v2144, %v2143
    %v2160 = vpack.c.b16 %v2146, %v2145
    %v2161 = vpack.c.b16 %v2148, %v2147
    %v2162 = vpack.c.b16 %v2150, %v2149
    %v2163 = vpack.c.b16 %v2152, %v2151
    %v2164 = vpack.c.b16 %v2154, %v2153
    %v2165 = vpack.c.b16 %v2156, %v2155
    %v2166 = vpack.c.b16 %v2158, %v2157
    %2175 = vmatprep.subr.bf16.mxu0 0
    %2176 = vmatpush1.bf16.msra.mxu0 %v2159
    %2177 = vmatprep.subr.bf16.mxu0 0
    %2178 = vmatpush1.bf16.msra.mxu0 %v2160
    %2179 = vmatprep.subr.bf16.mxu0 0
    %2180 = vmatpush1.bf16.msra.mxu0 %v2161
    %2181 = vmatprep.subr.bf16.mxu0 0
    %2182 = vmatpush1.bf16.msra.mxu0 %v2162
    %2183 = vmatprep.subr.bf16.mxu0 0
    %2184 = vmatpush1.bf16.msra.mxu0 %v2163
    %2185 = vmatprep.subr.bf16.mxu0 0
    %2186 = vmatpush1.bf16.msra.mxu0 %v2164
    %2187 = vmatprep.subr.bf16.mxu0 0
    %2188 = vmatpush1.bf16.msra.mxu0 %v2165
    %2189 = vmatprep.subr.bf16.mxu0 0
    %2190 = vmatpush1.bf16.msra.mxu0 %v2166
    %2191 = vmatprep.subr.bf16.mxu0 0
    %2192 = vmatpush1.bf16.msra.mxu0 0
    %2193 = vmatprep.subr.bf16.mxu0 0
    %2194 = vmatpush1.bf16.msra.mxu0 0
    %2195 = vmatprep.subr.bf16.mxu0 0
    %2196 = vmatpush1.bf16.msra.mxu0 0
    %2197 = vmatprep.subr.bf16.mxu0 0
    %2198 = vmatpush1.bf16.msra.mxu0 0
    %2199 = vmatprep.subr.bf16.mxu0 0
    %2200 = vmatpush1.bf16.msra.mxu0 0
    %2201 = vmatprep.subr.bf16.mxu0 0
    %2202 = vmatpush1.bf16.msra.mxu0 0
    %2203 = vmatprep.subr.bf16.mxu0 0
    %2204 = vmatpush1.bf16.msra.mxu0 0
    %2205 = vmatprep.subr.bf16.mxu0 0
    %2206 = vmatpush1.bf16.msra.mxu0 0
    %2207 = vmatprep.mubr.bf16.mxu0 0
    %2208 = vmatmul.mubr.bf16.gmra.mrb[0].mxu0 %v2122
    %v2209 = vpop.f32.mrb[0].mxu0
    %v2210 = vadd.f32 %v2126, %v2209
    %v2211 = vpop.f32.mrb[0].mxu0
    %v2212 = vpop.f32.mrb[0].mxu0
    %v2213 = vpop.f32.mrb[0].mxu0
    %2214 = vdwg.mxu0
    %v2215 = vld [vmem:[%s3 + $0xc0] sm:$0xf]
    %v2216 = vld [vmem:[%s3 + $0xc4] sm:$0xf]
    %v2217 = vld [vmem:[%s3 + $0xc8] sm:$0xf]
    %v2218 = vld [vmem:[%s3 + $0xcc] sm:$0xf]
    %v2219 = vld [vmem:[%s3 + $0xd0] sm:$0xf]
    %v2220 = vld [vmem:[%s3 + $0xd4] sm:$0xf]
    %v2221 = vld [vmem:[%s3 + $0xd8] sm:$0xf]
    %v2222 = vld [vmem:[%s3 + $0xdc] sm:$0xf]
    %v2223 = vld [vmem:[%s3 + $0xe0] sm:$0xf]
    %v2224 = vld [vmem:[%s3 + $0xe4] sm:$0xf]
    %v2225 = vld [vmem:[%s3 + $0xe8] sm:$0xf]
    %v2226 = vld [vmem:[%s3 + $0xec] sm:$0xf]
    %v2227 = vld [vmem:[%s3 + $0xf0] sm:$0xf]
    %v2228 = vld [vmem:[%s3 + $0xf4] sm:$0xf]
    %v2229 = vld [vmem:[%s3 + $0xf8] sm:$0xf]
    %v2230 = vld [vmem:[%s3 + $0xfc] sm:$0xf]
    %v2231 = vpack.c.bf16 %v2210, %v2210
    %v2248 = vunpack.c.l.b16 %v2215
    %v2249 = vunpack.c.l.b16 %v2216
    %v2250 = vunpack.c.l.b16 %v2217
    %v2251 = vunpack.c.l.b16 %v2218
    %v2252 = vunpack.c.l.b16 %v2219
    %v2253 = vunpack.c.l.b16 %v2220
    %v2254 = vunpack.c.l.b16 %v2221
    %v2255 = vunpack.c.l.b16 %v2222
    %v2256 = vunpack.c.l.b16 %v2223
    %v2257 = vunpack.c.l.b16 %v2224
    %v2258 = vunpack.c.l.b16 %v2225
    %v2259 = vunpack.c.l.b16 %v2226
    %v2260 = vunpack.c.l.b16 %v2227
    %v2261 = vunpack.c.l.b16 %v2228
    %v2262 = vunpack.c.l.b16 %v2229
    %v2263 = vunpack.c.l.b16 %v2230
    %v2264 = vpack.c.b16 %v2249, %v2248
    %v2265 = vpack.c.b16 %v2251, %v2250
    %v2266 = vpack.c.b16 %v2253, %v2252
    %v2267 = vpack.c.b16 %v2255, %v2254
    %v2268 = vpack.c.b16 %v2257, %v2256
    %v2269 = vpack.c.b16 %v2259, %v2258
    %v2270 = vpack.c.b16 %v2261, %v2260
    %v2271 = vpack.c.b16 %v2263, %v2262
    %2280 = vmatprep.subr.bf16.mxu0 0
    %2281 = vmatpush1.bf16.msra.mxu0 %v2264
    %2282 = vmatprep.subr.bf16.mxu0 0
    %2283 = vmatpush1.bf16.msra.mxu0 %v2265
    %2284 = vmatprep.subr.bf16.mxu0 0
    %2285 = vmatpush1.bf16.msra.mxu0 %v2266
    %2286 = vmatprep.subr.bf16.mxu0 0
    %2287 = vmatpush1.bf16.msra.mxu0 %v2267
    %2288 = vmatprep.subr.bf16.mxu0 0
    %2289 = vmatpush1.bf16.msra.mxu0 %v2268
    %2290 = vmatprep.subr.bf16.mxu0 0
    %2291 = vmatpush1.bf16.msra.mxu0 %v2269
    %2292 = vmatprep.subr.bf16.mxu0 0
    %2293 = vmatpush1.bf16.msra.mxu0 %v2270
    %2294 = vmatprep.subr.bf16.mxu0 0
    %2295 = vmatpush1.bf16.msra.mxu0 %v2271
    %2296 = vmatprep.subr.bf16.mxu0 0
    %2297 = vmatpush1.bf16.msra.mxu0 0
    %2298 = vmatprep.subr.bf16.mxu0 0
    %2299 = vmatpush1.bf16.msra.mxu0 0
    %2300 = vmatprep.subr.bf16.mxu0 0
    %2301 = vmatpush1.bf16.msra.mxu0 0
    %2302 = vmatprep.subr.bf16.mxu0 0
    %2303 = vmatpush1.bf16.msra.mxu0 0
    %2304 = vmatprep.subr.bf16.mxu0 0
    %2305 = vmatpush1.bf16.msra.mxu0 0
    %2306 = vmatprep.subr.bf16.mxu0 0
    %2307 = vmatpush1.bf16.msra.mxu0 0
    %2308 = vmatprep.subr.bf16.mxu0 0
    %2309 = vmatpush1.bf16.msra.mxu0 0
    %2310 = vmatprep.subr.bf16.mxu0 0
    %2311 = vmatpush1.bf16.msra.mxu0 0
    %2312 = vmatprep.mubr.bf16.mxu0 0
    %2313 = vmatmul.mubr.bf16.gmra.mrb[0].mxu0 %v2231
    %v2314 = vpop.f32.mrb[0].mxu0
    %v2315 = vadd.f32 0.0, %v2314
    %v2316 = vpop.f32.mrb[0].mxu0
    %v2317 = vpop.f32.mrb[0].mxu0
    %v2318 = vpop.f32.mrb[0].mxu0
    %2319 = vdwg.mxu0
    %v2320 = vsel %vm2066, %v2315, 0.0
    %v2321 = vrot.slane %v2320, 4
    %v2322 = vadd.f32 %v2320, %v2321
    %v2323 = vrot.slane %v2322, 2
    %v2324 = vadd.f32 %v2322, %v2323
    %v2325 = vrot.slane %v2324, 1
    %v2326 = vadd.f32 %v2324, %v2325
    %v2327 = vmul.f32 %v2326, 0.5
    %v2328 = vmul.f32 %v2315, %v2315
    %v2329 = vsel %vm2066, %v2328, 0.0
    %v2330 = vrot.slane %v2329, 4
    %v2331 = vadd.f32 %v2329, %v2330
    %v2332 = vrot.slane %v2331, 2
    %v2333 = vadd.f32 %v2331, %v2332
    %v2334 = vrot.slane %v2333, 1
    %v2335 = vadd.f32 %v2333, %v2334
    %v2336 = vmul.f32 %v2335, 0.5
    %v2337 = vmul.f32 %v2327, %v2327
    %v2338 = vsub.f32 %v2336, %v2337
    %v2339 = vmax.f32 %v2338, 0.0
    %v2340 = vadd.f32 %v2339, 1e-05
    %v2341 = vrsqrt.pop %v2340
    %v2342 = vmul.f32 %v61, %v2341
    %v2343 = vlaneseq
    %v2344 = vshrl.u32 %v2343, 7
    %v2345 = vsub.s32 6, %v2344
    %v2346 = vrot.slane %v2342, %v2345
    %v2347 = vmul.f32 %v2315, %v2346
    %v2348 = vmul.f32 %v2327, %v2342
    %v2350 = vrot.slane %v2348, 7
    %v2352 = vsub.f32 %v61, %v2350
    %v2353 = vlaneseq
    %v2354 = vshrl.u32 %v2353, 7
    %v2355 = vsub.s32 7, %v2354
    %v2356 = vrot.slane %v2352, %v2355
    %v2357 = vadd.f32 %v2347, %v2356
    %vm2358 = vcmp.ge.f32.partialorder %v2357, 0.0
    %v2359 = vmul.f32 %v2357, 0.01
    %v2360 = vsel %vm2358, %v2357, %v2359
    %v2361 = vld [vmem:[#allocation4 + $0x400] sm:$0xff]
    %v2362 = vld [vmem:[#allocation4 + $0x408] sm:$0xff]
    %v2363 = vld [vmem:[#allocation4 + $0x410] sm:$0xff]
    %v2364 = vld [vmem:[#allocation4 + $0x418] sm:$0xff]
    %v2365 = vld [vmem:[#allocation4 + $0x420] sm:$0xff]
    %v2366 = vld [vmem:[#allocation4 + $0x428] sm:$0xff]
    %v2367 = vld [vmem:[#allocation4 + $0x430] sm:$0xff]
    %v2368 = vld [vmem:[#allocation4 + $0x438] sm:$0xff]
    %v2369 = vld [vmem:[#allocation4 + $0x440] sm:$0xff]
    %v2370 = vld [vmem:[#allocation4 + $0x448] sm:$0xff]
    %v2371 = vld [vmem:[#allocation4 + $0x450] sm:$0xff]
    %v2372 = vld [vmem:[#allocation4 + $0x458] sm:$0xff]
    %v2373 = vld [vmem:[#allocation4 + $0x460] sm:$0xff]
    %v2374 = vld [vmem:[#allocation4 + $0x468] sm:$0xff]
    %v2375 = vld [vmem:[#allocation4 + $0x470] sm:$0xff]
    %v2376 = vld [vmem:[#allocation4 + $0x478] sm:$0xff]
    %v2377 = vpack.c.bf16 %v2360, %v2360
    %v2394 = vunpack.c.l.b16 %v2361
    %v2395 = vunpack.c.h.b16 %v2361
    %v2396 = vunpack.c.l.b16 %v2362
    %v2397 = vunpack.c.h.b16 %v2362
    %v2398 = vunpack.c.l.b16 %v2363
    %v2399 = vunpack.c.h.b16 %v2363
    %v2400 = vunpack.c.l.b16 %v2364
    %v2401 = vunpack.c.h.b16 %v2364
    %v2402 = vunpack.c.l.b16 %v2365
    %v2403 = vunpack.c.h.b16 %v2365
    %v2404 = vunpack.c.l.b16 %v2366
    %v2405 = vunpack.c.h.b16 %v2366
    %v2406 = vunpack.c.l.b16 %v2367
    %v2407 = vunpack.c.h.b16 %v2367
    %v2408 = vunpack.c.l.b16 %v2368
    %v2409 = vunpack.c.h.b16 %v2368
    %v2410 = vunpack.c.l.b16 %v2369
    %v2411 = vunpack.c.h.b16 %v2369
    %v2412 = vunpack.c.l.b16 %v2370
    %v2413 = vunpack.c.h.b16 %v2370
    %v2414 = vunpack.c.l.b16 %v2371
    %v2415 = vunpack.c.h.b16 %v2371
    %v2416 = vunpack.c.l.b16 %v2372
    %v2417 = vunpack.c.h.b16 %v2372
    %v2418 = vunpack.c.l.b16 %v2373
    %v2419 = vunpack.c.h.b16 %v2373
    %v2420 = vunpack.c.l.b16 %v2374
    %v2421 = vunpack.c.h.b16 %v2374
    %v2422 = vunpack.c.l.b16 %v2375
    %v2423 = vunpack.c.h.b16 %v2375
    %v2424 = vunpack.c.l.b16 %v2376
    %v2425 = vunpack.c.h.b16 %v2376
    %v2426 = vpack.c.b16 %v2396, %v2394
    %v2427 = vpack.c.b16 %v2397, %v2395
    %v2428 = vpack.c.b16 %v2400, %v2398
    %v2429 = vpack.c.b16 %v2401, %v2399
    %v2430 = vpack.c.b16 %v2404, %v2402
    %v2431 = vpack.c.b16 %v2405, %v2403
    %v2432 = vpack.c.b16 %v2408, %v2406
    %v2433 = vpack.c.b16 %v2409, %v2407
    %v2434 = vpack.c.b16 %v2412, %v2410
    %v2435 = vpack.c.b16 %v2413, %v2411
    %v2436 = vpack.c.b16 %v2416, %v2414
    %v2437 = vpack.c.b16 %v2417, %v2415
    %v2438 = vpack.c.b16 %v2420, %v2418
    %v2439 = vpack.c.b16 %v2421, %v2419
    %v2440 = vpack.c.b16 %v2424, %v2422
    %v2441 = vpack.c.b16 %v2425, %v2423
    %2458 = vmatprep.subr.bf16.mxu0 %v2427
    %2459 = vmatpush1.bf16.msra.mxu0 %v2426
    %2460 = vmatprep.subr.bf16.mxu0 %v2429
    %2461 = vmatpush1.bf16.msra.mxu0 %v2428
    %2462 = vmatprep.subr.bf16.mxu0 %v2431
    %2463 = vmatpush1.bf16.msra.mxu0 %v2430
    %2464 = vmatprep.subr.bf16.mxu0 %v2433
    %2465 = vmatpush1.bf16.msra.mxu0 %v2432
    %2466 = vmatprep.subr.bf16.mxu0 %v2435
    %2467 = vmatpush1.bf16.msra.mxu0 %v2434
    %2468 = vmatprep.subr.bf16.mxu0 %v2437
    %2469 = vmatpush1.bf16.msra.mxu0 %v2436
    %2470 = vmatprep.subr.bf16.mxu0 %v2439
    %2471 = vmatpush1.bf16.msra.mxu0 %v2438
    %2472 = vmatprep.subr.bf16.mxu0 %v2441
    %2473 = vmatpush1.bf16.msra.mxu0 %v2440
    %2474 = vmatprep.subr.bf16.mxu0 0
    %2475 = vmatpush1.bf16.msra.mxu0 0
    %2476 = vmatprep.subr.bf16.mxu0 0
    %2477 = vmatpush1.bf16.msra.mxu0 0
    %2478 = vmatprep.subr.bf16.mxu0 0
    %2479 = vmatpush1.bf16.msra.mxu0 0
    %2480 = vmatprep.subr.bf16.mxu0 0
    %2481 = vmatpush1.bf16.msra.mxu0 0
    %2482 = vmatprep.subr.bf16.mxu0 0
    %2483 = vmatpush1.bf16.msra.mxu0 0
    %2484 = vmatprep.subr.bf16.mxu0 0
    %2485 = vmatpush1.bf16.msra.mxu0 0
    %2486 = vmatprep.subr.bf16.mxu0 0
    %2487 = vmatpush1.bf16.msra.mxu0 0
    %2488 = vmatprep.subr.bf16.mxu0 0
    %2489 = vmatpush1.bf16.msra.mxu0 0
    %2490 = vmatprep.mubr.bf16.mxu0 0
    %2491 = vmatmul.mubr.bf16.gmra.mrb[0].mxu0 %v2377
    %v2492 = vpop.f32.mrb[0].mxu0
    %v2493 = vadd.f32 0.0, %v2492
    %v2494 = vpop.f32.mrb[0].mxu0
    %v2495 = vadd.f32 0.0, %v2494
    %v2496 = vpop.f32.mrb[0].mxu0
    %v2497 = vpop.f32.mrb[0].mxu0
    %2498 = vdwg.mxu0
    %2499 = vmatprep.subr.mxu0 0.0
    %2500 = vmatpush1.msra.mxu0 %v132
    %2501 = vmatprep.subr.mxu0 0.0
    %2502 = vmatpush1.msra.mxu0 %v133
    %2503 = vmatprep.subr.mxu0 0.0
    %2504 = vmatpush1.msra.mxu0 %v134
    %2505 = vmatprep.subr.mxu0 0.0
    %2506 = vmatpush1.msra.mxu0 %v135
    %2507 = vmatprep.subr.mxu0 0.0
    %2508 = vmatpush1.msra.mxu0 %v136
    %2509 = vmatprep.subr.mxu0 0.0
    %2510 = vmatpush1.msra.mxu0 %v137
    %2511 = vmatprep.subr.mxu0 0.0
    %2512 = vmatpush1.msra.mxu0 %v138
    %2513 = vmatprep.subr.mxu0 0.0
    %2514 = vmatpush1.msra.mxu0 %v139
    %2515 = vmatprep.subr.mxu0 0.0
    %2516 = vmatpush1.msra.mxu0 %v140
    %2517 = vmatprep.subr.mxu0 0.0
    %2518 = vmatpush1.msra.mxu0 %v141
    %2519 = vmatprep.subr.mxu0 0.0
    %2520 = vmatpush1.msra.mxu0 %v142
    %2521 = vmatprep.subr.mxu0 0.0
    %2522 = vmatpush1.msra.mxu0 %v143
    %2523 = vmatprep.subr.mxu0 0.0
    %2524 = vmatpush1.msra.mxu0 %v144
    %2525 = vmatprep.subr.mxu0 0.0
    %2526 = vmatpush1.msra.mxu0 %v145
    %2527 = vmatprep.subr.mxu0 0.0
    %2528 = vmatpush1.msra.mxu0 %v146
    %2529 = vmatprep.subr.mxu0 0.0
    %2530 = vmatpush1.msra.mxu0 %v147
    %2531 = vmatprep.subr.mxu0 0.0
    %2532 = vmatpush1.msra.mxu0 %v148
    %2533 = vmatprep.subr.mxu0 0.0
    %2534 = vmatpush1.msra.mxu0 %v149
    %2535 = vmatprep.subr.mxu0 0.0
    %2536 = vmatpush1.msra.mxu0 %v150
    %2537 = vmatprep.subr.mxu0 0.0
    %2538 = vmatpush1.msra.mxu0 %v151
    %2539 = vmatprep.subr.mxu0 0.0
    %2540 = vmatpush1.msra.mxu0 %v152
    %2541 = vmatprep.subr.mxu0 0.0
    %2542 = vmatpush1.msra.mxu0 %v153
    %2543 = vmatprep.subr.mxu0 0.0
    %2544 = vmatpush1.msra.mxu0 %v154
    %2545 = vmatprep.subr.mxu0 0.0
    %2546 = vmatpush1.msra.mxu0 %v155
    %2547 = vmatprep.subr.mxu0 0.0
    %2548 = vmatpush1.msra.mxu0 %v156
    %2549 = vmatprep.subr.mxu0 0.0
    %2550 = vmatpush1.msra.mxu0 %v157
    %2551 = vmatprep.subr.mxu0 0.0
    %2552 = vmatpush1.msra.mxu0 %v158
    %2553 = vmatprep.subr.mxu0 0.0
    %2554 = vmatpush1.msra.mxu0 %v159
    %2555 = vmatprep.subr.mxu0 0.0
    %2556 = vmatpush1.msra.mxu0 %v160
    %2557 = vmatprep.subr.mxu0 0.0
    %2558 = vmatpush1.msra.mxu0 %v161
    %2559 = vmatprep.subr.mxu0 0.0
    %2560 = vmatpush1.msra.mxu0 %v162
    %2561 = vmatprep.subr.mxu0 0.0
    %2562 = vmatpush1.msra.mxu0 %v163
    %2563 = vmatprep.mubr.f32.mxu0 %v2495
    %2564 = vmatmul.mubr.f32.gmra.mrb[0].mxu0 %v2493
    %v2565 = vpop.f32.mrb[0].mxu0
    %v2566 = vadd.f32 0.0, %v2565
    %v2567 = vpop.f32.mrb[0].mxu0
    %2568 = vdwg.mxu0
    %v2569 = vmul.f32 %v2493, %v2493
    %v2570 = vmul.f32 %v2495, %v2495
    %2571 = vmatprep.subr.mxu0 0.0
    %2572 = vmatpush1.msra.mxu0 %v132
    %2573 = vmatprep.subr.mxu0 0.0
    %2574 = vmatpush1.msra.mxu0 %v133
    %2575 = vmatprep.subr.mxu0 0.0
    %2576 = vmatpush1.msra.mxu0 %v134
    %2577 = vmatprep.subr.mxu0 0.0
    %2578 = vmatpush1.msra.mxu0 %v135
    %2579 = vmatprep.subr.mxu0 0.0
    %2580 = vmatpush1.msra.mxu0 %v136
    %2581 = vmatprep.subr.mxu0 0.0
    %2582 = vmatpush1.msra.mxu0 %v137
    %2583 = vmatprep.subr.mxu0 0.0
    %2584 = vmatpush1.msra.mxu0 %v138
    %2585 = vmatprep.subr.mxu0 0.0
    %2586 = vmatpush1.msra.mxu0 %v139
    %2587 = vmatprep.subr.mxu0 0.0
    %2588 = vmatpush1.msra.mxu0 %v140
    %2589 = vmatprep.subr.mxu0 0.0
    %2590 = vmatpush1.msra.mxu0 %v141
    %2591 = vmatprep.subr.mxu0 0.0
    %2592 = vmatpush1.msra.mxu0 %v142
    %2593 = vmatprep.subr.mxu0 0.0
    %2594 = vmatpush1.msra.mxu0 %v143
    %2595 = vmatprep.subr.mxu0 0.0
    %2596 = vmatpush1.msra.mxu0 %v144
    %2597 = vmatprep.subr.mxu0 0.0
    %2598 = vmatpush1.msra.mxu0 %v145
    %2599 = vmatprep.subr.mxu0 0.0
    %2600 = vmatpush1.msra.mxu0 %v146
    %2601 = vmatprep.subr.mxu0 0.0
    %2602 = vmatpush1.msra.mxu0 %v147
    %2603 = vmatprep.subr.mxu0 0.0
    %2604 = vmatpush1.msra.mxu0 %v148
    %2605 = vmatprep.subr.mxu0 0.0
    %2606 = vmatpush1.msra.mxu0 %v149
    %2607 = vmatprep.subr.mxu0 0.0
    %2608 = vmatpush1.msra.mxu0 %v150
    %2609 = vmatprep.subr.mxu0 0.0
    %2610 = vmatpush1.msra.mxu0 %v151
    %2611 = vmatprep.subr.mxu0 0.0
    %2612 = vmatpush1.msra.mxu0 %v152
    %2613 = vmatprep.subr.mxu0 0.0
    %2614 = vmatpush1.msra.mxu0 %v153
    %2615 = vmatprep.subr.mxu0 0.0
    %2616 = vmatpush1.msra.mxu0 %v154
    %2617 = vmatprep.subr.mxu0 0.0
    %2618 = vmatpush1.msra.mxu0 %v155
    %2619 = vmatprep.subr.mxu0 0.0
    %2620 = vmatpush1.msra.mxu0 %v156
    %2621 = vmatprep.subr.mxu0 0.0
    %2622 = vmatpush1.msra.mxu0 %v157
    %2623 = vmatprep.subr.mxu0 0.0
    %2624 = vmatpush1.msra.mxu0 %v158
    %2625 = vmatprep.subr.mxu0 0.0
    %2626 = vmatpush1.msra.mxu0 %v159
    %2627 = vmatprep.subr.mxu0 0.0
    %2628 = vmatpush1.msra.mxu0 %v160
    %2629 = vmatprep.subr.mxu0 0.0
    %2630 = vmatpush1.msra.mxu0 %v161
    %2631 = vmatprep.subr.mxu0 0.0
    %2632 = vmatpush1.msra.mxu0 %v162
    %2633 = vmatprep.subr.mxu0 0.0
    %2634 = vmatpush1.msra.mxu0 %v163
    %2635 = vmatprep.mubr.f32.mxu0 %v2570
    %2636 = vmatmul.mubr.f32.gmra.mrb[0].mxu0 %v2569
    %v2637 = vpop.f32.mrb[0].mxu0
    %v2638 = vadd.f32 0.0, %v2637
    %v2639 = vpop.f32.mrb[0].mxu0
    %2640 = vdwg.mxu0
    %v2641 = vsel %vm1764, %v2566, 0.0
    %v2642 = vrot.slane %v2641, 4
    %v2643 = vadd.f32 %v2641, %v2642
    %v2644 = vrot.slane %v2643, 2
    %v2645 = vadd.f32 %v2643, %v2644
    %v2646 = vrot.slane %v2645, 1
    %v2647 = vadd.f32 %v2645, %v2646
    %v2648 = vmul.f32 %v2647, 0.5
    %v2649 = vsel %vm1764, %v2638, 0.0
    %v2650 = vrot.slane %v2649, 4
    %v2651 = vadd.f32 %v2649, %v2650
    %v2652 = vrot.slane %v2651, 2
    %v2653 = vadd.f32 %v2651, %v2652
    %v2654 = vrot.slane %v2653, 1
    %v2655 = vadd.f32 %v2653, %v2654
    %v2656 = vmul.f32 %v2655, 0.5
    %v2657 = vmul.f32 %v2648, %v2648
    %v2658 = vsub.f32 %v2656, %v2657
    %v2659 = vmax.f32 %v2658, 0.0
    %v2660 = vadd.f32 %v2659, 1e-05
    %v2661 = vrsqrt.pop %v2660
    %v2662 = vmul.f32 %v62, %v2661
    %v2663 = vmul.f32 %v2648, %v2662
    %v2665 = vrot.slane %v2663, 7
    %v2667 = vsub.f32 %v62, %v2665
    %v2668 = vsel %vm960, %v2662, %v2667
    %v2670 = vsel %vm1799, %v2668, 0
    %2672 = vmatprep.subr.mxu0 %v165
    %2673 = vmatpush1.msra.mxu0 %v164
    %2674 = vmatprep.subr.mxu0 %v167
    %2675 = vmatpush1.msra.mxu0 %v166
    %2676 = vmatprep.subr.mxu0 0.0
    %2677 = vmatpush1.msra.mxu0 0.0
    %2678 = vmatprep.subr.mxu0 0.0
    %2679 = vmatpush1.msra.mxu0 0.0
    %2680 = vmatprep.subr.mxu0 0.0
    %2681 = vmatpush1.msra.mxu0 0.0
    %2682 = vmatprep.subr.mxu0 0.0
    %2683 = vmatpush1.msra.mxu0 0.0
    %2684 = vmatprep.subr.mxu0 0.0
    %2685 = vmatpush1.msra.mxu0 0.0
    %2686 = vmatprep.subr.mxu0 0.0
    %2687 = vmatpush1.msra.mxu0 0.0
    %2688 = vmatprep.subr.mxu0 0.0
    %2689 = vmatpush1.msra.mxu0 0.0
    %2690 = vmatprep.subr.mxu0 0.0
    %2691 = vmatpush1.msra.mxu0 0.0
    %2692 = vmatprep.subr.mxu0 0.0
    %2693 = vmatpush1.msra.mxu0 0.0
    %2694 = vmatprep.subr.mxu0 0.0
    %2695 = vmatpush1.msra.mxu0 0.0
    %2696 = vmatprep.subr.mxu0 0.0
    %2697 = vmatpush1.msra.mxu0 0.0
    %2698 = vmatprep.subr.mxu0 0.0
    %2699 = vmatpush1.msra.mxu0 0.0
    %2700 = vmatprep.subr.mxu0 0.0
    %2701 = vmatpush1.msra.mxu0 0.0
    %2702 = vmatprep.subr.mxu0 0.0
    %2703 = vmatpush1.msra.mxu0 0.0
    %2704 = vmatprep.subr.mxu0 0.0
    %2705 = vmatpush1.msra.mxu0 0.0
    %2706 = vmatprep.subr.mxu0 0.0
    %2707 = vmatpush1.msra.mxu0 0.0
    %2708 = vmatprep.subr.mxu0 0.0
    %2709 = vmatpush1.msra.mxu0 0.0
    %2710 = vmatprep.subr.mxu0 0.0
    %2711 = vmatpush1.msra.mxu0 0.0
    %2712 = vmatprep.subr.mxu0 0.0
    %2713 = vmatpush1.msra.mxu0 0.0
    %2714 = vmatprep.subr.mxu0 0.0
    %2715 = vmatpush1.msra.mxu0 0.0
    %2716 = vmatprep.subr.mxu0 0.0
    %2717 = vmatpush1.msra.mxu0 0.0
    %2718 = vmatprep.subr.mxu0 0.0
    %2719 = vmatpush1.msra.mxu0 0.0
    %2720 = vmatprep.subr.mxu0 0.0
    %2721 = vmatpush1.msra.mxu0 0.0
    %2722 = vmatprep.subr.mxu0 0.0
    %2723 = vmatpush1.msra.mxu0 0.0
    %2724 = vmatprep.subr.mxu0 0.0
    %2725 = vmatpush1.msra.mxu0 0.0
    %2726 = vmatprep.subr.mxu0 0.0
    %2727 = vmatpush1.msra.mxu0 0.0
    %2728 = vmatprep.subr.mxu0 0.0
    %2729 = vmatpush1.msra.mxu0 0.0
    %2730 = vmatprep.subr.mxu0 0.0
    %2731 = vmatpush1.msra.mxu0 0.0
    %2732 = vmatprep.subr.mxu0 0.0
    %2733 = vmatpush1.msra.mxu0 0.0
    %2734 = vmatprep.subr.mxu0 0.0
    %2735 = vmatpush1.msra.mxu0 0.0
    %2736 = vmatprep.mubr.f32.mxu0 0.0
    %2737 = vmatmul.mubr.f32.gmra.mrb[0].mxu0 %v2670
    %v2738 = vpop.f32.mrb[0].mxu0
    %v2739 = vadd.f32 0.0, %v2738
    %v2740 = vpop.f32.mrb[0].mxu0
    %v2741 = vadd.f32 0.0, %v2740
    %2742 = vdwg.mxu0
    %v2743 = vlaneseq
    %v2744 = vshrl.u32 %v2743, 7
    %v2745 = vsub.s32 0, %v2744
    %v2746 = vrot.slane %v2739, %v2745
    %v2747 = vlaneseq
    %v2748 = vshrl.u32 %v2747, 7
    %v2749 = vsub.s32 0, %v2748
    %v2750 = vrot.slane %v2741, %v2749
    %v2751 = vmul.f32 %v2493, %v2746
    %v2752 = vmul.f32 %v2495, %v2750
    %v2753 = vlaneseq
    %v2754 = vshrl.u32 %v2753, 7
    %v2755 = vsub.s32 1, %v2754
    %v2756 = vrot.slane %v2739, %v2755
    %v2757 = vlaneseq
    %v2758 = vshrl.u32 %v2757, 7
    %v2759 = vsub.s32 1, %v2758
    %v2760 = vrot.slane %v2741, %v2759
    %v2761 = vadd.f32 %v2751, %v2756
    %v2762 = vadd.f32 %v2752, %v2760
    %vm2763 = vcmp.ge.f32.partialorder %v2761, 0.0
    %vm2764 = vcmp.ge.f32.partialorder %v2762, 0.0
    %v2765 = vmul.f32 %v2761, 0.01
    %v2766 = vmul.f32 %v2762, 0.01
    %v2767 = vsel %vm2763, %v2761, %v2765
    %v2768 = vsel %vm2764, %v2762, %v2766
    %v2769 = vld [vmem:[#allocation2 + $0x200] sm:$0xff]
    %v2770 = vld [vmem:[#allocation2 + $0x208] sm:$0xff]
    %v2771 = vld [vmem:[#allocation2 + $0x210] sm:$0xff]
    %v2772 = vld [vmem:[#allocation2 + $0x218] sm:$0xff]
    %v2773 = vld [vmem:[#allocation2 + $0x220] sm:$0xff]
    %v2774 = vld [vmem:[#allocation2 + $0x228] sm:$0xff]
    %v2775 = vld [vmem:[#allocation2 + $0x230] sm:$0xff]
    %v2776 = vld [vmem:[#allocation2 + $0x238] sm:$0xff]
    %v2777 = vld [vmem:[#allocation2 + $0x240] sm:$0xff]
    %v2778 = vld [vmem:[#allocation2 + $0x248] sm:$0xff]
    %v2779 = vld [vmem:[#allocation2 + $0x250] sm:$0xff]
    %v2780 = vld [vmem:[#allocation2 + $0x258] sm:$0xff]
    %v2781 = vld [vmem:[#allocation2 + $0x260] sm:$0xff]
    %v2782 = vld [vmem:[#allocation2 + $0x268] sm:$0xff]
    %v2783 = vld [vmem:[#allocation2 + $0x270] sm:$0xff]
    %v2784 = vld [vmem:[#allocation2 + $0x278] sm:$0xff]
    %v2785 = vld [vmem:[#allocation2 + $0x280] sm:$0xff]
    %v2786 = vld [vmem:[#allocation2 + $0x288] sm:$0xff]
    %v2787 = vld [vmem:[#allocation2 + $0x290] sm:$0xff]
    %v2788 = vld [vmem:[#allocation2 + $0x298] sm:$0xff]
    %v2789 = vld [vmem:[#allocation2 + $0x2a0] sm:$0xff]
    %v2790 = vld [vmem:[#allocation2 + $0x2a8] sm:$0xff]
    %v2791 = vld [vmem:[#allocation2 + $0x2b0] sm:$0xff]
    %v2792 = vld [vmem:[#allocation2 + $0x2b8] sm:$0xff]
    %v2793 = vld [vmem:[#allocation2 + $0x2c0] sm:$0xff]
    %v2794 = vld [vmem:[#allocation2 + $0x2c8] sm:$0xff]
    %v2795 = vld [vmem:[#allocation2 + $0x2d0] sm:$0xff]
    %v2796 = vld [vmem:[#allocation2 + $0x2d8] sm:$0xff]
    %v2797 = vld [vmem:[#allocation2 + $0x2e0] sm:$0xff]
    %v2798 = vld [vmem:[#allocation2 + $0x2e8] sm:$0xff]
    %v2799 = vld [vmem:[#allocation2 + $0x2f0] sm:$0xff]
    %v2800 = vld [vmem:[#allocation2 + $0x2f8] sm:$0xff]
    %v2801 = vld [vmem:[#allocation2 + $0x300] sm:$0xff]
    %v2802 = vld [vmem:[#allocation2 + $0x308] sm:$0xff]
    %v2803 = vld [vmem:[#allocation2 + $0x310] sm:$0xff]
    %v2804 = vld [vmem:[#allocation2 + $0x318] sm:$0xff]
    %v2805 = vld [vmem:[#allocation2 + $0x320] sm:$0xff]
    %v2806 = vld [vmem:[#allocation2 + $0x328] sm:$0xff]
    %v2807 = vld [vmem:[#allocation2 + $0x330] sm:$0xff]
    %v2808 = vld [vmem:[#allocation2 + $0x338] sm:$0xff]
    %v2809 = vld [vmem:[#allocation2 + $0x340] sm:$0xff]
    %v2810 = vld [vmem:[#allocation2 + $0x348] sm:$0xff]
    %v2811 = vld [vmem:[#allocation2 + $0x350] sm:$0xff]
    %v2812 = vld [vmem:[#allocation2 + $0x358] sm:$0xff]
    %v2813 = vld [vmem:[#allocation2 + $0x360] sm:$0xff]
    %v2814 = vld [vmem:[#allocation2 + $0x368] sm:$0xff]
    %v2815 = vld [vmem:[#allocation2 + $0x370] sm:$0xff]
    %v2816 = vld [vmem:[#allocation2 + $0x378] sm:$0xff]
    %v2817 = vld [vmem:[#allocation2 + $0x380] sm:$0xff]
    %v2818 = vld [vmem:[#allocation2 + $0x388] sm:$0xff]
    %v2819 = vld [vmem:[#allocation2 + $0x390] sm:$0xff]
    %v2820 = vld [vmem:[#allocation2 + $0x398] sm:$0xff]
    %v2821 = vld [vmem:[#allocation2 + $0x3a0] sm:$0xff]
    %v2822 = vld [vmem:[#allocation2 + $0x3a8] sm:$0xff]
    %v2823 = vld [vmem:[#allocation2 + $0x3b0] sm:$0xff]
    %v2824 = vld [vmem:[#allocation2 + $0x3b8] sm:$0xff]
    %v2825 = vld [vmem:[#allocation2 + $0x3c0] sm:$0xff]
    %v2826 = vld [vmem:[#allocation2 + $0x3c8] sm:$0xff]
    %v2827 = vld [vmem:[#allocation2 + $0x3d0] sm:$0xff]
    %v2828 = vld [vmem:[#allocation2 + $0x3d8] sm:$0xff]
    %v2829 = vld [vmem:[#allocation2 + $0x3e0] sm:$0xff]
    %v2830 = vld [vmem:[#allocation2 + $0x3e8] sm:$0xff]
    %v2831 = vld [vmem:[#allocation2 + $0x3f0] sm:$0xff]
    %v2832 = vld [vmem:[#allocation2 + $0x3f8] sm:$0xff]
    %v2833 = vpack.c.bf16 %v2767, %v2767
    %v2834 = vpack.c.bf16 %v2768, %v2768
    %v2899 = vunpack.c.l.b16 %v2769
    %v2900 = vunpack.c.h.b16 %v2769
    %v2901 = vunpack.c.l.b16 %v2770
    %v2902 = vunpack.c.h.b16 %v2770
    %v2903 = vunpack.c.l.b16 %v2771
    %v2904 = vunpack.c.h.b16 %v2771
    %v2905 = vunpack.c.l.b16 %v2772
    %v2906 = vunpack.c.h.b16 %v2772
    %v2907 = vunpack.c.l.b16 %v2773
    %v2908 = vunpack.c.h.b16 %v2773
    %v2909 = vunpack.c.l.b16 %v2774
    %v2910 = vunpack.c.h.b16 %v2774
    %v2911 = vunpack.c.l.b16 %v2775
    %v2912 = vunpack.c.h.b16 %v2775
    %v2913 = vunpack.c.l.b16 %v2776
    %v2914 = vunpack.c.h.b16 %v2776
    %v2915 = vunpack.c.l.b16 %v2777
    %v2916 = vunpack.c.h.b16 %v2777
    %v2917 = vunpack.c.l.b16 %v2778
    %v2918 = vunpack.c.h.b16 %v2778
    %v2919 = vunpack.c.l.b16 %v2779
    %v2920 = vunpack.c.h.b16 %v2779
    %v2921 = vunpack.c.l.b16 %v2780
    %v2922 = vunpack.c.h.b16 %v2780
    %v2923 = vunpack.c.l.b16 %v2781
    %v2924 = vunpack.c.h.b16 %v2781
    %v2925 = vunpack.c.l.b16 %v2782
    %v2926 = vunpack.c.h.b16 %v2782
    %v2927 = vunpack.c.l.b16 %v2783
    %v2928 = vunpack.c.h.b16 %v2783
    %v2929 = vunpack.c.l.b16 %v2784
    %v2930 = vunpack.c.h.b16 %v2784
    %v2931 = vunpack.c.l.b16 %v2785
    %v2932 = vunpack.c.h.b16 %v2785
    %v2933 = vunpack.c.l.b16 %v2786
    %v2934 = vunpack.c.h.b16 %v2786
    %v2935 = vunpack.c.l.b16 %v2787
    %v2936 = vunpack.c.h.b16 %v2787
    %v2937 = vunpack.c.l.b16 %v2788
    %v2938 = vunpack.c.h.b16 %v2788
    %v2939 = vunpack.c.l.b16 %v2789
    %v2940 = vunpack.c.h.b16 %v2789
    %v2941 = vunpack.c.l.b16 %v2790
    %v2942 = vunpack.c.h.b16 %v2790
    %v2943 = vunpack.c.l.b16 %v2791
    %v2944 = vunpack.c.h.b16 %v2791
    %v2945 = vunpack.c.l.b16 %v2792
    %v2946 = vunpack.c.h.b16 %v2792
    %v2947 = vunpack.c.l.b16 %v2793
    %v2948 = vunpack.c.h.b16 %v2793
    %v2949 = vunpack.c.l.b16 %v2794
    %v2950 = vunpack.c.h.b16 %v2794
    %v2951 = vunpack.c.l.b16 %v2795
    %v2952 = vunpack.c.h.b16 %v2795
    %v2953 = vunpack.c.l.b16 %v2796
    %v2954 = vunpack.c.h.b16 %v2796
    %v2955 = vunpack.c.l.b16 %v2797
    %v2956 = vunpack.c.h.b16 %v2797
    %v2957 = vunpack.c.l.b16 %v2798
    %v2958 = vunpack.c.h.b16 %v2798
    %v2959 = vunpack.c.l.b16 %v2799
    %v2960 = vunpack.c.h.b16 %v2799
    %v2961 = vunpack.c.l.b16 %v2800
    %v2962 = vunpack.c.h.b16 %v2800
    %v2963 = vunpack.c.l.b16 %v2801
    %v2964 = vunpack.c.h.b16 %v2801
    %v2965 = vunpack.c.l.b16 %v2802
    %v2966 = vunpack.c.h.b16 %v2802
    %v2967 = vunpack.c.l.b16 %v2803
    %v2968 = vunpack.c.h.b16 %v2803
    %v2969 = vunpack.c.l.b16 %v2804
    %v2970 = vunpack.c.h.b16 %v2804
    %v2971 = vunpack.c.l.b16 %v2805
    %v2972 = vunpack.c.h.b16 %v2805
    %v2973 = vunpack.c.l.b16 %v2806
    %v2974 = vunpack.c.h.b16 %v2806
    %v2975 = vunpack.c.l.b16 %v2807
    %v2976 = vunpack.c.h.b16 %v2807
    %v2977 = vunpack.c.l.b16 %v2808
    %v2978 = vunpack.c.h.b16 %v2808
    %v2979 = vunpack.c.l.b16 %v2809
    %v2980 = vunpack.c.h.b16 %v2809
    %v2981 = vunpack.c.l.b16 %v2810
    %v2982 = vunpack.c.h.b16 %v2810
    %v2983 = vunpack.c.l.b16 %v2811
    %v2984 = vunpack.c.h.b16 %v2811
    %v2985 = vunpack.c.l.b16 %v2812
    %v2986 = vunpack.c.h.b16 %v2812
    %v2987 = vunpack.c.l.b16 %v2813
    %v2988 = vunpack.c.h.b16 %v2813
    %v2989 = vunpack.c.l.b16 %v2814
    %v2990 = vunpack.c.h.b16 %v2814
    %v2991 = vunpack.c.l.b16 %v2815
    %v2992 = vunpack.c.h.b16 %v2815
    %v2993 = vunpack.c.l.b16 %v2816
    %v2994 = vunpack.c.h.b16 %v2816
    %v2995 = vunpack.c.l.b16 %v2817
    %v2996 = vunpack.c.h.b16 %v2817
    %v2997 = vunpack.c.l.b16 %v2818
    %v2998 = vunpack.c.h.b16 %v2818
    %v2999 = vunpack.c.l.b16 %v2819
    %v3000 = vunpack.c.h.b16 %v2819
    %v3001 = vunpack.c.l.b16 %v2820
    %v3002 = vunpack.c.h.b16 %v2820
    %v3003 = vunpack.c.l.b16 %v2821
    %v3004 = vunpack.c.h.b16 %v2821
    %v3005 = vunpack.c.l.b16 %v2822
    %v3006 = vunpack.c.h.b16 %v2822
    %v3007 = vunpack.c.l.b16 %v2823
    %v3008 = vunpack.c.h.b16 %v2823
    %v3009 = vunpack.c.l.b16 %v2824
    %v3010 = vunpack.c.h.b16 %v2824
    %v3011 = vunpack.c.l.b16 %v2825
    %v3012 = vunpack.c.h.b16 %v2825
    %v3013 = vunpack.c.l.b16 %v2826
    %v3014 = vunpack.c.h.b16 %v2826
    %v3015 = vunpack.c.l.b16 %v2827
    %v3016 = vunpack.c.h.b16 %v2827
    %v3017 = vunpack.c.l.b16 %v2828
    %v3018 = vunpack.c.h.b16 %v2828
    %v3019 = vunpack.c.l.b16 %v2829
    %v3020 = vunpack.c.h.b16 %v2829
    %v3021 = vunpack.c.l.b16 %v2830
    %v3022 = vunpack.c.h.b16 %v2830
    %v3023 = vunpack.c.l.b16 %v2831
    %v3024 = vunpack.c.h.b16 %v2831
    %v3025 = vunpack.c.l.b16 %v2832
    %v3026 = vunpack.c.h.b16 %v2832
    %v3027 = vpack.c.b16 %v2903, %v2899
    %v3028 = vpack.c.b16 %v2904, %v2900
    %v3029 = vpack.c.b16 %v2905, %v2901
    %v3030 = vpack.c.b16 %v2906, %v2902
    %v3031 = vpack.c.b16 %v2911, %v2907
    %v3032 = vpack.c.b16 %v2912, %v2908
    %v3033 = vpack.c.b16 %v2913, %v2909
    %v3034 = vpack.c.b16 %v2914, %v2910
    %v3035 = vpack.c.b16 %v2919, %v2915
    %v3036 = vpack.c.b16 %v2920, %v2916
    %v3037 = vpack.c.b16 %v2921, %v2917
    %v3038 = vpack.c.b16 %v2922, %v2918
    %v3039 = vpack.c.b16 %v2927, %v2923
    %v3040 = vpack.c.b16 %v2928, %v2924
    %v3041 = vpack.c.b16 %v2929, %v2925
    %v3042 = vpack.c.b16 %v2930, %v2926
    %v3043 = vpack.c.b16 %v2935, %v2931
    %v3044 = vpack.c.b16 %v2936, %v2932
    %v3045 = vpack.c.b16 %v2937, %v2933
    %v3046 = vpack.c.b16 %v2938, %v2934
    %v3047 = vpack.c.b16 %v2943, %v2939
    %v3048 = vpack.c.b16 %v2944, %v2940
    %v3049 = vpack.c.b16 %v2945, %v2941
    %v3050 = vpack.c.b16 %v2946, %v2942
    %v3051 = vpack.c.b16 %v2951, %v2947
    %v3052 = vpack.c.b16 %v2952, %v2948
    %v3053 = vpack.c.b16 %v2953, %v2949
    %v3054 = vpack.c.b16 %v2954, %v2950
    %v3055 = vpack.c.b16 %v2959, %v2955
    %v3056 = vpack.c.b16 %v2960, %v2956
    %v3057 = vpack.c.b16 %v2961, %v2957
    %v3058 = vpack.c.b16 %v2962, %v2958
    %v3059 = vpack.c.b16 %v2967, %v2963
    %v3060 = vpack.c.b16 %v2968, %v2964
    %v3061 = vpack.c.b16 %v2969, %v2965
    %v3062 = vpack.c.b16 %v2970, %v2966
    %v3063 = vpack.c.b16 %v2975, %v2971
    %v3064 = vpack.c.b16 %v2976, %v2972
    %v3065 = vpack.c.b16 %v2977, %v2973
    %v3066 = vpack.c.b16 %v2978, %v2974
    %v3067 = vpack.c.b16 %v2983, %v2979
    %v3068 = vpack.c.b16 %v2984, %v2980
    %v3069 = vpack.c.b16 %v2985, %v2981
    %v3070 = vpack.c.b16 %v2986, %v2982
    %v3071 = vpack.c.b16 %v2991, %v2987
    %v3072 = vpack.c.b16 %v2992, %v2988
    %v3073 = vpack.c.b16 %v2993, %v2989
    %v3074 = vpack.c.b16 %v2994, %v2990
    %v3075 = vpack.c.b16 %v2999, %v2995
    %v3076 = vpack.c.b16 %v3000, %v2996
    %v3077 = vpack.c.b16 %v3001, %v2997
    %v3078 = vpack.c.b16 %v3002, %v2998
    %v3079 = vpack.c.b16 %v3007, %v3003
    %v3080 = vpack.c.b16 %v3008, %v3004
    %v3081 = vpack.c.b16 %v3009, %v3005
    %v3082 = vpack.c.b16 %v3010, %v3006
    %v3083 = vpack.c.b16 %v3015, %v3011
    %v3084 = vpack.c.b16 %v3016, %v3012
    %v3085 = vpack.c.b16 %v3017, %v3013
    %v3086 = vpack.c.b16 %v3018, %v3014
    %v3087 = vpack.c.b16 %v3023, %v3019
    %v3088 = vpack.c.b16 %v3024, %v3020
    %v3089 = vpack.c.b16 %v3025, %v3021
    %v3090 = vpack.c.b16 %v3026, %v3022
    %3155 = vmatprep.subr.bf16.mxu0 %v3028
    %3156 = vmatpush1.bf16.msra.mxu0 %v3027
    %3157 = vmatprep.subr.bf16.mxu0 %v3032
    %3158 = vmatpush1.bf16.msra.mxu0 %v3031
    %3159 = vmatprep.subr.bf16.mxu0 %v3036
    %3160 = vmatpush1.bf16.msra.mxu0 %v3035
    %3161 = vmatprep.subr.bf16.mxu0 %v3040
    %3162 = vmatpush1.bf16.msra.mxu0 %v3039
    %3163 = vmatprep.subr.bf16.mxu0 %v3044
    %3164 = vmatpush1.bf16.msra.mxu0 %v3043
    %3165 = vmatprep.subr.bf16.mxu0 %v3048
    %3166 = vmatpush1.bf16.msra.mxu0 %v3047
    %3167 = vmatprep.subr.bf16.mxu0 %v3052
    %3168 = vmatpush1.bf16.msra.mxu0 %v3051
    %3169 = vmatprep.subr.bf16.mxu0 %v3056
    %3170 = vmatpush1.bf16.msra.mxu0 %v3055
    %3171 = vmatprep.subr.bf16.mxu0 %v3060
    %3172 = vmatpush1.bf16.msra.mxu0 %v3059
    %3173 = vmatprep.subr.bf16.mxu0 %v3064
    %3174 = vmatpush1.bf16.msra.mxu0 %v3063
    %3175 = vmatprep.subr.bf16.mxu0 %v3068
    %3176 = vmatpush1.bf16.msra.mxu0 %v3067
    %3177 = vmatprep.subr.bf16.mxu0 %v3072
    %3178 = vmatpush1.bf16.msra.mxu0 %v3071
    %3179 = vmatprep.subr.bf16.mxu0 %v3076
    %3180 = vmatpush1.bf16.msra.mxu0 %v3075
    %3181 = vmatprep.subr.bf16.mxu0 %v3080
    %3182 = vmatpush1.bf16.msra.mxu0 %v3079
    %3183 = vmatprep.subr.bf16.mxu0 %v3084
    %3184 = vmatpush1.bf16.msra.mxu0 %v3083
    %3185 = vmatprep.subr.bf16.mxu0 %v3088
    %3186 = vmatpush1.bf16.msra.mxu0 %v3087
    %3187 = vmatprep.mubr.bf16.mxu0 %v2834
    %3188 = vmatmul.mubr.bf16.gmra.mrb[0].mxu0 %v2833
    %v3189 = vpop.f32.mrb[0].mxu0
    %v3190 = vadd.f32 0.0, %v3189
    %v3191 = vpop.f32.mrb[0].mxu0
    %v3192 = vadd.f32 0.0, %v3191
    %v3193 = vpop.f32.mrb[0].mxu0
    %v3194 = vpop.f32.mrb[0].mxu0
    %3195 = vdwg.mxu0
    %3196 = vmatprep.subr.bf16.mxu0 %v3030
    %3197 = vmatpush1.bf16.msra.mxu0 %v3029
    %3198 = vmatprep.subr.bf16.mxu0 %v3034
    %3199 = vmatpush1.bf16.msra.mxu0 %v3033
    %3200 = vmatprep.subr.bf16.mxu0 %v3038
    %3201 = vmatpush1.bf16.msra.mxu0 %v3037
    %3202 = vmatprep.subr.bf16.mxu0 %v3042
    %3203 = vmatpush1.bf16.msra.mxu0 %v3041
    %3204 = vmatprep.subr.bf16.mxu0 %v3046
    %3205 = vmatpush1.bf16.msra.mxu0 %v3045
    %3206 = vmatprep.subr.bf16.mxu0 %v3050
    %3207 = vmatpush1.bf16.msra.mxu0 %v3049
    %3208 = vmatprep.subr.bf16.mxu0 %v3054
    %3209 = vmatpush1.bf16.msra.mxu0 %v3053
    %3210 = vmatprep.subr.bf16.mxu0 %v3058
    %3211 = vmatpush1.bf16.msra.mxu0 %v3057
    %3212 = vmatprep.subr.bf16.mxu0 %v3062
    %3213 = vmatpush1.bf16.msra.mxu0 %v3061
    %3214 = vmatprep.subr.bf16.mxu0 %v3066
    %3215 = vmatpush1.bf16.msra.mxu0 %v3065
    %3216 = vmatprep.subr.bf16.mxu0 %v3070
    %3217 = vmatpush1.bf16.msra.mxu0 %v3069
    %3218 = vmatprep.subr.bf16.mxu0 %v3074
    %3219 = vmatpush1.bf16.msra.mxu0 %v3073
    %3220 = vmatprep.subr.bf16.mxu0 %v3078
    %3221 = vmatpush1.bf16.msra.mxu0 %v3077
    %3222 = vmatprep.subr.bf16.mxu0 %v3082
    %3223 = vmatpush1.bf16.msra.mxu0 %v3081
    %3224 = vmatprep.subr.bf16.mxu0 %v3086
    %3225 = vmatpush1.bf16.msra.mxu0 %v3085
    %3226 = vmatprep.subr.bf16.mxu0 %v3090
    %3227 = vmatpush1.bf16.msra.mxu0 %v3089
    %3228 = vmatprep.mubr.bf16.mxu0 %v2834
    %3229 = vmatmul.mubr.bf16.gmra.mrb[0].mxu0 %v2833
    %v3230 = vpop.f32.mrb[0].mxu0
    %v3231 = vadd.f32 0.0, %v3230
    %v3232 = vpop.f32.mrb[0].mxu0
    %v3233 = vadd.f32 0.0, %v3232
    %v3234 = vpop.f32.mrb[0].mxu0
    %v3235 = vpop.f32.mrb[0].mxu0
    %3236 = vdwg.mxu0
    %3237 = vmatprep.subr.mxu0 0.0
    %3238 = vmatpush1.msra.mxu0 %v64
    %3239 = vmatprep.subr.mxu0 0.0
    %3240 = vmatpush1.msra.mxu0 %v65
    %3241 = vmatprep.subr.mxu0 0.0
    %3242 = vmatpush1.msra.mxu0 %v66
    %3243 = vmatprep.subr.mxu0 0.0
    %3244 = vmatpush1.msra.mxu0 %v67
    %3245 = vmatprep.subr.mxu0 0.0
    %3246 = vmatpush1.msra.mxu0 %v68
    %3247 = vmatprep.subr.mxu0 0.0
    %3248 = vmatpush1.msra.mxu0 %v69
    %3249 = vmatprep.subr.mxu0 0.0
    %3250 = vmatpush1.msra.mxu0 %v70
    %3251 = vmatprep.subr.mxu0 0.0
    %3252 = vmatpush1.msra.mxu0 %v71
    %3253 = vmatprep.subr.mxu0 0.0
    %3254 = vmatpush1.msra.mxu0 %v72
    %3255 = vmatprep.subr.mxu0 0.0
    %3256 = vmatpush1.msra.mxu0 %v73
    %3257 = vmatprep.subr.mxu0 0.0
    %3258 = vmatpush1.msra.mxu0 %v74
    %3259 = vmatprep.subr.mxu0 0.0
    %3260 = vmatpush1.msra.mxu0 %v75
    %3261 = vmatprep.subr.mxu0 0.0
    %3262 = vmatpush1.msra.mxu0 %v76
    %3263 = vmatprep.subr.mxu0 0.0
    %3264 = vmatpush1.msra.mxu0 %v77
    %3265 = vmatprep.subr.mxu0 0.0
    %3266 = vmatpush1.msra.mxu0 %v78
    %3267 = vmatprep.subr.mxu0 0.0
    %3268 = vmatpush1.msra.mxu0 %v79
    %3269 = vmatprep.subr.mxu0 0.0
    %3270 = vmatpush1.msra.mxu0 %v80
    %3271 = vmatprep.subr.mxu0 0.0
    %3272 = vmatpush1.msra.mxu0 %v81
    %3273 = vmatprep.subr.mxu0 0.0
    %3274 = vmatpush1.msra.mxu0 %v82
    %3275 = vmatprep.subr.mxu0 0.0
    %3276 = vmatpush1.msra.mxu0 %v83
    %3277 = vmatprep.subr.mxu0 0.0
    %3278 = vmatpush1.msra.mxu0 %v84
    %3279 = vmatprep.subr.mxu0 0.0
    %3280 = vmatpush1.msra.mxu0 %v85
    %3281 = vmatprep.subr.mxu0 0.0
    %3282 = vmatpush1.msra.mxu0 %v86
    %3283 = vmatprep.subr.mxu0 0.0
    %3284 = vmatpush1.msra.mxu0 %v87
    %3285 = vmatprep.subr.mxu0 0.0
    %3286 = vmatpush1.msra.mxu0 %v88
    %3287 = vmatprep.subr.mxu0 0.0
    %3288 = vmatpush1.msra.mxu0 %v89
    %3289 = vmatprep.subr.mxu0 0.0
    %3290 = vmatpush1.msra.mxu0 %v90
    %3291 = vmatprep.subr.mxu0 0.0
    %3292 = vmatpush1.msra.mxu0 %v91
    %3293 = vmatprep.subr.mxu0 0.0
    %3294 = vmatpush1.msra.mxu0 %v92
    %3295 = vmatprep.subr.mxu0 0.0
    %3296 = vmatpush1.msra.mxu0 %v93
    %3297 = vmatprep.subr.mxu0 0.0
    %3298 = vmatpush1.msra.mxu0 %v94
    %3299 = vmatprep.subr.mxu0 0.0
    %3300 = vmatpush1.msra.mxu0 %v95
    %3301 = vmatprep.mubr.f32.mxu0 %v3192
    %3302 = vmatmul.mubr.f32.gmra.mrb[0].mxu0 %v3190
    %v3303 = vpop.f32.mrb[0].mxu0
    %v3304 = vadd.f32 0.0, %v3303
    %v3305 = vpop.f32.mrb[0].mxu0
    %3306 = vdwg.mxu0
    %3307 = vmatprep.subr.mxu0 0.0
    %3308 = vmatpush1.msra.mxu0 %v96
    %3309 = vmatprep.subr.mxu0 0.0
    %3310 = vmatpush1.msra.mxu0 %v97
    %3311 = vmatprep.subr.mxu0 0.0
    %3312 = vmatpush1.msra.mxu0 %v98
    %3313 = vmatprep.subr.mxu0 0.0
    %3314 = vmatpush1.msra.mxu0 %v99
    %3315 = vmatprep.subr.mxu0 0.0
    %3316 = vmatpush1.msra.mxu0 %v100
    %3317 = vmatprep.subr.mxu0 0.0
    %3318 = vmatpush1.msra.mxu0 %v101
    %3319 = vmatprep.subr.mxu0 0.0
    %3320 = vmatpush1.msra.mxu0 %v102
    %3321 = vmatprep.subr.mxu0 0.0
    %3322 = vmatpush1.msra.mxu0 %v103
    %3323 = vmatprep.subr.mxu0 0.0
    %3324 = vmatpush1.msra.mxu0 %v104
    %3325 = vmatprep.subr.mxu0 0.0
    %3326 = vmatpush1.msra.mxu0 %v105
    %3327 = vmatprep.subr.mxu0 0.0
    %3328 = vmatpush1.msra.mxu0 %v106
    %3329 = vmatprep.subr.mxu0 0.0
    %3330 = vmatpush1.msra.mxu0 %v107
    %3331 = vmatprep.subr.mxu0 0.0
    %3332 = vmatpush1.msra.mxu0 %v108
    %3333 = vmatprep.subr.mxu0 0.0
    %3334 = vmatpush1.msra.mxu0 %v109
    %3335 = vmatprep.subr.mxu0 0.0
    %3336 = vmatpush1.msra.mxu0 %v110
    %3337 = vmatprep.subr.mxu0 0.0
    %3338 = vmatpush1.msra.mxu0 %v111
    %3339 = vmatprep.subr.mxu0 0.0
    %3340 = vmatpush1.msra.mxu0 %v112
    %3341 = vmatprep.subr.mxu0 0.0
    %3342 = vmatpush1.msra.mxu0 %v113
    %3343 = vmatprep.subr.mxu0 0.0
    %3344 = vmatpush1.msra.mxu0 %v114
    %3345 = vmatprep.subr.mxu0 0.0
    %3346 = vmatpush1.msra.mxu0 %v115
    %3347 = vmatprep.subr.mxu0 0.0
    %3348 = vmatpush1.msra.mxu0 %v116
    %3349 = vmatprep.subr.mxu0 0.0
    %3350 = vmatpush1.msra.mxu0 %v117
    %3351 = vmatprep.subr.mxu0 0.0
    %3352 = vmatpush1.msra.mxu0 %v118
    %3353 = vmatprep.subr.mxu0 0.0
    %3354 = vmatpush1.msra.mxu0 %v119
    %3355 = vmatprep.subr.mxu0 0.0
    %3356 = vmatpush1.msra.mxu0 %v120
    %3357 = vmatprep.subr.mxu0 0.0
    %3358 = vmatpush1.msra.mxu0 %v121
    %3359 = vmatprep.subr.mxu0 0.0
    %3360 = vmatpush1.msra.mxu0 %v122
    %3361 = vmatprep.subr.mxu0 0.0
    %3362 = vmatpush1.msra.mxu0 %v123
    %3363 = vmatprep.subr.mxu0 0.0
    %3364 = vmatpush1.msra.mxu0 %v124
    %3365 = vmatprep.subr.mxu0 0.0
    %3366 = vmatpush1.msra.mxu0 %v125
    %3367 = vmatprep.subr.mxu0 0.0
    %3368 = vmatpush1.msra.mxu0 %v126
    %3369 = vmatprep.subr.mxu0 0.0
    %3370 = vmatpush1.msra.mxu0 %v127
    %3371 = vmatprep.mubr.f32.mxu0 %v3233
    %3372 = vmatmul.mubr.f32.gmra.mrb[0].mxu0 %v3231
    %v3373 = vpop.f32.mrb[0].mxu0
    %v3374 = vadd.f32 %v3304, %v3373
    %v3375 = vpop.f32.mrb[0].mxu0
    %3376 = vdwg.mxu0
    %v3377 = vmul.f32 %v3190, %v3190
    %v3378 = vmul.f32 %v3192, %v3192
    %v3379 = vmul.f32 %v3231, %v3231
    %v3380 = vmul.f32 %v3233, %v3233
    %3381 = vmatprep.subr.mxu0 0.0
    %3382 = vmatpush1.msra.mxu0 %v64
    %3383 = vmatprep.subr.mxu0 0.0
    %3384 = vmatpush1.msra.mxu0 %v65
    %3385 = vmatprep.subr.mxu0 0.0
    %3386 = vmatpush1.msra.mxu0 %v66
    %3387 = vmatprep.subr.mxu0 0.0
    %3388 = vmatpush1.msra.mxu0 %v67
    %3389 = vmatprep.subr.mxu0 0.0
    %3390 = vmatpush1.msra.mxu0 %v68
    %3391 = vmatprep.subr.mxu0 0.0
    %3392 = vmatpush1.msra.mxu0 %v69
    %3393 = vmatprep.subr.mxu0 0.0
    %3394 = vmatpush1.msra.mxu0 %v70
    %3395 = vmatprep.subr.mxu0 0.0
    %3396 = vmatpush1.msra.mxu0 %v71
    %3397 = vmatprep.subr.mxu0 0.0
    %3398 = vmatpush1.msra.mxu0 %v72
    %3399 = vmatprep.subr.mxu0 0.0
    %3400 = vmatpush1.msra.mxu0 %v73
    %3401 = vmatprep.subr.mxu0 0.0
    %3402 = vmatpush1.msra.mxu0 %v74
    %3403 = vmatprep.subr.mxu0 0.0
    %3404 = vmatpush1.msra.mxu0 %v75
    %3405 = vmatprep.subr.mxu0 0.0
    %3406 = vmatpush1.msra.mxu0 %v76
    %3407 = vmatprep.subr.mxu0 0.0
    %3408 = vmatpush1.msra.mxu0 %v77
    %3409 = vmatprep.subr.mxu0 0.0
    %3410 = vmatpush1.msra.mxu0 %v78
    %3411 = vmatprep.subr.mxu0 0.0
    %3412 = vmatpush1.msra.mxu0 %v79
    %3413 = vmatprep.subr.mxu0 0.0
    %3414 = vmatpush1.msra.mxu0 %v80
    %3415 = vmatprep.subr.mxu0 0.0
    %3416 = vmatpush1.msra.mxu0 %v81
    %3417 = vmatprep.subr.mxu0 0.0
    %3418 = vmatpush1.msra.mxu0 %v82
    %3419 = vmatprep.subr.mxu0 0.0
    %3420 = vmatpush1.msra.mxu0 %v83
    %3421 = vmatprep.subr.mxu0 0.0
    %3422 = vmatpush1.msra.mxu0 %v84
    %3423 = vmatprep.subr.mxu0 0.0
    %3424 = vmatpush1.msra.mxu0 %v85
    %3425 = vmatprep.subr.mxu0 0.0
    %3426 = vmatpush1.msra.mxu0 %v86
    %3427 = vmatprep.subr.mxu0 0.0
    %3428 = vmatpush1.msra.mxu0 %v87
    %3429 = vmatprep.subr.mxu0 0.0
    %3430 = vmatpush1.msra.mxu0 %v88
    %3431 = vmatprep.subr.mxu0 0.0
    %3432 = vmatpush1.msra.mxu0 %v89
    %3433 = vmatprep.subr.mxu0 0.0
    %3434 = vmatpush1.msra.mxu0 %v90
    %3435 = vmatprep.subr.mxu0 0.0
    %3436 = vmatpush1.msra.mxu0 %v91
    %3437 = vmatprep.subr.mxu0 0.0
    %3438 = vmatpush1.msra.mxu0 %v92
    %3439 = vmatprep.subr.mxu0 0.0
    %3440 = vmatpush1.msra.mxu0 %v93
    %3441 = vmatprep.subr.mxu0 0.0
    %3442 = vmatpush1.msra.mxu0 %v94
    %3443 = vmatprep.subr.mxu0 0.0
    %3444 = vmatpush1.msra.mxu0 %v95
    %3445 = vmatprep.mubr.f32.mxu0 %v3378
    %3446 = vmatmul.mubr.f32.gmra.mrb[0].mxu0 %v3377
    %v3447 = vpop.f32.mrb[0].mxu0
    %v3448 = vadd.f32 0.0, %v3447
    %v3449 = vpop.f32.mrb[0].mxu0
    %3450 = vdwg.mxu0
    %3451 = vmatprep.subr.mxu0 0.0
    %3452 = vmatpush1.msra.mxu0 %v96
    %3453 = vmatprep.subr.mxu0 0.0
    %3454 = vmatpush1.msra.mxu0 %v97
    %3455 = vmatprep.subr.mxu0 0.0
    %3456 = vmatpush1.msra.mxu0 %v98
    %3457 = vmatprep.subr.mxu0 0.0
    %3458 = vmatpush1.msra.mxu0 %v99
    %3459 = vmatprep.subr.mxu0 0.0
    %3460 = vmatpush1.msra.mxu0 %v100
    %3461 = vmatprep.subr.mxu0 0.0
    %3462 = vmatpush1.msra.mxu0 %v101
    %3463 = vmatprep.subr.mxu0 0.0
    %3464 = vmatpush1.msra.mxu0 %v102
    %3465 = vmatprep.subr.mxu0 0.0
    %3466 = vmatpush1.msra.mxu0 %v103
    %3467 = vmatprep.subr.mxu0 0.0
    %3468 = vmatpush1.msra.mxu0 %v104
    %3469 = vmatprep.subr.mxu0 0.0
    %3470 = vmatpush1.msra.mxu0 %v105
    %3471 = vmatprep.subr.mxu0 0.0
    %3472 = vmatpush1.msra.mxu0 %v106
    %3473 = vmatprep.subr.mxu0 0.0
    %3474 = vmatpush1.msra.mxu0 %v107
    %3475 = vmatprep.subr.mxu0 0.0
    %3476 = vmatpush1.msra.mxu0 %v108
    %3477 = vmatprep.subr.mxu0 0.0
    %3478 = vmatpush1.msra.mxu0 %v109
    %3479 = vmatprep.subr.mxu0 0.0
    %3480 = vmatpush1.msra.mxu0 %v110
    %3481 = vmatprep.subr.mxu0 0.0
    %3482 = vmatpush1.msra.mxu0 %v111
    %3483 = vmatprep.subr.mxu0 0.0
    %3484 = vmatpush1.msra.mxu0 %v112
    %3485 = vmatprep.subr.mxu0 0.0
    %3486 = vmatpush1.msra.mxu0 %v113
    %3487 = vmatprep.subr.mxu0 0.0
    %3488 = vmatpush1.msra.mxu0 %v114
    %3489 = vmatprep.subr.mxu0 0.0
    %3490 = vmatpush1.msra.mxu0 %v115
    %3491 = vmatprep.subr.mxu0 0.0
    %3492 = vmatpush1.msra.mxu0 %v116
    %3493 = vmatprep.subr.mxu0 0.0
    %3494 = vmatpush1.msra.mxu0 %v117
    %3495 = vmatprep.subr.mxu0 0.0
    %3496 = vmatpush1.msra.mxu0 %v118
    %3497 = vmatprep.subr.mxu0 0.0
    %3498 = vmatpush1.msra.mxu0 %v119
    %3499 = vmatprep.subr.mxu0 0.0
    %3500 = vmatpush1.msra.mxu0 %v120
    %3501 = vmatprep.subr.mxu0 0.0
    %3502 = vmatpush1.msra.mxu0 %v121
    %3503 = vmatprep.subr.mxu0 0.0
    %3504 = vmatpush1.msra.mxu0 %v122
    %3505 = vmatprep.subr.mxu0 0.0
    %3506 = vmatpush1.msra.mxu0 %v123
    %3507 = vmatprep.subr.mxu0 0.0
    %3508 = vmatpush1.msra.mxu0 %v124
    %3509 = vmatprep.subr.mxu0 0.0
    %3510 = vmatpush1.msra.mxu0 %v125
    %3511 = vmatprep.subr.mxu0 0.0
    %3512 = vmatpush1.msra.mxu0 %v126
    %3513 = vmatprep.subr.mxu0 0.0
    %3514 = vmatpush1.msra.mxu0 %v127
    %3515 = vmatprep.mubr.f32.mxu0 %v3380
    %3516 = vmatmul.mubr.f32.gmra.mrb[0].mxu0 %v3379
    %v3517 = vpop.f32.mrb[0].mxu0
    %v3518 = vadd.f32 %v3448, %v3517
    %v3519 = vpop.f32.mrb[0].mxu0
    %3520 = vdwg.mxu0
    %v3521 = vsel %vm932, %v3374, 0.0
    %v3522 = vrot.slane %v3521, 4
    %v3523 = vadd.f32 %v3521, %v3522
    %v3524 = vrot.slane %v3523, 2
    %v3525 = vadd.f32 %v3523, %v3524
    %v3526 = vrot.slane %v3525, 1
    %v3527 = vadd.f32 %v3525, %v3526
    %v3528 = vmul.f32 %v3527, 0.5
    %v3529 = vsel %vm932, %v3518, 0.0
    %v3530 = vrot.slane %v3529, 4
    %v3531 = vadd.f32 %v3529, %v3530
    %v3532 = vrot.slane %v3531, 2
    %v3533 = vadd.f32 %v3531, %v3532
    %v3534 = vrot.slane %v3533, 1
    %v3535 = vadd.f32 %v3533, %v3534
    %v3536 = vmul.f32 %v3535, 0.5
    %v3537 = vmul.f32 %v3528, %v3528
    %v3538 = vsub.f32 %v3536, %v3537
    %v3539 = vmax.f32 %v3538, 0.0
    %v3540 = vadd.f32 %v3539, 1e-05
    %v3541 = vrsqrt.pop %v3540
    %v3542 = vmul.f32 %v62, %v3541
    %v3543 = vmul.f32 %v3528, %v3542
    %v3545 = vrot.slane %v3543, 7
    %v3547 = vsub.f32 %v62, %v3545
    %v3549 = vrot.slane %v3542, 2
    %v3552 = vrot.slane %v3547, 2
    %v3554 = vsel %vm960, %v3549, %v3552
    %v3556 = vsel %vm962, %v3554, 0
    %3558 = vmatprep.subr.mxu0 %v129
    %3559 = vmatpush1.msra.mxu0 %v128
    %3560 = vmatprep.subr.mxu0 0.0
    %3561 = vmatpush1.msra.mxu0 0.0
    %3562 = vmatprep.subr.mxu0 0.0
    %3563 = vmatpush1.msra.mxu0 0.0
    %3564 = vmatprep.subr.mxu0 0.0
    %3565 = vmatpush1.msra.mxu0 0.0
    %3566 = vmatprep.subr.mxu0 0.0
    %3567 = vmatpush1.msra.mxu0 0.0
    %3568 = vmatprep.subr.mxu0 0.0
    %3569 = vmatpush1.msra.mxu0 0.0
    %3570 = vmatprep.subr.mxu0 0.0
    %3571 = vmatpush1.msra.mxu0 0.0
    %3572 = vmatprep.subr.mxu0 0.0
    %3573 = vmatpush1.msra.mxu0 0.0
    %3574 = vmatprep.subr.mxu0 0.0
    %3575 = vmatpush1.msra.mxu0 0.0
    %3576 = vmatprep.subr.mxu0 0.0
    %3577 = vmatpush1.msra.mxu0 0.0
    %3578 = vmatprep.subr.mxu0 0.0
    %3579 = vmatpush1.msra.mxu0 0.0
    %3580 = vmatprep.subr.mxu0 0.0
    %3581 = vmatpush1.msra.mxu0 0.0
    %3582 = vmatprep.subr.mxu0 0.0
    %3583 = vmatpush1.msra.mxu0 0.0
    %3584 = vmatprep.subr.mxu0 0.0
    %3585 = vmatpush1.msra.mxu0 0.0
    %3586 = vmatprep.subr.mxu0 0.0
    %3587 = vmatpush1.msra.mxu0 0.0
    %3588 = vmatprep.subr.mxu0 0.0
    %3589 = vmatpush1.msra.mxu0 0.0
    %3590 = vmatprep.subr.mxu0 0.0
    %3591 = vmatpush1.msra.mxu0 0.0
    %3592 = vmatprep.subr.mxu0 0.0
    %3593 = vmatpush1.msra.mxu0 0.0
    %3594 = vmatprep.subr.mxu0 0.0
    %3595 = vmatpush1.msra.mxu0 0.0
    %3596 = vmatprep.subr.mxu0 0.0
    %3597 = vmatpush1.msra.mxu0 0.0
    %3598 = vmatprep.subr.mxu0 0.0
    %3599 = vmatpush1.msra.mxu0 0.0
    %3600 = vmatprep.subr.mxu0 0.0
    %3601 = vmatpush1.msra.mxu0 0.0
    %3602 = vmatprep.subr.mxu0 0.0
    %3603 = vmatpush1.msra.mxu0 0.0
    %3604 = vmatprep.subr.mxu0 0.0
    %3605 = vmatpush1.msra.mxu0 0.0
    %3606 = vmatprep.subr.mxu0 0.0
    %3607 = vmatpush1.msra.mxu0 0.0
    %3608 = vmatprep.subr.mxu0 0.0
    %3609 = vmatpush1.msra.mxu0 0.0
    %3610 = vmatprep.subr.mxu0 0.0
    %3611 = vmatpush1.msra.mxu0 0.0
    %3612 = vmatprep.subr.mxu0 0.0
    %3613 = vmatpush1.msra.mxu0 0.0
    %3614 = vmatprep.subr.mxu0 0.0
    %3615 = vmatpush1.msra.mxu0 0.0
    %3616 = vmatprep.subr.mxu0 0.0
    %3617 = vmatpush1.msra.mxu0 0.0
    %3618 = vmatprep.subr.mxu0 0.0
    %3619 = vmatpush1.msra.mxu0 0.0
    %3620 = vmatprep.subr.mxu0 0.0
    %3621 = vmatpush1.msra.mxu0 0.0
    %3622 = vmatprep.mubr.f32.mxu0 0.0
    %3623 = vmatmul.mubr.f32.gmra.mrb[0].mxu0 %v3556
    %v3624 = vpop.f32.mrb[0].mxu0
    %v3625 = vadd.f32 0.0, %v3624
    %v3626 = vpop.f32.mrb[0].mxu0
    %v3627 = vadd.f32 0.0, %v3626
    %3628 = vdwg.mxu0
    %3629 = vmatprep.subr.mxu0 %v131
    %3630 = vmatpush1.msra.mxu0 %v130
    %3631 = vmatprep.subr.mxu0 0.0
    %3632 = vmatpush1.msra.mxu0 0.0
    %3633 = vmatprep.subr.mxu0 0.0
    %3634 = vmatpush1.msra.mxu0 0.0
    %3635 = vmatprep.subr.mxu0 0.0
    %3636 = vmatpush1.msra.mxu0 0.0
    %3637 = vmatprep.subr.mxu0 0.0
    %3638 = vmatpush1.msra.mxu0 0.0
    %3639 = vmatprep.subr.mxu0 0.0
    %3640 = vmatpush1.msra.mxu0 0.0
    %3641 = vmatprep.subr.mxu0 0.0
    %3642 = vmatpush1.msra.mxu0 0.0
    %3643 = vmatprep.subr.mxu0 0.0
    %3644 = vmatpush1.msra.mxu0 0.0
    %3645 = vmatprep.subr.mxu0 0.0
    %3646 = vmatpush1.msra.mxu0 0.0
    %3647 = vmatprep.subr.mxu0 0.0
    %3648 = vmatpush1.msra.mxu0 0.0
    %3649 = vmatprep.subr.mxu0 0.0
    %3650 = vmatpush1.msra.mxu0 0.0
    %3651 = vmatprep.subr.mxu0 0.0
    %3652 = vmatpush1.msra.mxu0 0.0
    %3653 = vmatprep.subr.mxu0 0.0
    %3654 = vmatpush1.msra.mxu0 0.0
    %3655 = vmatprep.subr.mxu0 0.0
    %3656 = vmatpush1.msra.mxu0 0.0
    %3657 = vmatprep.subr.mxu0 0.0
    %3658 = vmatpush1.msra.mxu0 0.0
    %3659 = vmatprep.subr.mxu0 0.0
    %3660 = vmatpush1.msra.mxu0 0.0
    %3661 = vmatprep.subr.mxu0 0.0
    %3662 = vmatpush1.msra.mxu0 0.0
    %3663 = vmatprep.subr.mxu0 0.0
    %3664 = vmatpush1.msra.mxu0 0.0
    %3665 = vmatprep.subr.mxu0 0.0
    %3666 = vmatpush1.msra.mxu0 0.0
    %3667 = vmatprep.subr.mxu0 0.0
    %3668 = vmatpush1.msra.mxu0 0.0
    %3669 = vmatprep.subr.mxu0 0.0
    %3670 = vmatpush1.msra.mxu0 0.0
    %3671 = vmatprep.subr.mxu0 0.0
    %3672 = vmatpush1.msra.mxu0 0.0
    %3673 = vmatprep.subr.mxu0 0.0
    %3674 = vmatpush1.msra.mxu0 0.0
    %3675 = vmatprep.subr.mxu0 0.0
    %3676 = vmatpush1.msra.mxu0 0.0
    %3677 = vmatprep.subr.mxu0 0.0
    %3678 = vmatpush1.msra.mxu0 0.0
    %3679 = vmatprep.subr.mxu0 0.0
    %3680 = vmatpush1.msra.mxu0 0.0
    %3681 = vmatprep.subr.mxu0 0.0
    %3682 = vmatpush1.msra.mxu0 0.0
    %3683 = vmatprep.subr.mxu0 0.0
    %3684 = vmatpush1.msra.mxu0 0.0
    %3685 = vmatprep.subr.mxu0 0.0
    %3686 = vmatpush1.msra.mxu0 0.0
    %3687 = vmatprep.subr.mxu0 0.0
    %3688 = vmatpush1.msra.mxu0 0.0
    %3689 = vmatprep.subr.mxu0 0.0
    %3690 = vmatpush1.msra.mxu0 0.0
    %3691 = vmatprep.subr.mxu0 0.0
    %3692 = vmatpush1.msra.mxu0 0.0
    %3693 = vmatprep.mubr.f32.mxu0 0.0
    %3694 = vmatmul.mubr.f32.gmra.mrb[0].mxu0 %v3556
    %v3695 = vpop.f32.mrb[0].mxu0
    %v3696 = vadd.f32 0.0, %v3695
    %v3697 = vpop.f32.mrb[0].mxu0
    %v3698 = vadd.f32 0.0, %v3697
    %3699 = vdwg.mxu0
    %v3700 = vlaneseq
    %v3701 = vshrl.u32 %v3700, 7
    %v3702 = vsub.s32 0, %v3701
    %v3703 = vrot.slane %v3625, %v3702
    %v3704 = vlaneseq
    %v3705 = vshrl.u32 %v3704, 7
    %v3706 = vsub.s32 0, %v3705
    %v3707 = vrot.slane %v3627, %v3706
    %v3708 = vlaneseq
    %v3709 = vshrl.u32 %v3708, 7
    %v3710 = vsub.s32 0, %v3709
    %v3711 = vrot.slane %v3696, %v3710
    %v3712 = vlaneseq
    %v3713 = vshrl.u32 %v3712, 7
    %v3714 = vsub.s32 0, %v3713
    %v3715 = vrot.slane %v3698, %v3714
    %v3716 = vmul.f32 %v3190, %v3703
    %v3717 = vmul.f32 %v3192, %v3707
    %v3718 = vmul.f32 %v3231, %v3711
    %v3719 = vmul.f32 %v3233, %v3715
    %v3720 = vlaneseq
    %v3721 = vshrl.u32 %v3720, 7
    %v3722 = vsub.s32 1, %v3721
    %v3723 = vrot.slane %v3625, %v3722
    %v3724 = vlaneseq
    %v3725 = vshrl.u32 %v3724, 7
    %v3726 = vsub.s32 1, %v3725
    %v3727 = vrot.slane %v3627, %v3726
    %v3728 = vlaneseq
    %v3729 = vshrl.u32 %v3728, 7
    %v3730 = vsub.s32 1, %v3729
    %v3731 = vrot.slane %v3696, %v3730
    %v3732 = vlaneseq
    %v3733 = vshrl.u32 %v3732, 7
    %v3734 = vsub.s32 1, %v3733
    %v3735 = vrot.slane %v3698, %v3734
    %v3736 = vadd.f32 %v3716, %v3723
    %v3737 = vadd.f32 %v3717, %v3727
    %v3738 = vadd.f32 %v3718, %v3731
    %v3739 = vadd.f32 %v3719, %v3735
    %vm3740 = vcmp.ge.f32.partialorder %v3736, 0.0
    %vm3741 = vcmp.ge.f32.partialorder %v3737, 0.0
    %vm3742 = vcmp.ge.f32.partialorder %v3738, 0.0
    %vm3743 = vcmp.ge.f32.partialorder %v3739, 0.0
    %v3744 = vmul.f32 %v3736, 0.01
    %v3745 = vmul.f32 %v3737, 0.01
    %v3746 = vmul.f32 %v3738, 0.01
    %v3747 = vmul.f32 %v3739, 0.01
    %v3748 = vsel %vm3740, %v3736, %v3744
    %v3749 = vsel %vm3741, %v3737, %v3745
    %v3750 = vsel %vm3742, %v3738, %v3746
    %v3751 = vsel %vm3743, %v3739, %v3747
    %v3752 = vld [vmem:[#allocation4 + $0x200] sm:$0xff]
    %v3753 = vld [vmem:[#allocation4 + $0x208] sm:$0xff]
    %v3754 = vld [vmem:[#allocation4 + $0x210] sm:$0xff]
    %v3755 = vld [vmem:[#allocation4 + $0x218] sm:$0xff]
    %v3756 = vld [vmem:[#allocation4 + $0x220] sm:$0xff]
    %v3757 = vld [vmem:[#allocation4 + $0x228] sm:$0xff]
    %v3758 = vld [vmem:[#allocation4 + $0x230] sm:$0xff]
    %v3759 = vld [vmem:[#allocation4 + $0x238] sm:$0xff]
    %v3760 = vld [vmem:[#allocation4 + $0x240] sm:$0xff]
    %v3761 = vld [vmem:[#allocation4 + $0x248] sm:$0xff]
    %v3762 = vld [vmem:[#allocation4 + $0x250] sm:$0xff]
    %v3763 = vld [vmem:[#allocation4 + $0x258] sm:$0xff]
    %v3764 = vld [vmem:[#allocation4 + $0x260] sm:$0xff]
    %v3765 = vld [vmem:[#allocation4 + $0x268] sm:$0xff]
    %v3766 = vld [vmem:[#allocation4 + $0x270] sm:$0xff]
    %v3767 = vld [vmem:[#allocation4 + $0x278] sm:$0xff]
    %v3768 = vld [vmem:[#allocation4 + $0x280] sm:$0xff]
    %v3769 = vld [vmem:[#allocation4 + $0x288] sm:$0xff]
    %v3770 = vld [vmem:[#allocation4 + $0x290] sm:$0xff]
    %v3771 = vld [vmem:[#allocation4 + $0x298] sm:$0xff]
    %v3772 = vld [vmem:[#allocation4 + $0x2a0] sm:$0xff]
    %v3773 = vld [vmem:[#allocation4 + $0x2a8] sm:$0xff]
    %v3774 = vld [vmem:[#allocation4 + $0x2b0] sm:$0xff]
    %v3775 = vld [vmem:[#allocation4 + $0x2b8] sm:$0xff]
    %v3776 = vld [vmem:[#allocation4 + $0x2c0] sm:$0xff]
    %v3777 = vld [vmem:[#allocation4 + $0x2c8] sm:$0xff]
    %v3778 = vld [vmem:[#allocation4 + $0x2d0] sm:$0xff]
    %v3779 = vld [vmem:[#allocation4 + $0x2d8] sm:$0xff]
    %v3780 = vld [vmem:[#allocation4 + $0x2e0] sm:$0xff]
    %v3781 = vld [vmem:[#allocation4 + $0x2e8] sm:$0xff]
    %v3782 = vld [vmem:[#allocation4 + $0x2f0] sm:$0xff]
    %v3783 = vld [vmem:[#allocation4 + $0x2f8] sm:$0xff]
    %v3784 = vld [vmem:[#allocation4 + $0x300] sm:$0xff]
    %v3785 = vld [vmem:[#allocation4 + $0x308] sm:$0xff]
    %v3786 = vld [vmem:[#allocation4 + $0x310] sm:$0xff]
    %v3787 = vld [vmem:[#allocation4 + $0x318] sm:$0xff]
    %v3788 = vld [vmem:[#allocation4 + $0x320] sm:$0xff]
    %v3789 = vld [vmem:[#allocation4 + $0x328] sm:$0xff]
    %v3790 = vld [vmem:[#allocation4 + $0x330] sm:$0xff]
    %v3791 = vld [vmem:[#allocation4 + $0x338] sm:$0xff]
    %v3792 = vld [vmem:[#allocation4 + $0x340] sm:$0xff]
    %v3793 = vld [vmem:[#allocation4 + $0x348] sm:$0xff]
    %v3794 = vld [vmem:[#allocation4 + $0x350] sm:$0xff]
    %v3795 = vld [vmem:[#allocation4 + $0x358] sm:$0xff]
    %v3796 = vld [vmem:[#allocation4 + $0x360] sm:$0xff]
    %v3797 = vld [vmem:[#allocation4 + $0x368] sm:$0xff]
    %v3798 = vld [vmem:[#allocation4 + $0x370] sm:$0xff]
    %v3799 = vld [vmem:[#allocation4 + $0x378] sm:$0xff]
    %v3800 = vld [vmem:[#allocation4 + $0x380] sm:$0xff]
    %v3801 = vld [vmem:[#allocation4 + $0x388] sm:$0xff]
    %v3802 = vld [vmem:[#allocation4 + $0x390] sm:$0xff]
    %v3803 = vld [vmem:[#allocation4 + $0x398] sm:$0xff]
    %v3804 = vld [vmem:[#allocation4 + $0x3a0] sm:$0xff]
    %v3805 = vld [vmem:[#allocation4 + $0x3a8] sm:$0xff]
    %v3806 = vld [vmem:[#allocation4 + $0x3b0] sm:$0xff]
    %v3807 = vld [vmem:[#allocation4 + $0x3b8] sm:$0xff]
    %v3808 = vld [vmem:[#allocation4 + $0x3c0] sm:$0xff]
    %v3809 = vld [vmem:[#allocation4 + $0x3c8] sm:$0xff]
    %v3810 = vld [vmem:[#allocation4 + $0x3d0] sm:$0xff]
    %v3811 = vld [vmem:[#allocation4 + $0x3d8] sm:$0xff]
    %v3812 = vld [vmem:[#allocation4 + $0x3e0] sm:$0xff]
    %v3813 = vld [vmem:[#allocation4 + $0x3e8] sm:$0xff]
    %v3814 = vld [vmem:[#allocation4 + $0x3f0] sm:$0xff]
    %v3815 = vld [vmem:[#allocation4 + $0x3f8] sm:$0xff]
    %v3816 = vpack.c.bf16 %v3748, %v3748
    %v3817 = vpack.c.bf16 %v3749, %v3749
    %v3818 = vpack.c.bf16 %v3750, %v3750
    %v3819 = vpack.c.bf16 %v3751, %v3751
    %v3820 = vlaneseq
    %v3821 = vshrl.u32 %v3820, 7
    %v3822 = vsub.s32 5, %v3821
    %v3823 = vrot.slane %v62, %v3822
    %v3824 = vlaneseq
    %v3825 = vshrl.u32 %v3824, 7
    %v3826 = vsub.s32 5, %v3825
    %v3827 = vrot.slane %v63, %v3826
    %v3892 = vunpack.c.l.b16 %v3752
    %v3893 = vunpack.c.h.b16 %v3752
    %v3894 = vunpack.c.l.b16 %v3753
    %v3895 = vunpack.c.h.b16 %v3753
    %v3896 = vunpack.c.l.b16 %v3754
    %v3897 = vunpack.c.h.b16 %v3754
    %v3898 = vunpack.c.l.b16 %v3755
    %v3899 = vunpack.c.h.b16 %v3755
    %v3900 = vunpack.c.l.b16 %v3756
    %v3901 = vunpack.c.h.b16 %v3756
    %v3902 = vunpack.c.l.b16 %v3757
    %v3903 = vunpack.c.h.b16 %v3757
    %v3904 = vunpack.c.l.b16 %v3758
    %v3905 = vunpack.c.h.b16 %v3758
    %v3906 = vunpack.c.l.b16 %v3759
    %v3907 = vunpack.c.h.b16 %v3759
    %v3908 = vunpack.c.l.b16 %v3760
    %v3909 = vunpack.c.h.b16 %v3760
    %v3910 = vunpack.c.l.b16 %v3761
    %v3911 = vunpack.c.h.b16 %v3761
    %v3912 = vunpack.c.l.b16 %v3762
    %v3913 = vunpack.c.h.b16 %v3762
    %v3914 = vunpack.c.l.b16 %v3763
    %v3915 = vunpack.c.h.b16 %v3763
    %v3916 = vunpack.c.l.b16 %v3764
    %v3917 = vunpack.c.h.b16 %v3764
    %v3918 = vunpack.c.l.b16 %v3765
    %v3919 = vunpack.c.h.b16 %v3765
    %v3920 = vunpack.c.l.b16 %v3766
    %v3921 = vunpack.c.h.b16 %v3766
    %v3922 = vunpack.c.l.b16 %v3767
    %v3923 = vunpack.c.h.b16 %v3767
    %v3924 = vunpack.c.l.b16 %v3768
    %v3925 = vunpack.c.h.b16 %v3768
    %v3926 = vunpack.c.l.b16 %v3769
    %v3927 = vunpack.c.h.b16 %v3769
    %v3928 = vunpack.c.l.b16 %v3770
    %v3929 = vunpack.c.h.b16 %v3770
    %v3930 = vunpack.c.l.b16 %v3771
    %v3931 = vunpack.c.h.b16 %v3771
    %v3932 = vunpack.c.l.b16 %v3772
    %v3933 = vunpack.c.h.b16 %v3772
    %v3934 = vunpack.c.l.b16 %v3773
    %v3935 = vunpack.c.h.b16 %v3773
    %v3936 = vunpack.c.l.b16 %v3774
    %v3937 = vunpack.c.h.b16 %v3774
    %v3938 = vunpack.c.l.b16 %v3775
    %v3939 = vunpack.c.h.b16 %v3775
    %v3940 = vunpack.c.l.b16 %v3776
    %v3941 = vunpack.c.h.b16 %v3776
    %v3942 = vunpack.c.l.b16 %v3777
    %v3943 = vunpack.c.h.b16 %v3777
    %v3944 = vunpack.c.l.b16 %v3778
    %v3945 = vunpack.c.h.b16 %v3778
    %v3946 = vunpack.c.l.b16 %v3779
    %v3947 = vunpack.c.h.b16 %v3779
    %v3948 = vunpack.c.l.b16 %v3780
    %v3949 = vunpack.c.h.b16 %v3780
    %v3950 = vunpack.c.l.b16 %v3781
    %v3951 = vunpack.c.h.b16 %v3781
    %v3952 = vunpack.c.l.b16 %v3782
    %v3953 = vunpack.c.h.b16 %v3782
    %v3954 = vunpack.c.l.b16 %v3783
    %v3955 = vunpack.c.h.b16 %v3783
    %v3956 = vunpack.c.l.b16 %v3784
    %v3957 = vunpack.c.h.b16 %v3784
    %v3958 = vunpack.c.l.b16 %v3785
    %v3959 = vunpack.c.h.b16 %v3785
    %v3960 = vunpack.c.l.b16 %v3786
    %v3961 = vunpack.c.h.b16 %v3786
    %v3962 = vunpack.c.l.b16 %v3787
    %v3963 = vunpack.c.h.b16 %v3787
    %v3964 = vunpack.c.l.b16 %v3788
    %v3965 = vunpack.c.h.b16 %v3788
    %v3966 = vunpack.c.l.b16 %v3789
    %v3967 = vunpack.c.h.b16 %v3789
    %v3968 = vunpack.c.l.b16 %v3790
    %v3969 = vunpack.c.h.b16 %v3790
    %v3970 = vunpack.c.l.b16 %v3791
    %v3971 = vunpack.c.h.b16 %v3791
    %v3972 = vunpack.c.l.b16 %v3792
    %v3973 = vunpack.c.h.b16 %v3792
    %v3974 = vunpack.c.l.b16 %v3793
    %v3975 = vunpack.c.h.b16 %v3793
    %v3976 = vunpack.c.l.b16 %v3794
    %v3977 = vunpack.c.h.b16 %v3794
    %v3978 = vunpack.c.l.b16 %v3795
    %v3979 = vunpack.c.h.b16 %v3795
    %v3980 = vunpack.c.l.b16 %v3796
    %v3981 = vunpack.c.h.b16 %v3796
    %v3982 = vunpack.c.l.b16 %v3797
    %v3983 = vunpack.c.h.b16 %v3797
    %v3984 = vunpack.c.l.b16 %v3798
    %v3985 = vunpack.c.h.b16 %v3798
    %v3986 = vunpack.c.l.b16 %v3799
    %v3987 = vunpack.c.h.b16 %v3799
    %v3988 = vunpack.c.l.b16 %v3800
    %v3989 = vunpack.c.h.b16 %v3800
    %v3990 = vunpack.c.l.b16 %v3801
    %v3991 = vunpack.c.h.b16 %v3801
    %v3992 = vunpack.c.l.b16 %v3802
    %v3993 = vunpack.c.h.b16 %v3802
    %v3994 = vunpack.c.l.b16 %v3803
    %v3995 = vunpack.c.h.b16 %v3803
    %v3996 = vunpack.c.l.b16 %v3804
    %v3997 = vunpack.c.h.b16 %v3804
    %v3998 = vunpack.c.l.b16 %v3805
    %v3999 = vunpack.c.h.b16 %v3805
    %v4000 = vunpack.c.l.b16 %v3806
    %v4001 = vunpack.c.h.b16 %v3806
    %v4002 = vunpack.c.l.b16 %v3807
    %v4003 = vunpack.c.h.b16 %v3807
    %v4004 = vunpack.c.l.b16 %v3808
    %v4005 = vunpack.c.h.b16 %v3808
    %v4006 = vunpack.c.l.b16 %v3809
    %v4007 = vunpack.c.h.b16 %v3809
    %v4008 = vunpack.c.l.b16 %v3810
    %v4009 = vunpack.c.h.b16 %v3810
    %v4010 = vunpack.c.l.b16 %v3811
    %v4011 = vunpack.c.h.b16 %v3811
    %v4012 = vunpack.c.l.b16 %v3812
    %v4013 = vunpack.c.h.b16 %v3812
    %v4014 = vunpack.c.l.b16 %v3813
    %v4015 = vunpack.c.h.b16 %v3813
    %v4016 = vunpack.c.l.b16 %v3814
    %v4017 = vunpack.c.h.b16 %v3814
    %v4018 = vunpack.c.l.b16 %v3815
    %v4019 = vunpack.c.h.b16 %v3815
    %v4020 = vpack.c.b16 %v3894, %v3892
    %v4021 = vpack.c.b16 %v3895, %v3893
    %v4022 = vpack.c.b16 %v3898, %v3896
    %v4023 = vpack.c.b16 %v3899, %v3897
    %v4024 = vpack.c.b16 %v3902, %v3900
    %v4025 = vpack.c.b16 %v3903, %v3901
    %v4026 = vpack.c.b16 %v3906, %v3904
    %v4027 = vpack.c.b16 %v3907, %v3905
    %v4028 = vpack.c.b16 %v3910, %v3908
    %v4029 = vpack.c.b16 %v3911, %v3909
    %v4030 = vpack.c.b16 %v3914, %v3912
    %v4031 = vpack.c.b16 %v3915, %v3913
    %v4032 = vpack.c.b16 %v3918, %v3916
    %v4033 = vpack.c.b16 %v3919, %v3917
    %v4034 = vpack.c.b16 %v3922, %v3920
    %v4035 = vpack.c.b16 %v3923, %v3921
    %v4036 = vpack.c.b16 %v3926, %v3924
    %v4037 = vpack.c.b16 %v3927, %v3925
    %v4038 = vpack.c.b16 %v3930, %v3928
    %v4039 = vpack.c.b16 %v3931, %v3929
    %v4040 = vpack.c.b16 %v3934, %v3932
    %v4041 = vpack.c.b16 %v3935, %v3933
    %v4042 = vpack.c.b16 %v3938, %v3936
    %v4043 = vpack.c.b16 %v3939, %v3937
    %v4044 = vpack.c.b16 %v3942, %v3940
    %v4045 = vpack.c.b16 %v3943, %v3941
    %v4046 = vpack.c.b16 %v3946, %v3944
    %v4047 = vpack.c.b16 %v3947, %v3945
    %v4048 = vpack.c.b16 %v3950, %v3948
    %v4049 = vpack.c.b16 %v3951, %v3949
    %v4050 = vpack.c.b16 %v3954, %v3952
    %v4051 = vpack.c.b16 %v3955, %v3953
    %v4052 = vpack.c.b16 %v3958, %v3956
    %v4053 = vpack.c.b16 %v3959, %v3957
    %v4054 = vpack.c.b16 %v3962, %v3960
    %v4055 = vpack.c.b16 %v3963, %v3961
    %v4056 = vpack.c.b16 %v3966, %v3964
    %v4057 = vpack.c.b16 %v3967, %v3965
    %v4058 = vpack.c.b16 %v3970, %v3968
    %v4059 = vpack.c.b16 %v3971, %v3969
    %v4060 = vpack.c.b16 %v3974, %v3972
    %v4061 = vpack.c.b16 %v3975, %v3973
    %v4062 = vpack.c.b16 %v3978, %v3976
    %v4063 = vpack.c.b16 %v3979, %v3977
    %v4064 = vpack.c.b16 %v3982, %v3980
    %v4065 = vpack.c.b16 %v3983, %v3981
    %v4066 = vpack.c.b16 %v3986, %v3984
    %v4067 = vpack.c.b16 %v3987, %v3985
    %v4068 = vpack.c.b16 %v3990, %v3988
    %v4069 = vpack.c.b16 %v3991, %v3989
    %v4070 = vpack.c.b16 %v3994, %v3992
    %v4071 = vpack.c.b16 %v3995, %v3993
    %v4072 = vpack.c.b16 %v3998, %v3996
    %v4073 = vpack.c.b16 %v3999, %v3997
    %v4074 = vpack.c.b16 %v4002, %v4000
    %v4075 = vpack.c.b16 %v4003, %v4001
    %v4076 = vpack.c.b16 %v4006, %v4004
    %v4077 = vpack.c.b16 %v4007, %v4005
    %v4078 = vpack.c.b16 %v4010, %v4008
    %v4079 = vpack.c.b16 %v4011, %v4009
    %v4080 = vpack.c.b16 %v4014, %v4012
    %v4081 = vpack.c.b16 %v4015, %v4013
    %v4082 = vpack.c.b16 %v4018, %v4016
    %v4083 = vpack.c.b16 %v4019, %v4017
    %4148 = vmatprep.subr.bf16.mxu0 %v4021
    %4149 = vmatpush1.bf16.msra.mxu0 %v4020
    %4150 = vmatprep.subr.bf16.mxu0 %v4023
    %4151 = vmatpush1.bf16.msra.mxu0 %v4022
    %4152 = vmatprep.subr.bf16.mxu0 %v4025
    %4153 = vmatpush1.bf16.msra.mxu0 %v4024
    %4154 = vmatprep.subr.bf16.mxu0 %v4027
    %4155 = vmatpush1.bf16.msra.mxu0 %v4026
    %4156 = vmatprep.subr.bf16.mxu0 %v4029
    %4157 = vmatpush1.bf16.msra.mxu0 %v4028
    %4158 = vmatprep.subr.bf16.mxu0 %v4031
    %4159 = vmatpush1.bf16.msra.mxu0 %v4030
    %4160 = vmatprep.subr.bf16.mxu0 %v4033
    %4161 = vmatpush1.bf16.msra.mxu0 %v4032
    %4162 = vmatprep.subr.bf16.mxu0 %v4035
    %4163 = vmatpush1.bf16.msra.mxu0 %v4034
    %4164 = vmatprep.subr.bf16.mxu0 %v4037
    %4165 = vmatpush1.bf16.msra.mxu0 %v4036
    %4166 = vmatprep.subr.bf16.mxu0 %v4039
    %4167 = vmatpush1.bf16.msra.mxu0 %v4038
    %4168 = vmatprep.subr.bf16.mxu0 %v4041
    %4169 = vmatpush1.bf16.msra.mxu0 %v4040
    %4170 = vmatprep.subr.bf16.mxu0 %v4043
    %4171 = vmatpush1.bf16.msra.mxu0 %v4042
    %4172 = vmatprep.subr.bf16.mxu0 %v4045
    %4173 = vmatpush1.bf16.msra.mxu0 %v4044
    %4174 = vmatprep.subr.bf16.mxu0 %v4047
    %4175 = vmatpush1.bf16.msra.mxu0 %v4046
    %4176 = vmatprep.subr.bf16.mxu0 %v4049
    %4177 = vmatpush1.bf16.msra.mxu0 %v4048
    %4178 = vmatprep.subr.bf16.mxu0 %v4051
    %4179 = vmatpush1.bf16.msra.mxu0 %v4050
    %4180 = vmatprep.mubr.bf16.mxu0 %v3817
    %4181 = vmatmul.mubr.bf16.gmra.mrb[0].mxu0 %v3816
    %v4182 = vpop.f32.mrb[0].mxu0
    %v4183 = vadd.f32 %v3823, %v4182
    %v4184 = vpop.f32.mrb[0].mxu0
    %v4185 = vadd.f32 %v3827, %v4184
    %v4186 = vpop.f32.mrb[0].mxu0
    %v4187 = vpop.f32.mrb[0].mxu0
    %4188 = vdwg.mxu0
    %4189 = vmatprep.subr.bf16.mxu0 %v4053
    %4190 = vmatpush1.bf16.msra.mxu0 %v4052
    %4191 = vmatprep.subr.bf16.mxu0 %v4055
    %4192 = vmatpush1.bf16.msra.mxu0 %v4054
    %4193 = vmatprep.subr.bf16.mxu0 %v4057
    %4194 = vmatpush1.bf16.msra.mxu0 %v4056
    %4195 = vmatprep.subr.bf16.mxu0 %v4059
    %4196 = vmatpush1.bf16.msra.mxu0 %v4058
    %4197 = vmatprep.subr.bf16.mxu0 %v4061
    %4198 = vmatpush1.bf16.msra.mxu0 %v4060
    %4199 = vmatprep.subr.bf16.mxu0 %v4063
    %4200 = vmatpush1.bf16.msra.mxu0 %v4062
    %4201 = vmatprep.subr.bf16.mxu0 %v4065
    %4202 = vmatpush1.bf16.msra.mxu0 %v4064
    %4203 = vmatprep.subr.bf16.mxu0 %v4067
    %4204 = vmatpush1.bf16.msra.mxu0 %v4066
    %4205 = vmatprep.subr.bf16.mxu0 %v4069
    %4206 = vmatpush1.bf16.msra.mxu0 %v4068
    %4207 = vmatprep.subr.bf16.mxu0 %v4071
    %4208 = vmatpush1.bf16.msra.mxu0 %v4070
    %4209 = vmatprep.subr.bf16.mxu0 %v4073
    %4210 = vmatpush1.bf16.msra.mxu0 %v4072
    %4211 = vmatprep.subr.bf16.mxu0 %v4075
    %4212 = vmatpush1.bf16.msra.mxu0 %v4074
    %4213 = vmatprep.subr.bf16.mxu0 %v4077
    %4214 = vmatpush1.bf16.msra.mxu0 %v4076
    %4215 = vmatprep.subr.bf16.mxu0 %v4079
    %4216 = vmatpush1.bf16.msra.mxu0 %v4078
    %4217 = vmatprep.subr.bf16.mxu0 %v4081
    %4218 = vmatpush1.bf16.msra.mxu0 %v4080
    %4219 = vmatprep.subr.bf16.mxu0 %v4083
    %4220 = vmatpush1.bf16.msra.mxu0 %v4082
    %4221 = vmatprep.mubr.bf16.mxu0 %v3819
    %4222 = vmatmul.mubr.bf16.gmra.mrb[0].mxu0 %v3818
    %v4223 = vpop.f32.mrb[0].mxu0
    %v4224 = vadd.f32 %v4183, %v4223
    %v4225 = vpop.f32.mrb[0].mxu0
    %v4226 = vadd.f32 %v4185, %v4225
    %v4227 = vpop.f32.mrb[0].mxu0
    %v4228 = vpop.f32.mrb[0].mxu0
    %4229 = vdwg.mxu0
    %v4230 = vand.u32 2147483647, %v4224
    %v4231 = vand.u32 2147483647, %v4226
    %v4232 = vsub.f32 0.0, %v4230
    %v4233 = vsub.f32 0.0, %v4231
    %v4234 = vmul.f32 %v4232, 1.442695
    %v4235 = vpow.pop %v4234
    %v4236 = vmul.f32 %v4233, 1.442695
    %v4237 = vpow.pop %v4236
    %vm4238 = vcmp.ge.f32.partialorder %v4224, 0.0
    %vm4239 = vcmp.ge.f32.partialorder %v4226, 0.0
    %v4240 = vsel %vm4238, 1.0, %v4235
    %v4241 = vsel %vm4239, 1.0, %v4237
    %v4242 = vadd.f32 %v4235, 1.0
    %v4243 = vadd.f32 %v4237, 1.0
    %v4244 = vrcp.pop %v4242
    %v4245 = vmul.f32 %v4240, %v4244
    %v4246 = vrcp.pop %v4243
    %v4247 = vmul.f32 %v4241, %v4246
    %v4251 = vcombine.low %v2210, %v4245
    %v4253 = vunpack.c.l.s4 1983009808
    %v4254 = vunpack.c.0.s8 %v4253
    %v4255 = vlaneseq
    %v4256 = vshrl.u32 %v4255, 7
    %v4257 = vsub.s32 %v4254, %v4256
    %v4258 = vrot.slane %v4251, %v4257
    %v4260 = vunpack.c.l.s4 1983009808
    %v4261 = vunpack.c.0.s8 %v4260
    %v4262 = vlaneseq
    %v4263 = vshrl.u32 %v4262, 7
    %v4264 = vsub.s32 %v4261, %v4263
    %v4265 = vrot.slane %v4247, %v4264
    %v4266 = vcombine.low %v4258, %v4265
    %4268 = vst [vmem:[%s9] sm:$0x3f] %v4266
    // Predicated region
    $region46: #{forward.1} parent=1 // pred_check
      _
    $region47: #{forward.1} parent=1 // pred_check_branch
      %4270 = sbr.rel (0) target = $region49
    $region48: #{forward.1} parent=1 // pred_region
      _
    $region49: #{forward.1} parent=1 // pred_fallthru
      _
    // Predicated region
    $region50: #{forward.1} parent=1 // pred_check
      _
    $region51: #{forward.1} parent=1 // pred_check_branch
      %4272 = sbr.rel (0) target = $region53
    $region52: #{forward.1} parent=1 // pred_region
      _
    $region53: #{forward.1} parent=1 // pred_fallthru
      _
    %4273 = vsyncpa [#allocation3], 1
    %4274 = vsyncpa [#allocation5], 1

</llo_original>
